<compile_context>
chip_gen: v6e
topology: v6e:2x2x1
jax: 0.10.0
libtpu: 0.0.40
codegen_flags: <defaults>
</compile_context>

<pallas_src>
import jax
import jax.numpy as jnp
import numpy as np
from jax.experimental import pallas as pl
from jax.experimental.pallas import tpu as pltpu


# -------------------------- kernel-side helpers --------------------------

def _gelu(x):
    # exact (erf-based) GELU, matching torch.nn.GELU() default (approximate='none')
    return 0.5 * x * (1.0 + jax.lax.erf(x * jnp.float32(1.0 / np.sqrt(2.0))))


def _mm(a, w):
    # contract last dim of `a` with first dim of `w`; f32 accumulation on the MXU
    return jax.lax.dot_general(
        a, w,
        dimension_numbers=(((a.ndim - 1,), (0,)), ((), ())),
        preferred_element_type=jnp.float32)


# -------------------------------- kernel ---------------------------------

def cnn1d_kernel(xp_ref, w1_ref, b1_ref, w2_ref, b2_ref,
                 fw1_ref, fb1_ref, fw2_ref, fb2_ref, out_ref):
    TB, Lp4, Cin = xp_ref.shape
    L = Lp4 - 4          # original length
    Lext = L + 2         # conv1 computed on the extended range [-1, L]

    xp = xp_ref[...]                                              # (TB, L+4, Cin) bf16

    # ---- conv1 (+GELU) on the extended range, per-tap accumulated matmuls ---
    # out1_ext[j] = sum_k xp[j + k] @ w1[k],  j in [0, L+2)
    h1 = _mm(xp[:, 0:Lext, :], w1_ref[0])
    h1 = h1 + _mm(xp[:, 1:1 + Lext, :], w1_ref[1])
    h1 = h1 + _mm(xp[:, 2:2 + Lext, :], w1_ref[2])
    h1 = _gelu(h1 + b1_ref[...].reshape(1, 1, -1))                # (TB, Lext, C1) f32

    # zero the two halo rows -> h1 is exactly the zero-padded GELU(conv1(x))
    pos = jax.lax.broadcasted_iota(jnp.int32, h1.shape, 1)
    h1 = jnp.where((pos > 0) & (pos < Lext - 1), h1, 0.0).astype(jnp.bfloat16)

    # ---- conv2 (+GELU), per-tap accumulated matmuls (depth C1 each) ---------
    h2 = _mm(h1[:, 0:L, :], w2_ref[0])
    h2 = h2 + _mm(h1[:, 1:1 + L, :], w2_ref[1])
    h2 = h2 + _mm(h1[:, 2:2 + L, :], w2_ref[2])
    h2 = _gelu(h2 + b2_ref[...].reshape(1, 1, -1))                # (TB, L, C1) f32

    # ---- global average pool (1/L folded into fc1 weight) + fc1 + GELU -----
    # TODO(synk): at large L switch this XLU reduce to a ones-row matmul.
    g = jnp.sum(h2, axis=1).astype(jnp.bfloat16)                   # (TB, C1)
    f = _gelu(_mm(g, fw1_ref[...]) + fb1_ref[...])                 # (TB, H) f32

    # ---- fc2, padded to a lane-dense (TB, 128) output ----------------------
    o = _mm(f.astype(jnp.bfloat16), fw2_ref[...]) + fb2_ref[...]
    out_ref[...] = o.astype(out_ref.dtype)


# ------------------------------- wrapper ----------------------------------

def _tpu_generation():
    try:
        kind = jax.devices()[0].device_kind.lower()
    except Exception:
        return "unknown"
    if "v7" in kind or "7x" in kind:
        return "v7x"
    if "v6" in kind:
        return "v6e"
    if "v5" in kind:
        return "v5e"
    return "unknown"


# (per-tile budget bytes, vmem_limit_bytes, prefer >=2 even grid steps)
_GEN_CONFIG = {
    "v5e":     (24 << 20, 64 * 1024 * 1024, False),   # 1 TC, 128 MiB VMEM
    "v6e":     (32 << 20, 96 * 1024 * 1024, False),   # 1 TC, 128 MiB VMEM
    "v7x":     (6 << 20,  32 * 1024 * 1024, True),    # 2 TCs, 64 MiB VMEM
    "unknown": (6 << 20,  32 * 1024 * 1024, True),    # conservative default
}


def _choose_tb(B, L, cin, c1, budget_bytes, prefer_multi_step):
    """Largest batch tile that divides B, keeps the output block's second-to-last
    dim legal (tb % 8 == 0 or tb == B), and fits the per-generation VMEM tile
    budget.  On multi-TensorCore chips (v7x) prefer an even number of grid steps
    so the 'parallel' batch axis load-balances; on single-TC chips take the
    largest tile (ideally TB=B) to amortize per-step overhead and fill MXU rows."""
    per_row = 4 * ((L + 4) * cin + 10 * (L + 2) * c1)  # rough f32 live-intermediate bytes
    cands = [d for d in range(1, B + 1)
             if B % d == 0 and (d % 8 == 0 or d == B) and d * per_row <= budget_bytes]
    if not cands:
        return B
    if prefer_multi_step:
        multi = [d for d in cands if d < B and (B // d) % 2 == 0]
        if multi:
            return max(multi)
    return max(cands)


def cnn1d_forward(x, params, *, tb=None):
    """x: (B, C_in, L) (or (B, L), treated as C_in=1, like the torch module)."""
    if x.ndim == 2:
        x = x[:, None, :]
    B, Cin, L = x.shape
    C1, _, K = params["conv1_w"].shape
    H = params["fc1_w"].shape[0]
    out_unit = params["fc2_w"].shape[0]
    OUT_PAD = 128
    assert K == 3, "kernel written for kernel_size=3 ('same' padding = 1)"

    # NCW -> NWC, pre-pad length by 2 each side (conv1 halo + conv2 halo); bf16 MXU operand
    x_nwc = jnp.transpose(x, (0, 2, 1)).astype(jnp.bfloat16)       # (B, L, Cin)
    xp = jnp.pad(x_nwc, ((0, 0), (2, 2), (0, 0)))                  # (B, L+4, Cin)

    # per-tap conv weights: torch (C_out, C_in, K) -> (K, C_in, C_out); bf16 MXU operands
    w1 = jnp.transpose(params["conv1_w"], (2, 1, 0)).astype(jnp.bfloat16)   # (K, Cin, C1)
    w2 = jnp.transpose(params["conv2_w"], (2, 1, 0)).astype(jnp.bfloat16)   # (K, C1, C1)
    b1 = params["conv1_b"].reshape(1, C1).astype(jnp.float32)
    b2 = params["conv2_b"].reshape(1, C1).astype(jnp.float32)
    # fold GAP's 1/L into fc1; pad fc2 to a lane-dense 128-wide output
    fw1 = (params["fc1_w"].T / np.float32(L)).astype(jnp.bfloat16)          # (C1, H)
    fb1 = params["fc1_b"].reshape(1, H).astype(jnp.float32)
    fw2 = jnp.zeros((H, OUT_PAD), jnp.float32).at[:, :out_unit].set(
        params["fc2_w"].T).astype(jnp.bfloat16)
    fb2 = jnp.zeros((1, OUT_PAD), jnp.float32).at[:, :out_unit].set(
        params["fc2_b"].reshape(1, -1))

    budget_bytes, vmem_limit, prefer_multi = _GEN_CONFIG[_tpu_generation()]
    if tb is None:
        tb = _choose_tb(B, L, Cin, C1, budget_bytes, prefer_multi)
    assert B % tb == 0 and (tb % 8 == 0 or tb == B), (B, tb)
    grid = (B // tb,)

    # NOTE: the 8 weight/bias operands have constant block indices; Pallas still
    # double-buffers them (pl.Buffered(1) would save a little VMEM headroom on
    # v7x but is skipped here to keep lowering maximally portable).
    def full(a):
        return pl.BlockSpec(a.shape, lambda b, _nd=a.ndim: (0,) * _nd)

    out_padded = pl.pallas_call(
        cnn1d_kernel,
        out_shape=jax.ShapeDtypeStruct((B, OUT_PAD), jnp.float32),
        grid=grid,
        in_specs=[pl.BlockSpec((tb, L + 4, Cin), lambda b: (b, 0, 0)),
                  full(w1), full(b1), full(w2), full(b2),
                  full(fw1), full(fb1), full(fw2), full(fb2)],
        out_specs=pl.BlockSpec((tb, OUT_PAD), lambda b: (b, 0)),
        compiler_params=pltpu.CompilerParams(
            dimension_semantics=("parallel",),
            vmem_limit_bytes=vmem_limit),
    )(xp, w1, b1, w2, b2, fw1, fb1, fw2, fb2)

    return out_padded[:, :out_unit]


# ---------------------------- pure-JAX reference ---------------------------

def cnn1d_reference(x, params):
    if x.ndim == 2:
        x = x[:, None, :]

    def conv(inp, w, b):
        y = jax.lax.conv_general_dilated(
            inp, w, window_strides=(1,), padding=[(1, 1)],
            dimension_numbers=("NCH", "OIH", "NCH"))
        return y + b.reshape(1, -1, 1)

    h = _gelu(conv(x, params["conv1_w"], params["conv1_b"]))
    h = _gelu(conv(h, params["conv2_w"], params["conv2_b"]))
    g = jnp.mean(h, axis=-1)                                  # GAP over length
    f = _gelu(g @ params["fc1_w"].T + params["fc1_b"])
    return f @ params["fc2_w"].T + params["fc2_b"]


# --------------------------------- main ------------------------------------

if __name__ == "__main__":
    in_channels = 4
    base_channels = 64
    kernel_size = 3
    hidden_unit_factor = 1
    out_unit = 1
    B, L = 16, 16                       # v5e/v6e: TB=16 grid=(1,); v7x: TB=8 grid=(2,)
    hidden = base_channels * hidden_unit_factor

    key = jax.random.PRNGKey(0)
    keys = jax.random.split(key, 9)
    params = {
        # PyTorch parameter shapes
        "conv1_w": 0.1 * jax.random.normal(keys[0], (base_channels, in_channels, kernel_size), jnp.float32),
        "conv1_b": 0.1 * jax.random.normal(keys[1], (base_channels,), jnp.float32),
        "conv2_w": 0.1 * jax.random.normal(keys[2], (base_channels, base_channels, kernel_size), jnp.float32),
        "conv2_b": 0.1 * jax.random.normal(keys[3], (base_channels,), jnp.float32),
        "fc1_w":   0.1 * jax.random.normal(keys[4], (hidden, base_channels), jnp.float32),
        "fc1_b":   0.1 * jax.random.normal(keys[5], (hidden,), jnp.float32),
        "fc2_w":   0.1 * jax.random.normal(keys[6], (out_unit, hidden), jnp.float32),
        "fc2_b":   0.1 * jax.random.normal(keys[7], (out_unit,), jnp.float32),
    }

    x = jax.random.normal(keys[8], (B, in_channels, L), jnp.float32)

    out = jax.block_until_ready(cnn1d_forward(x, params))
    ref = jax.block_until_ready(cnn1d_reference(x, params))

    assert out.shape == (B, out_unit), out.shape
    # bf16 MXU operands (f32 accumulation) -> compare against the f32 reference
    # with a tolerance that covers bf16 operand rounding.
    np.testing.assert_allclose(np.asarray(out), np.asarray(ref), rtol=2e-2, atol=2e-2)
    print("KERNEL_OK")
</pallas_src>

<mosaic_0001>
module attributes {stable_mosaic.version = 11 : i64} {
  func.func @cnn1d_kernel(%arg0: i32, %arg1: memref<8x20x4xbf16, #tpu.memory_space<vmem>>, %arg2: memref<3x4x64xbf16, #tpu.memory_space<vmem>>, %arg3: memref<1x64xf32, #tpu.memory_space<vmem>>, %arg4: memref<3x64x64xbf16, #tpu.memory_space<vmem>>, %arg5: memref<1x64xf32, #tpu.memory_space<vmem>>, %arg6: memref<64x64xbf16, #tpu.memory_space<vmem>>, %arg7: memref<1x64xf32, #tpu.memory_space<vmem>>, %arg8: memref<64x128xbf16, #tpu.memory_space<vmem>>, %arg9: memref<1x128xf32, #tpu.memory_space<vmem>>, %arg10: memref<8x128xf32, #tpu.memory_space<vmem>>) attributes {dimension_semantics = [#tpu.dimension_semantics<parallel>], iteration_bounds = array<i64: 2>, scalar_prefetch = 0 : i64, scratch_operands = 0 : i64, tpu.core_type = #tpu.core_type<tc>, window_params = [{transform_indices = @transform_0, window_bounds = array<i64: 8, 20, 4>}, {pipeline_mode = #tpu.pipeline_mode<synchronous>, transform_indices = @transform_1, window_bounds = array<i64: 3, 4, 64>}, {pipeline_mode = #tpu.pipeline_mode<synchronous>, transform_indices = @transform_2, window_bounds = array<i64: 1, 64>}, {pipeline_mode = #tpu.pipeline_mode<synchronous>, transform_indices = @transform_3, window_bounds = array<i64: 3, 64, 64>}, {pipeline_mode = #tpu.pipeline_mode<synchronous>, transform_indices = @transform_4, window_bounds = array<i64: 1, 64>}, {pipeline_mode = #tpu.pipeline_mode<synchronous>, transform_indices = @transform_5, window_bounds = array<i64: 64, 64>}, {pipeline_mode = #tpu.pipeline_mode<synchronous>, transform_indices = @transform_6, window_bounds = array<i64: 1, 64>}, {pipeline_mode = #tpu.pipeline_mode<synchronous>, transform_indices = @transform_7, window_bounds = array<i64: 64, 128>}, {pipeline_mode = #tpu.pipeline_mode<synchronous>, transform_indices = @transform_8, window_bounds = array<i64: 1, 128>}, {transform_indices = @transform_9, window_bounds = array<i64: 8, 128>}]} {
    %c0 = arith.constant 0 : index
    %c0_0 = arith.constant 0 : index
    %c0_1 = arith.constant 0 : index
    %0 = vector.load %arg1[%c0, %c0_0, %c0_1] : memref<8x20x4xbf16, #tpu.memory_space<vmem>>, vector<8x20x4xbf16>
    %1 = vector.extract_strided_slice %0 {offsets = [0, 0, 0], sizes = [8, 18, 4], strides = [1, 1, 1]} : vector<8x20x4xbf16> to vector<8x18x4xbf16>
    %c0_2 = arith.constant 0 : index
    %c0_3 = arith.constant 0 : index
    %c0_4 = arith.constant 0 : index
    %2 = vector.load %arg2[%c0_2, %c0_3, %c0_4] : memref<3x4x64xbf16, #tpu.memory_space<vmem>>, vector<1x4x64xbf16>
    %3 = vector.shape_cast %2 : vector<1x4x64xbf16> to vector<4x64xbf16>
    %cst = arith.constant dense<0.000000e+00> : vector<8x18x64xf32>
    %4 = tpu.matmul %1, %3, %cst {dimension_numbers = #tpu.dot_dimension_numbers<[2], [0], [0, 1], [1], [0, 0, 0, 1, 1, 1], [], []>} : vector<8x18x4xbf16>, vector<4x64xbf16>, vector<8x18x64xf32> -> vector<8x18x64xf32>
    %5 = vector.extract_strided_slice %0 {offsets = [0, 1, 0], sizes = [8, 18, 4], strides = [1, 1, 1]} : vector<8x20x4xbf16> to vector<8x18x4xbf16>
    %c1 = arith.constant 1 : index
    %c0_5 = arith.constant 0 : index
    %c0_6 = arith.constant 0 : index
    %6 = vector.load %arg2[%c1, %c0_5, %c0_6] : memref<3x4x64xbf16, #tpu.memory_space<vmem>>, vector<1x4x64xbf16>
    %7 = vector.shape_cast %6 : vector<1x4x64xbf16> to vector<4x64xbf16>
    %cst_7 = arith.constant dense<0.000000e+00> : vector<8x18x64xf32>
    %8 = tpu.matmul %5, %7, %cst_7 {dimension_numbers = #tpu.dot_dimension_numbers<[2], [0], [0, 1], [1], [0, 0, 0, 1, 1, 1], [], []>} : vector<8x18x4xbf16>, vector<4x64xbf16>, vector<8x18x64xf32> -> vector<8x18x64xf32>
    %9 = arith.addf %4, %8 : vector<8x18x64xf32>
    %10 = vector.extract_strided_slice %0 {offsets = [0, 2, 0], sizes = [8, 18, 4], strides = [1, 1, 1]} : vector<8x20x4xbf16> to vector<8x18x4xbf16>
    %c2 = arith.constant 2 : index
    %c0_8 = arith.constant 0 : index
    %c0_9 = arith.constant 0 : index
    %11 = vector.load %arg2[%c2, %c0_8, %c0_9] : memref<3x4x64xbf16, #tpu.memory_space<vmem>>, vector<1x4x64xbf16>
    %12 = vector.shape_cast %11 : vector<1x4x64xbf16> to vector<4x64xbf16>
    %cst_10 = arith.constant dense<0.000000e+00> : vector<8x18x64xf32>
    %13 = tpu.matmul %10, %12, %cst_10 {dimension_numbers = #tpu.dot_dimension_numbers<[2], [0], [0, 1], [1], [0, 0, 0, 1, 1, 1], [], []>} : vector<8x18x4xbf16>, vector<4x64xbf16>, vector<8x18x64xf32> -> vector<8x18x64xf32>
    %14 = arith.addf %9, %13 : vector<8x18x64xf32>
    %c0_11 = arith.constant 0 : index
    %c0_12 = arith.constant 0 : index
    %15 = vector.load %arg3[%c0_11, %c0_12] : memref<1x64xf32, #tpu.memory_space<vmem>>, vector<1x64xf32>
    %16 = vector.shape_cast %15 : vector<1x64xf32> to vector<1x1x64xf32>
    %17 = vector.broadcast %16 : vector<1x1x64xf32> to vector<8x18x64xf32>
    %18 = arith.addf %14, %17 : vector<8x18x64xf32>
    %cst_13 = arith.constant 5.000000e-01 : f32
    %19 = vector.broadcast %cst_13 : f32 to vector<8x18x64xf32>
    %20 = arith.mulf %19, %18 : vector<8x18x64xf32>
    %cst_14 = arith.constant 0.707106769 : f32
    %21 = vector.broadcast %cst_14 : f32 to vector<8x18x64xf32>
    %22 = arith.mulf %18, %21 : vector<8x18x64xf32>
    %23 = math.erf %22 : vector<8x18x64xf32>
    %cst_15 = arith.constant 1.000000e+00 : f32
    %24 = vector.broadcast %cst_15 : f32 to vector<8x18x64xf32>
    %25 = arith.addf %24, %23 : vector<8x18x64xf32>
    %26 = arith.mulf %20, %25 : vector<8x18x64xf32>
    %27 = tpu.iota {dimensions = array<i32: 1>} : vector<8x18x64xi32>
    %c0_i32 = arith.constant 0 : i32
    %28 = vector.broadcast %c0_i32 : i32 to vector<8x18x64xi32>
    %29 = arith.cmpi sgt, %27, %28 : vector<8x18x64xi32>
    %c17_i32 = arith.constant 17 : i32
    %30 = vector.broadcast %c17_i32 : i32 to vector<8x18x64xi32>
    %31 = arith.cmpi slt, %27, %30 : vector<8x18x64xi32>
    %32 = arith.andi %29, %31 : vector<8x18x64xi1>
    %cst_16 = arith.constant 0.000000e+00 : f32
    %33 = vector.broadcast %cst_16 : f32 to vector<8x18x64xf32>
    %34 = arith.select %32, %26, %33 : vector<8x18x64xi1>, vector<8x18x64xf32>
    %35 = arith.truncf %34 : vector<8x18x64xf32> to vector<8x18x64xbf16>
    %36 = vector.extract_strided_slice %35 {offsets = [0, 0, 0], sizes = [8, 16, 64], strides = [1, 1, 1]} : vector<8x18x64xbf16> to vector<8x16x64xbf16>
    %c0_17 = arith.constant 0 : index
    %c0_18 = arith.constant 0 : index
    %c0_19 = arith.constant 0 : index
    %37 = vector.load %arg4[%c0_17, %c0_18, %c0_19] : memref<3x64x64xbf16, #tpu.memory_space<vmem>>, vector<1x64x64xbf16>
    %38 = vector.shape_cast %37 : vector<1x64x64xbf16> to vector<64x64xbf16>
    %cst_20 = arith.constant dense<0.000000e+00> : vector<8x16x64xf32>
    %39 = tpu.matmul %36, %38, %cst_20 {dimension_numbers = #tpu.dot_dimension_numbers<[2], [0], [0, 1], [1], [0, 0, 0, 1, 1, 1], [], []>} : vector<8x16x64xbf16>, vector<64x64xbf16>, vector<8x16x64xf32> -> vector<8x16x64xf32>
    %40 = vector.extract_strided_slice %35 {offsets = [0, 1, 0], sizes = [8, 16, 64], strides = [1, 1, 1]} : vector<8x18x64xbf16> to vector<8x16x64xbf16>
    %c1_21 = arith.constant 1 : index
    %c0_22 = arith.constant 0 : index
    %c0_23 = arith.constant 0 : index
    %41 = vector.load %arg4[%c1_21, %c0_22, %c0_23] : memref<3x64x64xbf16, #tpu.memory_space<vmem>>, vector<1x64x64xbf16>
    %42 = vector.shape_cast %41 : vector<1x64x64xbf16> to vector<64x64xbf16>
    %cst_24 = arith.constant dense<0.000000e+00> : vector<8x16x64xf32>
    %43 = tpu.matmul %40, %42, %cst_24 {dimension_numbers = #tpu.dot_dimension_numbers<[2], [0], [0, 1], [1], [0, 0, 0, 1, 1, 1], [], []>} : vector<8x16x64xbf16>, vector<64x64xbf16>, vector<8x16x64xf32> -> vector<8x16x64xf32>
    %44 = arith.addf %39, %43 : vector<8x16x64xf32>
    %45 = vector.extract_strided_slice %35 {offsets = [0, 2, 0], sizes = [8, 16, 64], strides = [1, 1, 1]} : vector<8x18x64xbf16> to vector<8x16x64xbf16>
    %c2_25 = arith.constant 2 : index
    %c0_26 = arith.constant 0 : index
    %c0_27 = arith.constant 0 : index
    %46 = vector.load %arg4[%c2_25, %c0_26, %c0_27] : memref<3x64x64xbf16, #tpu.memory_space<vmem>>, vector<1x64x64xbf16>
    %47 = vector.shape_cast %46 : vector<1x64x64xbf16> to vector<64x64xbf16>
    %cst_28 = arith.constant dense<0.000000e+00> : vector<8x16x64xf32>
    %48 = tpu.matmul %45, %47, %cst_28 {dimension_numbers = #tpu.dot_dimension_numbers<[2], [0], [0, 1], [1], [0, 0, 0, 1, 1, 1], [], []>} : vector<8x16x64xbf16>, vector<64x64xbf16>, vector<8x16x64xf32> -> vector<8x16x64xf32>
    %49 = arith.addf %44, %48 : vector<8x16x64xf32>
    %c0_29 = arith.constant 0 : index
    %c0_30 = arith.constant 0 : index
    %50 = vector.load %arg5[%c0_29, %c0_30] : memref<1x64xf32, #tpu.memory_space<vmem>>, vector<1x64xf32>
    %51 = vector.shape_cast %50 : vector<1x64xf32> to vector<1x1x64xf32>
    %52 = vector.broadcast %51 : vector<1x1x64xf32> to vector<8x16x64xf32>
    %53 = arith.addf %49, %52 : vector<8x16x64xf32>
    %cst_31 = arith.constant 5.000000e-01 : f32
    %54 = vector.broadcast %cst_31 : f32 to vector<8x16x64xf32>
    %55 = arith.mulf %54, %53 : vector<8x16x64xf32>
    %cst_32 = arith.constant 0.707106769 : f32
    %56 = vector.broadcast %cst_32 : f32 to vector<8x16x64xf32>
    %57 = arith.mulf %53, %56 : vector<8x16x64xf32>
    %58 = math.erf %57 : vector<8x16x64xf32>
    %cst_33 = arith.constant 1.000000e+00 : f32
    %59 = vector.broadcast %cst_33 : f32 to vector<8x16x64xf32>
    %60 = arith.addf %59, %58 : vector<8x16x64xf32>
    %61 = arith.mulf %55, %60 : vector<8x16x64xf32>
    %cst_34 = arith.constant dense<0.000000e+00> : vector<8x64xf32>
    %62 = vector.multi_reduction <add>, %61, %cst_34 [1] : vector<8x16x64xf32> to vector<8x64xf32>
    %63 = arith.truncf %62 : vector<8x64xf32> to vector<8x64xbf16>
    %c0_35 = arith.constant 0 : index
    %c0_36 = arith.constant 0 : index
    %64 = vector.load %arg6[%c0_35, %c0_36] : memref<64x64xbf16, #tpu.memory_space<vmem>>, vector<64x64xbf16>
    %cst_37 = arith.constant dense<0.000000e+00> : vector<8x64xf32>
    %65 = tpu.matmul %63, %64, %cst_37 {dimension_numbers = #tpu.dot_dimension_numbers<[1], [0], [0], [1], [0, 0, 1, 1], [], []>} : vector<8x64xbf16>, vector<64x64xbf16>, vector<8x64xf32> -> vector<8x64xf32>
    %c0_38 = arith.constant 0 : index
    %c0_39 = arith.constant 0 : index
    %66 = vector.load %arg7[%c0_38, %c0_39] : memref<1x64xf32, #tpu.memory_space<vmem>>, vector<1x64xf32>
    %67 = vector.broadcast %66 : vector<1x64xf32> to vector<8x64xf32>
    %68 = arith.addf %65, %67 : vector<8x64xf32>
    %cst_40 = arith.constant 5.000000e-01 : f32
    %69 = vector.broadcast %cst_40 : f32 to vector<8x64xf32>
    %70 = arith.mulf %69, %68 : vector<8x64xf32>
    %cst_41 = arith.constant 0.707106769 : f32
    %71 = vector.broadcast %cst_41 : f32 to vector<8x64xf32>
    %72 = arith.mulf %68, %71 : vector<8x64xf32>
    %73 = math.erf %72 : vector<8x64xf32>
    %cst_42 = arith.constant 1.000000e+00 : f32
    %74 = vector.broadcast %cst_42 : f32 to vector<8x64xf32>
    %75 = arith.addf %74, %73 : vector<8x64xf32>
    %76 = arith.mulf %70, %75 : vector<8x64xf32>
    %77 = arith.truncf %76 : vector<8x64xf32> to vector<8x64xbf16>
    %c0_43 = arith.constant 0 : index
    %c0_44 = arith.constant 0 : index
    %78 = vector.load %arg8[%c0_43, %c0_44] : memref<64x128xbf16, #tpu.memory_space<vmem>>, vector<64x128xbf16>
    %cst_45 = arith.constant dense<0.000000e+00> : vector<8x128xf32>
    %79 = tpu.matmul %77, %78, %cst_45 {dimension_numbers = #tpu.dot_dimension_numbers<[1], [0], [0], [1], [0, 0, 1, 1], [], []>} : vector<8x64xbf16>, vector<64x128xbf16>, vector<8x128xf32> -> vector<8x128xf32>
    %c0_46 = arith.constant 0 : index
    %c0_47 = arith.constant 0 : index
    %80 = vector.load %arg9[%c0_46, %c0_47] : memref<1x128xf32, #tpu.memory_space<vmem>>, vector<1x128xf32>
    %81 = vector.broadcast %80 : vector<1x128xf32> to vector<8x128xf32>
    %82 = arith.addf %79, %81 : vector<8x128xf32>
    %c0_48 = arith.constant 0 : index
    %c0_49 = arith.constant 0 : index
    %83 = vector.load %arg10[%c0_48, %c0_49] : memref<8x128xf32, #tpu.memory_space<vmem>>, vector<8x128xf32>
    tpu.vector_store %arg10[%c0_48, %c0_49], %82 {strides = array<i32>} : memref<8x128xf32, #tpu.memory_space<vmem>>, vector<8x128xf32>,
    return
  }
  func.func @transform_0(%arg0: i32) -> (i32, i32, i32) {
    %c0_i32 = arith.constant 0 : i32
    %c0_i32_0 = arith.constant 0 : i32
    %c0_i32_1 = arith.constant 0 : i32
    return %arg0, %c0_i32, %c0_i32_0 : i32, i32, i32
  }
  func.func @transform_1(%arg0: i32) -> (i32, i32, i32) {
    %c0_i32 = arith.constant 0 : i32
    %c0_i32_0 = arith.constant 0 : i32
    %c0_i32_1 = arith.constant 0 : i32
    %c0_i32_2 = arith.constant 0 : i32
    return %c0_i32, %c0_i32_0, %c0_i32_1 : i32, i32, i32
  }
  func.func @transform_2(%arg0: i32) -> (i32, i32) {
    %c0_i32 = arith.constant 0 : i32
    %c0_i32_0 = arith.constant 0 : i32
    %c0_i32_1 = arith.constant 0 : i32
    return %c0_i32, %c0_i32_0 : i32, i32
  }
  func.func @transform_3(%arg0: i32) -> (i32, i32, i32) {
    %c0_i32 = arith.constant 0 : i32
    %c0_i32_0 = arith.constant 0 : i32
    %c0_i32_1 = arith.constant 0 : i32
    %c0_i32_2 = arith.constant 0 : i32
    return %c0_i32, %c0_i32_0, %c0_i32_1 : i32, i32, i32
  }
  func.func @transform_4(%arg0: i32) -> (i32, i32) {
    %c0_i32 = arith.constant 0 : i32
    %c0_i32_0 = arith.constant 0 : i32
    %c0_i32_1 = arith.constant 0 : i32
    return %c0_i32, %c0_i32_0 : i32, i32
  }
  func.func @transform_5(%arg0: i32) -> (i32, i32) {
    %c0_i32 = arith.constant 0 : i32
    %c0_i32_0 = arith.constant 0 : i32
    %c0_i32_1 = arith.constant 0 : i32
    return %c0_i32, %c0_i32_0 : i32, i32
  }
  func.func @transform_6(%arg0: i32) -> (i32, i32) {
    %c0_i32 = arith.constant 0 : i32
    %c0_i32_0 = arith.constant 0 : i32
    %c0_i32_1 = arith.constant 0 : i32
    return %c0_i32, %c0_i32_0 : i32, i32
  }
  func.func @transform_7(%arg0: i32) -> (i32, i32) {
    %c0_i32 = arith.constant 0 : i32
    %c0_i32_0 = arith.constant 0 : i32
    %c0_i32_1 = arith.constant 0 : i32
    return %c0_i32, %c0_i32_0 : i32, i32
  }
  func.func @transform_8(%arg0: i32) -> (i32, i32) {
    %c0_i32 = arith.constant 0 : i32
    %c0_i32_0 = arith.constant 0 : i32
    %c0_i32_1 = arith.constant 0 : i32
    return %c0_i32, %c0_i32_0 : i32, i32
  }
  func.func @transform_9(%arg0: i32) -> (i32, i32) {
    %c0_i32 = arith.constant 0 : i32
    %c0_i32_0 = arith.constant 0 : i32
    return %arg0, %c0_i32 : i32, i32
  }
}

</mosaic_0001>

<llo_original>
// kernel: tpu_custom_call.1
$region0: #{tpu_custom_call.1}
  #allocation0 [shape = 'u32[]', space=smem, size = 0x4, offset = 0x4, fixed_abs, tag = 'smem constant byte address 0x4 - core index']
  #allocation1 [shape = 'u32[144,128]{1,0:T(1,128)}', space=vmem, size = 0x12000, scoped, tag = 'internal scratch']
  %s0 = inlined_call_operand.vmem [shape: bf16[16,20,4], index: 0, kind: input, shape index: {}]
  %s1 = inlined_call_operand.vmem [shape: bf16[3,4,64], index: 1, kind: input, shape index: {}]
  %s2 = inlined_call_operand.vmem [shape: f32[1,64], index: 2, kind: input, shape index: {}]
  %s3 = inlined_call_operand.vmem [shape: bf16[3,64,64], index: 3, kind: input, shape index: {}]
  %s4 = inlined_call_operand.vmem [shape: f32[1,64], index: 4, kind: input, shape index: {}]
  %s5 = inlined_call_operand.vmem [shape: bf16[64,64], index: 5, kind: input, shape index: {}]
  %s6 = inlined_call_operand.vmem [shape: f32[1,64], index: 6, kind: input, shape index: {}]
  %s7 = inlined_call_operand.vmem [shape: bf16[64,128], index: 7, kind: input, shape index: {}]
  %s8 = inlined_call_operand.vmem [shape: f32[1,128], index: 8, kind: input, shape index: {}]
  %s9 = inlined_call_operand.hbm [shape: f32[16,128], index: 9, kind: output, shape index: {}]
  %s10 = sld [smem:[#allocation0]]
  $region69: #{tpu_custom_call.1} parent=0
    _
  %s12 = ssub.s32 1, %s10
  %s13 = scalar_select 0, %s12, %s10
  $region1: #{tpu_custom_call.1} parent=0
    #allocation2 [shape = 'u8[8192]{0}', space=vmem, size = 0x2000, scoped, tag = 'output window, operand 0']
    #allocation3 [shape = 's32[2]{0}', space=sflag, size = 0x8, scoped, tag = 'scoped memory for tpu_custom_call.1']
    %14 = vsyncpa [#allocation3], 0
    %s15 = scalar_lea.sflag [#allocation3], 1
    %16 = vsyncpa %s15, 0
    loop: start=0, step=1, limit=4
    $region2: #{tpu_custom_call.1} parent=1 // loop_pre_header
      _
    $region3: #{tpu_custom_call.1} parent=1 // loop_header
      %s18 = sphi 0, %s22
      %p19 = scmp.ge.s32.totalorder %s18, 4
      %s28 = sphi 0, %s30
      %s31 = sphi 0, %s28
      %s32 = sphi 0, %s31
      %s48 = sphi 0, %s32
      %s52 = sphi 0, %s52
      %s54 = sphi 0, %s52
      %s55 = sphi 0, %s54
      %s69 = sphi 0, %s55
      %s73 = sphi 0, %s73
      %s75 = sphi 0, %s73
      %s76 = sphi 0, %s75
      %s90 = sphi 0, %s76
      %s94 = sphi 0, %s94
      %s96 = sphi 0, %s94
      %s97 = sphi 0, %s96
      %s111 = sphi 0, %s97
      %s115 = sphi 0, %s115
      %s117 = sphi 0, %s115
      %s118 = sphi 0, %s117
      %s132 = sphi 0, %s118
      %s136 = sphi 0, %s136
      %s138 = sphi 0, %s136
      %s139 = sphi 0, %s138
      %s153 = sphi 0, %s139
      %s157 = sphi 0, %s157
      %s159 = sphi 0, %s157
      %s160 = sphi 0, %s159
      %s174 = sphi 0, %s160
      %s178 = sphi 0, %s178
      %s180 = sphi 0, %s178
      %s181 = sphi 0, %s180
      %s195 = sphi 0, %s181
      %s199 = sphi 0, %s199
      %s201 = sphi 0, %s199
      %s202 = sphi 0, %s201
      %s216 = sphi 0, %s202
      %s222 = sphi 0, %s224
      %s225 = sphi 0, %s222
      %s226 = sphi 0, %s225
      %s242 = sphi 0, %s226
    $region4: #{tpu_custom_call.1} parent=1 // loop_header_branch
      %21 = sbr.rel (%p19) target = $region8
    $region5: #{tpu_custom_call.1} parent=1 // loop_body
      %s23 = ssub.s32 %s18, 1
      %s24 = ssub.s32 %s18, 2
      %s25 = sadd.s32 %s18, 1
      %s26 = ssub.s32 %s18, %s25
      %p27 = scmp.eq.s32.totalorder %s26, 0
      %s29 = sadd.s32 %s28, 1
      %s30 = scalar_select %p27, %s28, %s29
      %p33 = pneg %p27
      %p34 = scmp.eq.s32.totalorder %s18, 1
      %p35 = por %p33, %p34
      %p36 = scmp.ne.s32.totalorder %s28, %s31
      %p37 = scmp.eq.s32.totalorder %s18, 0
      %p38 = por %p36, %p37
      %p39 = scmp.ne.s32.totalorder %s28, %s31
      %p40 = scmp.eq.s32.totalorder %s23, 1
      %p41 = por %p39, %p40
      %p42 = scmp.ne.s32.totalorder %s31, %s32
      %p43 = scmp.eq.s32.totalorder %s23, 0
      %p44 = por %p42, %p43
      %p45 = scmp.ne.s32.totalorder %s31, %s32
      %p46 = scmp.eq.s32.totalorder %s24, 1
      %p47 = por %p45, %p46
      %p49 = scmp.ne.s32.totalorder %s32, %s48
      %p50 = scmp.eq.s32.totalorder %s24, 0
      %p51 = por %p49, %p50
      %s53 = sadd.s32 %s52, 1
      %p56 = scmp.eq.s32.totalorder %s18, 1
      %p57 = scmp.ne.s32.totalorder %s52, %s54
      %p58 = scmp.eq.s32.totalorder %s18, 0
      %p59 = por %p57, %p58
      %p60 = scmp.ne.s32.totalorder %s52, %s54
      %p61 = scmp.eq.s32.totalorder %s23, 1
      %p62 = por %p60, %p61
      %p63 = scmp.ne.s32.totalorder %s54, %s55
      %p64 = scmp.eq.s32.totalorder %s23, 0
      %p65 = por %p63, %p64
      %p66 = scmp.ne.s32.totalorder %s54, %s55
      %p67 = scmp.eq.s32.totalorder %s24, 1
      %p68 = por %p66, %p67
      %p70 = scmp.ne.s32.totalorder %s55, %s69
      %p71 = scmp.eq.s32.totalorder %s24, 0
      %p72 = por %p70, %p71
      %s74 = sadd.s32 %s73, 1
      %p77 = scmp.eq.s32.totalorder %s18, 1
      %p78 = scmp.ne.s32.totalorder %s73, %s75
      %p79 = scmp.eq.s32.totalorder %s18, 0
      %p80 = por %p78, %p79
      %p81 = scmp.ne.s32.totalorder %s73, %s75
      %p82 = scmp.eq.s32.totalorder %s23, 1
      %p83 = por %p81, %p82
      %p84 = scmp.ne.s32.totalorder %s75, %s76
      %p85 = scmp.eq.s32.totalorder %s23, 0
      %p86 = por %p84, %p85
      %p87 = scmp.ne.s32.totalorder %s75, %s76
      %p88 = scmp.eq.s32.totalorder %s24, 1
      %p89 = por %p87, %p88
      %p91 = scmp.ne.s32.totalorder %s76, %s90
      %p92 = scmp.eq.s32.totalorder %s24, 0
      %p93 = por %p91, %p92
      %s95 = sadd.s32 %s94, 1
      %p98 = scmp.eq.s32.totalorder %s18, 1
      %p99 = scmp.ne.s32.totalorder %s94, %s96
      %p100 = scmp.eq.s32.totalorder %s18, 0
      %p101 = por %p99, %p100
      %p102 = scmp.ne.s32.totalorder %s94, %s96
      %p103 = scmp.eq.s32.totalorder %s23, 1
      %p104 = por %p102, %p103
      %p105 = scmp.ne.s32.totalorder %s96, %s97
      %p106 = scmp.eq.s32.totalorder %s23, 0
      %p107 = por %p105, %p106
      %p108 = scmp.ne.s32.totalorder %s96, %s97
      %p109 = scmp.eq.s32.totalorder %s24, 1
      %p110 = por %p108, %p109
      %p112 = scmp.ne.s32.totalorder %s97, %s111
      %p113 = scmp.eq.s32.totalorder %s24, 0
      %p114 = por %p112, %p113
      %s116 = sadd.s32 %s115, 1
      %p119 = scmp.eq.s32.totalorder %s18, 1
      %p120 = scmp.ne.s32.totalorder %s115, %s117
      %p121 = scmp.eq.s32.totalorder %s18, 0
      %p122 = por %p120, %p121
      %p123 = scmp.ne.s32.totalorder %s115, %s117
      %p124 = scmp.eq.s32.totalorder %s23, 1
      %p125 = por %p123, %p124
      %p126 = scmp.ne.s32.totalorder %s117, %s118
      %p127 = scmp.eq.s32.totalorder %s23, 0
      %p128 = por %p126, %p127
      %p129 = scmp.ne.s32.totalorder %s117, %s118
      %p130 = scmp.eq.s32.totalorder %s24, 1
      %p131 = por %p129, %p130
      %p133 = scmp.ne.s32.totalorder %s118, %s132
      %p134 = scmp.eq.s32.totalorder %s24, 0
      %p135 = por %p133, %p134
      %s137 = sadd.s32 %s136, 1
      %p140 = scmp.eq.s32.totalorder %s18, 1
      %p141 = scmp.ne.s32.totalorder %s136, %s138
      %p142 = scmp.eq.s32.totalorder %s18, 0
      %p143 = por %p141, %p142
      %p144 = scmp.ne.s32.totalorder %s136, %s138
      %p145 = scmp.eq.s32.totalorder %s23, 1
      %p146 = por %p144, %p145
      %p147 = scmp.ne.s32.totalorder %s138, %s139
      %p148 = scmp.eq.s32.totalorder %s23, 0
      %p149 = por %p147, %p148
      %p150 = scmp.ne.s32.totalorder %s138, %s139
      %p151 = scmp.eq.s32.totalorder %s24, 1
      %p152 = por %p150, %p151
      %p154 = scmp.ne.s32.totalorder %s139, %s153
      %p155 = scmp.eq.s32.totalorder %s24, 0
      %p156 = por %p154, %p155
      %s158 = sadd.s32 %s157, 1
      %p161 = scmp.eq.s32.totalorder %s18, 1
      %p162 = scmp.ne.s32.totalorder %s157, %s159
      %p163 = scmp.eq.s32.totalorder %s18, 0
      %p164 = por %p162, %p163
      %p165 = scmp.ne.s32.totalorder %s157, %s159
      %p166 = scmp.eq.s32.totalorder %s23, 1
      %p167 = por %p165, %p166
      %p168 = scmp.ne.s32.totalorder %s159, %s160
      %p169 = scmp.eq.s32.totalorder %s23, 0
      %p170 = por %p168, %p169
      %p171 = scmp.ne.s32.totalorder %s159, %s160
      %p172 = scmp.eq.s32.totalorder %s24, 1
      %p173 = por %p171, %p172
      %p175 = scmp.ne.s32.totalorder %s160, %s174
      %p176 = scmp.eq.s32.totalorder %s24, 0
      %p177 = por %p175, %p176
      %s179 = sadd.s32 %s178, 1
      %p182 = scmp.eq.s32.totalorder %s18, 1
      %p183 = scmp.ne.s32.totalorder %s178, %s180
      %p184 = scmp.eq.s32.totalorder %s18, 0
      %p185 = por %p183, %p184
      %p186 = scmp.ne.s32.totalorder %s178, %s180
      %p187 = scmp.eq.s32.totalorder %s23, 1
      %p188 = por %p186, %p187
      %p189 = scmp.ne.s32.totalorder %s180, %s181
      %p190 = scmp.eq.s32.totalorder %s23, 0
      %p191 = por %p189, %p190
      %p192 = scmp.ne.s32.totalorder %s180, %s181
      %p193 = scmp.eq.s32.totalorder %s24, 1
      %p194 = por %p192, %p193
      %p196 = scmp.ne.s32.totalorder %s181, %s195
      %p197 = scmp.eq.s32.totalorder %s24, 0
      %p198 = por %p196, %p197
      %s200 = sadd.s32 %s199, 1
      %p203 = scmp.eq.s32.totalorder %s18, 1
      %p204 = scmp.ne.s32.totalorder %s199, %s201
      %p205 = scmp.eq.s32.totalorder %s18, 0
      %p206 = por %p204, %p205
      %p207 = scmp.ne.s32.totalorder %s199, %s201
      %p208 = scmp.eq.s32.totalorder %s23, 1
      %p209 = por %p207, %p208
      %p210 = scmp.ne.s32.totalorder %s201, %s202
      %p211 = scmp.eq.s32.totalorder %s23, 0
      %p212 = por %p210, %p211
      %p213 = scmp.ne.s32.totalorder %s201, %s202
      %p214 = scmp.eq.s32.totalorder %s24, 1
      %p215 = por %p213, %p214
      %p217 = scmp.ne.s32.totalorder %s202, %s216
      %p218 = scmp.eq.s32.totalorder %s24, 0
      %p219 = por %p217, %p218
      %s220 = ssub.s32 %s18, %s25
      %p221 = scmp.eq.s32.totalorder %s220, 0
      %s223 = sadd.s32 %s222, 1
      %s224 = scalar_select %p221, %s222, %s223
      %p227 = pneg %p221
      %p228 = scmp.eq.s32.totalorder %s18, 1
      %p229 = por %p227, %p228
      %p230 = scmp.ne.s32.totalorder %s222, %s225
      %p231 = scmp.eq.s32.totalorder %s18, 0
      %p232 = por %p230, %p231
      %p233 = scmp.ne.s32.totalorder %s222, %s225
      %p234 = scmp.eq.s32.totalorder %s23, 1
      %p235 = por %p233, %p234
      %p236 = scmp.ne.s32.totalorder %s225, %s226
      %p237 = scmp.eq.s32.totalorder %s23, 0
      %p238 = por %p236, %p237
      %p239 = scmp.ne.s32.totalorder %s225, %s226
      %p240 = scmp.eq.s32.totalorder %s24, 1
      %p241 = por %p239, %p240
      %p243 = scmp.ne.s32.totalorder %s226, %s242
      %p244 = scmp.eq.s32.totalorder %s24, 0
      %p245 = por %p243, %p244
      %p246 = scmp.le.s32.totalorder 1, %s18
      %p247 = scmp.lt.s32.totalorder %s18, 3
      %p248 = pnand %p246, %p247
      %p249 = pneg %p248
      // Predicated region
      $region9: #{tpu_custom_call.1} parent=5 // pred_check
        _
      $region10: #{tpu_custom_call.1} parent=5 // pred_check_branch
        %251 = sbr.rel (%p248) target = $region12
      $region11: #{tpu_custom_call.1} parent=5 // pred_region
        %s252 = ssub.s32 %s18, 1
        // Predicated region
        $region13: #{tpu_custom_call.1} parent=11 // pred_check
          %p253 = pneg %p65
        $region14: #{tpu_custom_call.1} parent=11 // pred_check_branch
          %255 = sbr.rel (%p253) target = $region16
        $region15: #{tpu_custom_call.1} parent=11 // pred_region
          _
        $region16: #{tpu_custom_call.1} parent=11 // pred_fallthru
          _
        // Predicated region
        $region17: #{tpu_custom_call.1} parent=11 // pred_check
          %p256 = pneg %p86
        $region18: #{tpu_custom_call.1} parent=11 // pred_check_branch
          %258 = sbr.rel (%p256) target = $region20
        $region19: #{tpu_custom_call.1} parent=11 // pred_region
          _
        $region20: #{tpu_custom_call.1} parent=11 // pred_fallthru
          _
        // Predicated region
        $region21: #{tpu_custom_call.1} parent=11 // pred_check
          %p259 = pneg %p107
        $region22: #{tpu_custom_call.1} parent=11 // pred_check_branch
          %261 = sbr.rel (%p259) target = $region24
        $region23: #{tpu_custom_call.1} parent=11 // pred_region
          _
        $region24: #{tpu_custom_call.1} parent=11 // pred_fallthru
          _
        // Predicated region
        $region25: #{tpu_custom_call.1} parent=11 // pred_check
          %p262 = pneg %p128
        $region26: #{tpu_custom_call.1} parent=11 // pred_check_branch
          %264 = sbr.rel (%p262) target = $region28
        $region27: #{tpu_custom_call.1} parent=11 // pred_region
          _
        $region28: #{tpu_custom_call.1} parent=11 // pred_fallthru
          _
        // Predicated region
        $region29: #{tpu_custom_call.1} parent=11 // pred_check
          %p265 = pneg %p149
        $region30: #{tpu_custom_call.1} parent=11 // pred_check_branch
          %267 = sbr.rel (%p265) target = $region32
        $region31: #{tpu_custom_call.1} parent=11 // pred_region
          _
        $region32: #{tpu_custom_call.1} parent=11 // pred_fallthru
          _
        // Predicated region
        $region33: #{tpu_custom_call.1} parent=11 // pred_check
          %p268 = pneg %p170
        $region34: #{tpu_custom_call.1} parent=11 // pred_check_branch
          %270 = sbr.rel (%p268) target = $region36
        $region35: #{tpu_custom_call.1} parent=11 // pred_region
          _
        $region36: #{tpu_custom_call.1} parent=11 // pred_fallthru
          _
        // Predicated region
        $region37: #{tpu_custom_call.1} parent=11 // pred_check
          %p271 = pneg %p191
        $region38: #{tpu_custom_call.1} parent=11 // pred_check_branch
          %273 = sbr.rel (%p271) target = $region40
        $region39: #{tpu_custom_call.1} parent=11 // pred_region
          _
        $region40: #{tpu_custom_call.1} parent=11 // pred_fallthru
          _
        // Predicated region
        $region41: #{tpu_custom_call.1} parent=11 // pred_check
          %p274 = pneg %p212
        $region42: #{tpu_custom_call.1} parent=11 // pred_check_branch
          %276 = sbr.rel (%p274) target = $region44
        $region43: #{tpu_custom_call.1} parent=11 // pred_region
          _
        $region44: #{tpu_custom_call.1} parent=11 // pred_fallthru
          _
      $region12: #{tpu_custom_call.1} parent=5 // pred_fallthru
        _
      %p277 = scmp.lt.s32.totalorder %s18, 2
      // Predicated region
      $region45: #{tpu_custom_call.1} parent=5 // pred_check
        %p278 = pneg %p277
      $region46: #{tpu_custom_call.1} parent=5 // pred_check_branch
        %280 = sbr.rel (%p278) target = $region48
      $region47: #{tpu_custom_call.1} parent=5 // pred_region
        // Predicated region
        $region49: #{tpu_custom_call.1} parent=47 // pred_check
          %p281 = pneg %p38
        $region50: #{tpu_custom_call.1} parent=47 // pred_check_branch
          %283 = sbr.rel (%p281) target = $region52
        $region51: #{tpu_custom_call.1} parent=47 // pred_region
          %s284 = smul.u32 8, %s18
          %p285 = scmp.lt.s32.totalorder %s284, 15
          %s286 = scalar_select %p285, %s284, 15
          %s287 = smul.addr %s286, 3
          %s288 = smul.addr %s287, 4
          %s289 = scalar_lea.vmem %s0, %s288
          %s290 = smul.u32 8, %s18
        $region52: #{tpu_custom_call.1} parent=47 // pred_fallthru
          _
      $region48: #{tpu_custom_call.1} parent=5 // pred_fallthru
        _
      %p291 = scmp.le.s32.totalorder 1, %s18
      %p292 = scmp.lt.s32.totalorder %s18, 3
      %p293 = pnand %p291, %p292
      %p294 = pneg %p293
      // Predicated region
      $region53: #{tpu_custom_call.1} parent=5 // pred_check
        _
      $region54: #{tpu_custom_call.1} parent=5 // pred_check_branch
        %296 = sbr.rel (%p293) target = $region56
      $region55: #{tpu_custom_call.1} parent=5 // pred_region
        %s297 = ssub.s32 %s18, 1
        %s298 = smul.u32 8, %s23
        %p299 = scmp.lt.s32.totalorder %s298, 15
        %s300 = scalar_select %p299, %s298, 15
        %s301 = smul.addr %s300, 3
        %s302 = smul.addr %s301, 4
        %s303 = scalar_lea.vmem %s0, %s302
        %p304 = pneg %p44
        %p305 = pneg %p41
        %p306 = pneg %p65
        %p307 = pneg %p62
        %p308 = pneg %p86
        %p309 = pneg %p83
        %p310 = pneg %p107
        %p311 = pneg %p104
        %p312 = pneg %p128
        %p313 = pneg %p125
        %p314 = pneg %p149
        %p315 = pneg %p146
        %p316 = pneg %p170
        %p317 = pneg %p167
        %p318 = pneg %p191
        %p319 = pneg %p188
        %p320 = pneg %p212
        %p321 = pneg %p209
        %p322 = pneg %p238
        %p323 = pneg %p235
        %s324 = sand.u32 %s225, 1
        %s325 = scalar_lea.sflag [#allocation3], %s324
        %s326 = sand.u32 %s225, 1
        %s327 = smul.addr %s326, 8
        %s328 = scalar_lea.vmem [#allocation2], %s327
        %s329 = smul.u32 8, %s23
        %p330 = scmp.lt.s32.totalorder %s329, 15
        %s331 = scalar_select %p330, %s329, 15
        %s332 = smul.addr %s331, 3
        %s333 = smul.addr %s332, 4
        %s334 = scalar_lea.vmem %s0, %s333
        %s335 = smul.u32 8, %s23
        %v337 = vld [vmem:[%s334] sm:$0xf]
        %v338 = vld [vmem:[%s334 + $0x4] sm:$0xf]
        %v339 = vld [vmem:[%s334 + $0x8] sm:$0x3]
        %v340 = vld [vmem:[%s334 + $0xc] sm:$0xf]
        %v341 = vld [vmem:[%s334 + $0x10] sm:$0xf]
        %v342 = vld [vmem:[%s334 + $0x14] sm:$0x3]
        %v343 = vld [vmem:[%s334 + $0x18] sm:$0xf]
        %v344 = vld [vmem:[%s334 + $0x1c] sm:$0xf]
        %v345 = vld [vmem:[%s334 + $0x20] sm:$0x3]
        %v346 = vld [vmem:[%s334 + $0x24] sm:$0xf]
        %v347 = vld [vmem:[%s334 + $0x28] sm:$0xf]
        %v348 = vld [vmem:[%s334 + $0x2c] sm:$0x3]
        %v349 = vld [vmem:[%s334 + $0x30] sm:$0xf]
        %v350 = vld [vmem:[%s334 + $0x34] sm:$0xf]
        %v351 = vld [vmem:[%s334 + $0x38] sm:$0x3]
        %v352 = vld [vmem:[%s334 + $0x3c] sm:$0xf]
        %v353 = vld [vmem:[%s334 + $0x40] sm:$0xf]
        %v354 = vld [vmem:[%s334 + $0x44] sm:$0x3]
        %v355 = vld [vmem:[%s334 + $0x48] sm:$0xf]
        %v356 = vld [vmem:[%s334 + $0x4c] sm:$0xf]
        %v357 = vld [vmem:[%s334 + $0x50] sm:$0x3]
        %v358 = vld [vmem:[%s334 + $0x54] sm:$0xf]
        %v359 = vld [vmem:[%s334 + $0x58] sm:$0xf]
        %v360 = vld [vmem:[%s334 + $0x5c] sm:$0x3]
        %v361 = vld [vmem:[%s1] sm:$0x3]
        %s362 = scalar_lea.vmem %s1, 2
        %v363 = vld [vmem:[%s362] sm:$0x3]
        %v389 = vunpack.c.l.s4 1966171168
        %v390 = vunpack.c.0.s8 %v389
        %v391 = vlaneseq
        %v392 = vshrl.u32 %v391, 7
        %v393 = vsub.s32 %v390, %v392
        %v394 = vrot.slane %v337, %v393
        %v395 = vcombine.high %v394, %v394
        %v397 = vunpack.c.l.s4 1966171168
        %v398 = vunpack.c.0.s8 %v397
        %v399 = vlaneseq
        %v400 = vshrl.u32 %v399, 7
        %v401 = vsub.s32 %v398, %v400
        %v402 = vrot.slane %v394, %v401
        %v404 = vunpack.c.l.s4 1966171168
        %v405 = vunpack.c.0.s8 %v404
        %v406 = vlaneseq
        %v407 = vshrl.u32 %v406, 7
        %v408 = vsub.s32 %v405, %v407
        %v409 = vrot.slane %v395, %v408
        %v410 = vcombine.high %v402, %v402
        %v411 = vcombine.high %v409, %v409
        %v413 = vunpack.c.l.s4 1966171168
        %v414 = vunpack.c.0.s8 %v413
        %v415 = vlaneseq
        %v416 = vshrl.u32 %v415, 7
        %v417 = vsub.s32 %v414, %v416
        %v418 = vrot.slane %v338, %v417
        %v419 = vcombine.high %v418, %v418
        %v421 = vunpack.c.l.s4 1966171168
        %v422 = vunpack.c.0.s8 %v421
        %v423 = vlaneseq
        %v424 = vshrl.u32 %v423, 7
        %v425 = vsub.s32 %v422, %v424
        %v426 = vrot.slane %v418, %v425
        %v428 = vunpack.c.l.s4 1966171168
        %v429 = vunpack.c.0.s8 %v428
        %v430 = vlaneseq
        %v431 = vshrl.u32 %v430, 7
        %v432 = vsub.s32 %v429, %v431
        %v433 = vrot.slane %v419, %v432
        %v434 = vcombine.high %v426, %v426
        %v435 = vcombine.high %v433, %v433
        %v437 = vunpack.c.l.s4 1966171168
        %v438 = vunpack.c.0.s8 %v437
        %v439 = vlaneseq
        %v440 = vshrl.u32 %v439, 7
        %v441 = vsub.s32 %v438, %v440
        %v442 = vrot.slane %v339, %v441
        %v443 = vcombine.high %v442, %v442
        %v445 = vunpack.c.l.s4 1966171168
        %v446 = vunpack.c.0.s8 %v445
        %v447 = vlaneseq
        %v448 = vshrl.u32 %v447, 7
        %v449 = vsub.s32 %v446, %v448
        %v450 = vrot.slane %v442, %v449
        %v452 = vunpack.c.l.s4 1966171168
        %v453 = vunpack.c.0.s8 %v452
        %v454 = vlaneseq
        %v455 = vshrl.u32 %v454, 7
        %v456 = vsub.s32 %v453, %v455
        %v457 = vrot.slane %v443, %v456
        %v459 = vunpack.c.l.s4 1966171168
        %v460 = vunpack.c.0.s8 %v459
        %v461 = vlaneseq
        %v462 = vshrl.u32 %v461, 7
        %v463 = vsub.s32 %v460, %v462
        %v464 = vrot.slane %v340, %v463
        %v465 = vcombine.high %v464, %v464
        %v467 = vunpack.c.l.s4 1966171168
        %v468 = vunpack.c.0.s8 %v467
        %v469 = vlaneseq
        %v470 = vshrl.u32 %v469, 7
        %v471 = vsub.s32 %v468, %v470
        %v472 = vrot.slane %v464, %v471
        %v474 = vunpack.c.l.s4 1966171168
        %v475 = vunpack.c.0.s8 %v474
        %v476 = vlaneseq
        %v477 = vshrl.u32 %v476, 7
        %v478 = vsub.s32 %v475, %v477
        %v479 = vrot.slane %v465, %v478
        %v480 = vcombine.high %v472, %v472
        %v481 = vcombine.high %v479, %v479
        %v483 = vunpack.c.l.s4 1966171168
        %v484 = vunpack.c.0.s8 %v483
        %v485 = vlaneseq
        %v486 = vshrl.u32 %v485, 7
        %v487 = vsub.s32 %v484, %v486
        %v488 = vrot.slane %v341, %v487
        %v489 = vcombine.high %v488, %v488
        %v491 = vunpack.c.l.s4 1966171168
        %v492 = vunpack.c.0.s8 %v491
        %v493 = vlaneseq
        %v494 = vshrl.u32 %v493, 7
        %v495 = vsub.s32 %v492, %v494
        %v496 = vrot.slane %v488, %v495
        %v498 = vunpack.c.l.s4 1966171168
        %v499 = vunpack.c.0.s8 %v498
        %v500 = vlaneseq
        %v501 = vshrl.u32 %v500, 7
        %v502 = vsub.s32 %v499, %v501
        %v503 = vrot.slane %v489, %v502
        %v504 = vcombine.high %v496, %v496
        %v505 = vcombine.high %v503, %v503
        %v507 = vunpack.c.l.s4 1966171168
        %v508 = vunpack.c.0.s8 %v507
        %v509 = vlaneseq
        %v510 = vshrl.u32 %v509, 7
        %v511 = vsub.s32 %v508, %v510
        %v512 = vrot.slane %v342, %v511
        %v513 = vcombine.high %v512, %v512
        %v515 = vunpack.c.l.s4 1966171168
        %v516 = vunpack.c.0.s8 %v515
        %v517 = vlaneseq
        %v518 = vshrl.u32 %v517, 7
        %v519 = vsub.s32 %v516, %v518
        %v520 = vrot.slane %v512, %v519
        %v522 = vunpack.c.l.s4 1966171168
        %v523 = vunpack.c.0.s8 %v522
        %v524 = vlaneseq
        %v525 = vshrl.u32 %v524, 7
        %v526 = vsub.s32 %v523, %v525
        %v527 = vrot.slane %v513, %v526
        %v529 = vunpack.c.l.s4 1966171168
        %v530 = vunpack.c.0.s8 %v529
        %v531 = vlaneseq
        %v532 = vshrl.u32 %v531, 7
        %v533 = vsub.s32 %v530, %v532
        %v534 = vrot.slane %v343, %v533
        %v535 = vcombine.high %v534, %v534
        %v537 = vunpack.c.l.s4 1966171168
        %v538 = vunpack.c.0.s8 %v537
        %v539 = vlaneseq
        %v540 = vshrl.u32 %v539, 7
        %v541 = vsub.s32 %v538, %v540
        %v542 = vrot.slane %v534, %v541
        %v544 = vunpack.c.l.s4 1966171168
        %v545 = vunpack.c.0.s8 %v544
        %v546 = vlaneseq
        %v547 = vshrl.u32 %v546, 7
        %v548 = vsub.s32 %v545, %v547
        %v549 = vrot.slane %v535, %v548
        %v550 = vcombine.high %v542, %v542
        %v551 = vcombine.high %v549, %v549
        %v553 = vunpack.c.l.s4 1966171168
        %v554 = vunpack.c.0.s8 %v553
        %v555 = vlaneseq
        %v556 = vshrl.u32 %v555, 7
        %v557 = vsub.s32 %v554, %v556
        %v558 = vrot.slane %v344, %v557
        %v559 = vcombine.high %v558, %v558
        %v561 = vunpack.c.l.s4 1966171168
        %v562 = vunpack.c.0.s8 %v561
        %v563 = vlaneseq
        %v564 = vshrl.u32 %v563, 7
        %v565 = vsub.s32 %v562, %v564
        %v566 = vrot.slane %v558, %v565
        %v568 = vunpack.c.l.s4 1966171168
        %v569 = vunpack.c.0.s8 %v568
        %v570 = vlaneseq
        %v571 = vshrl.u32 %v570, 7
        %v572 = vsub.s32 %v569, %v571
        %v573 = vrot.slane %v559, %v572
        %v574 = vcombine.high %v566, %v566
        %v575 = vcombine.high %v573, %v573
        %v577 = vunpack.c.l.s4 1966171168
        %v578 = vunpack.c.0.s8 %v577
        %v579 = vlaneseq
        %v580 = vshrl.u32 %v579, 7
        %v581 = vsub.s32 %v578, %v580
        %v582 = vrot.slane %v345, %v581
        %v583 = vcombine.high %v582, %v582
        %v585 = vunpack.c.l.s4 1966171168
        %v586 = vunpack.c.0.s8 %v585
        %v587 = vlaneseq
        %v588 = vshrl.u32 %v587, 7
        %v589 = vsub.s32 %v586, %v588
        %v590 = vrot.slane %v582, %v589
        %v592 = vunpack.c.l.s4 1966171168
        %v593 = vunpack.c.0.s8 %v592
        %v594 = vlaneseq
        %v595 = vshrl.u32 %v594, 7
        %v596 = vsub.s32 %v593, %v595
        %v597 = vrot.slane %v583, %v596
        %v599 = vunpack.c.l.s4 1966171168
        %v600 = vunpack.c.0.s8 %v599
        %v601 = vlaneseq
        %v602 = vshrl.u32 %v601, 7
        %v603 = vsub.s32 %v600, %v602
        %v604 = vrot.slane %v346, %v603
        %v605 = vcombine.high %v604, %v604
        %v607 = vunpack.c.l.s4 1966171168
        %v608 = vunpack.c.0.s8 %v607
        %v609 = vlaneseq
        %v610 = vshrl.u32 %v609, 7
        %v611 = vsub.s32 %v608, %v610
        %v612 = vrot.slane %v604, %v611
        %v614 = vunpack.c.l.s4 1966171168
        %v615 = vunpack.c.0.s8 %v614
        %v616 = vlaneseq
        %v617 = vshrl.u32 %v616, 7
        %v618 = vsub.s32 %v615, %v617
        %v619 = vrot.slane %v605, %v618
        %v620 = vcombine.high %v612, %v612
        %v621 = vcombine.high %v619, %v619
        %v623 = vunpack.c.l.s4 1966171168
        %v624 = vunpack.c.0.s8 %v623
        %v625 = vlaneseq
        %v626 = vshrl.u32 %v625, 7
        %v627 = vsub.s32 %v624, %v626
        %v628 = vrot.slane %v347, %v627
        %v629 = vcombine.high %v628, %v628
        %v631 = vunpack.c.l.s4 1966171168
        %v632 = vunpack.c.0.s8 %v631
        %v633 = vlaneseq
        %v634 = vshrl.u32 %v633, 7
        %v635 = vsub.s32 %v632, %v634
        %v636 = vrot.slane %v628, %v635
        %v638 = vunpack.c.l.s4 1966171168
        %v639 = vunpack.c.0.s8 %v638
        %v640 = vlaneseq
        %v641 = vshrl.u32 %v640, 7
        %v642 = vsub.s32 %v639, %v641
        %v643 = vrot.slane %v629, %v642
        %v644 = vcombine.high %v636, %v636
        %v645 = vcombine.high %v643, %v643
        %v647 = vunpack.c.l.s4 1966171168
        %v648 = vunpack.c.0.s8 %v647
        %v649 = vlaneseq
        %v650 = vshrl.u32 %v649, 7
        %v651 = vsub.s32 %v648, %v650
        %v652 = vrot.slane %v348, %v651
        %v653 = vcombine.high %v652, %v652
        %v655 = vunpack.c.l.s4 1966171168
        %v656 = vunpack.c.0.s8 %v655
        %v657 = vlaneseq
        %v658 = vshrl.u32 %v657, 7
        %v659 = vsub.s32 %v656, %v658
        %v660 = vrot.slane %v652, %v659
        %v662 = vunpack.c.l.s4 1966171168
        %v663 = vunpack.c.0.s8 %v662
        %v664 = vlaneseq
        %v665 = vshrl.u32 %v664, 7
        %v666 = vsub.s32 %v663, %v665
        %v667 = vrot.slane %v653, %v666
        %v669 = vunpack.c.l.s4 1966171168
        %v670 = vunpack.c.0.s8 %v669
        %v671 = vlaneseq
        %v672 = vshrl.u32 %v671, 7
        %v673 = vsub.s32 %v670, %v672
        %v674 = vrot.slane %v349, %v673
        %v675 = vcombine.high %v674, %v674
        %v677 = vunpack.c.l.s4 1966171168
        %v678 = vunpack.c.0.s8 %v677
        %v679 = vlaneseq
        %v680 = vshrl.u32 %v679, 7
        %v681 = vsub.s32 %v678, %v680
        %v682 = vrot.slane %v674, %v681
        %v684 = vunpack.c.l.s4 1966171168
        %v685 = vunpack.c.0.s8 %v684
        %v686 = vlaneseq
        %v687 = vshrl.u32 %v686, 7
        %v688 = vsub.s32 %v685, %v687
        %v689 = vrot.slane %v675, %v688
        %v690 = vcombine.high %v682, %v682
        %v691 = vcombine.high %v689, %v689
        %v693 = vunpack.c.l.s4 1966171168
        %v694 = vunpack.c.0.s8 %v693
        %v695 = vlaneseq
        %v696 = vshrl.u32 %v695, 7
        %v697 = vsub.s32 %v694, %v696
        %v698 = vrot.slane %v350, %v697
        %v699 = vcombine.high %v698, %v698
        %v701 = vunpack.c.l.s4 1966171168
        %v702 = vunpack.c.0.s8 %v701
        %v703 = vlaneseq
        %v704 = vshrl.u32 %v703, 7
        %v705 = vsub.s32 %v702, %v704
        %v706 = vrot.slane %v698, %v705
        %v708 = vunpack.c.l.s4 1966171168
        %v709 = vunpack.c.0.s8 %v708
        %v710 = vlaneseq
        %v711 = vshrl.u32 %v710, 7
        %v712 = vsub.s32 %v709, %v711
        %v713 = vrot.slane %v699, %v712
        %v714 = vcombine.high %v706, %v706
        %v715 = vcombine.high %v713, %v713
        %v717 = vunpack.c.l.s4 1966171168
        %v718 = vunpack.c.0.s8 %v717
        %v719 = vlaneseq
        %v720 = vshrl.u32 %v719, 7
        %v721 = vsub.s32 %v718, %v720
        %v722 = vrot.slane %v351, %v721
        %v723 = vcombine.high %v722, %v722
        %v725 = vunpack.c.l.s4 1966171168
        %v726 = vunpack.c.0.s8 %v725
        %v727 = vlaneseq
        %v728 = vshrl.u32 %v727, 7
        %v729 = vsub.s32 %v726, %v728
        %v730 = vrot.slane %v722, %v729
        %v732 = vunpack.c.l.s4 1966171168
        %v733 = vunpack.c.0.s8 %v732
        %v734 = vlaneseq
        %v735 = vshrl.u32 %v734, 7
        %v736 = vsub.s32 %v733, %v735
        %v737 = vrot.slane %v723, %v736
        %v739 = vunpack.c.l.s4 1966171168
        %v740 = vunpack.c.0.s8 %v739
        %v741 = vlaneseq
        %v742 = vshrl.u32 %v741, 7
        %v743 = vsub.s32 %v740, %v742
        %v744 = vrot.slane %v352, %v743
        %v745 = vcombine.high %v744, %v744
        %v747 = vunpack.c.l.s4 1966171168
        %v748 = vunpack.c.0.s8 %v747
        %v749 = vlaneseq
        %v750 = vshrl.u32 %v749, 7
        %v751 = vsub.s32 %v748, %v750
        %v752 = vrot.slane %v744, %v751
        %v754 = vunpack.c.l.s4 1966171168
        %v755 = vunpack.c.0.s8 %v754
        %v756 = vlaneseq
        %v757 = vshrl.u32 %v756, 7
        %v758 = vsub.s32 %v755, %v757
        %v759 = vrot.slane %v745, %v758
        %v760 = vcombine.high %v752, %v752
        %v761 = vcombine.high %v759, %v759
        %v763 = vunpack.c.l.s4 1966171168
        %v764 = vunpack.c.0.s8 %v763
        %v765 = vlaneseq
        %v766 = vshrl.u32 %v765, 7
        %v767 = vsub.s32 %v764, %v766
        %v768 = vrot.slane %v353, %v767
        %v769 = vcombine.high %v768, %v768
        %v771 = vunpack.c.l.s4 1966171168
        %v772 = vunpack.c.0.s8 %v771
        %v773 = vlaneseq
        %v774 = vshrl.u32 %v773, 7
        %v775 = vsub.s32 %v772, %v774
        %v776 = vrot.slane %v768, %v775
        %v778 = vunpack.c.l.s4 1966171168
        %v779 = vunpack.c.0.s8 %v778
        %v780 = vlaneseq
        %v781 = vshrl.u32 %v780, 7
        %v782 = vsub.s32 %v779, %v781
        %v783 = vrot.slane %v769, %v782
        %v784 = vcombine.high %v776, %v776
        %v785 = vcombine.high %v783, %v783
        %v787 = vunpack.c.l.s4 1966171168
        %v788 = vunpack.c.0.s8 %v787
        %v789 = vlaneseq
        %v790 = vshrl.u32 %v789, 7
        %v791 = vsub.s32 %v788, %v790
        %v792 = vrot.slane %v354, %v791
        %v793 = vcombine.high %v792, %v792
        %v795 = vunpack.c.l.s4 1966171168
        %v796 = vunpack.c.0.s8 %v795
        %v797 = vlaneseq
        %v798 = vshrl.u32 %v797, 7
        %v799 = vsub.s32 %v796, %v798
        %v800 = vrot.slane %v792, %v799
        %v802 = vunpack.c.l.s4 1966171168
        %v803 = vunpack.c.0.s8 %v802
        %v804 = vlaneseq
        %v805 = vshrl.u32 %v804, 7
        %v806 = vsub.s32 %v803, %v805
        %v807 = vrot.slane %v793, %v806
        %v809 = vunpack.c.l.s4 1966171168
        %v810 = vunpack.c.0.s8 %v809
        %v811 = vlaneseq
        %v812 = vshrl.u32 %v811, 7
        %v813 = vsub.s32 %v810, %v812
        %v814 = vrot.slane %v355, %v813
        %v815 = vcombine.high %v814, %v814
        %v817 = vunpack.c.l.s4 1966171168
        %v818 = vunpack.c.0.s8 %v817
        %v819 = vlaneseq
        %v820 = vshrl.u32 %v819, 7
        %v821 = vsub.s32 %v818, %v820
        %v822 = vrot.slane %v814, %v821
        %v824 = vunpack.c.l.s4 1966171168
        %v825 = vunpack.c.0.s8 %v824
        %v826 = vlaneseq
        %v827 = vshrl.u32 %v826, 7
        %v828 = vsub.s32 %v825, %v827
        %v829 = vrot.slane %v815, %v828
        %v830 = vcombine.high %v822, %v822
        %v831 = vcombine.high %v829, %v829
        %v833 = vunpack.c.l.s4 1966171168
        %v834 = vunpack.c.0.s8 %v833
        %v835 = vlaneseq
        %v836 = vshrl.u32 %v835, 7
        %v837 = vsub.s32 %v834, %v836
        %v838 = vrot.slane %v356, %v837
        %v839 = vcombine.high %v838, %v838
        %v841 = vunpack.c.l.s4 1966171168
        %v842 = vunpack.c.0.s8 %v841
        %v843 = vlaneseq
        %v844 = vshrl.u32 %v843, 7
        %v845 = vsub.s32 %v842, %v844
        %v846 = vrot.slane %v838, %v845
        %v848 = vunpack.c.l.s4 1966171168
        %v849 = vunpack.c.0.s8 %v848
        %v850 = vlaneseq
        %v851 = vshrl.u32 %v850, 7
        %v852 = vsub.s32 %v849, %v851
        %v853 = vrot.slane %v839, %v852
        %v854 = vcombine.high %v846, %v846
        %v855 = vcombine.high %v853, %v853
        %v857 = vunpack.c.l.s4 1966171168
        %v858 = vunpack.c.0.s8 %v857
        %v859 = vlaneseq
        %v860 = vshrl.u32 %v859, 7
        %v861 = vsub.s32 %v858, %v860
        %v862 = vrot.slane %v357, %v861
        %v863 = vcombine.high %v862, %v862
        %v865 = vunpack.c.l.s4 1966171168
        %v866 = vunpack.c.0.s8 %v865
        %v867 = vlaneseq
        %v868 = vshrl.u32 %v867, 7
        %v869 = vsub.s32 %v866, %v868
        %v870 = vrot.slane %v862, %v869
        %v872 = vunpack.c.l.s4 1966171168
        %v873 = vunpack.c.0.s8 %v872
        %v874 = vlaneseq
        %v875 = vshrl.u32 %v874, 7
        %v876 = vsub.s32 %v873, %v875
        %v877 = vrot.slane %v863, %v876
        %v879 = vunpack.c.l.s4 1966171168
        %v880 = vunpack.c.0.s8 %v879
        %v881 = vlaneseq
        %v882 = vshrl.u32 %v881, 7
        %v883 = vsub.s32 %v880, %v882
        %v884 = vrot.slane %v358, %v883
        %v885 = vcombine.high %v884, %v884
        %v887 = vunpack.c.l.s4 1966171168
        %v888 = vunpack.c.0.s8 %v887
        %v889 = vlaneseq
        %v890 = vshrl.u32 %v889, 7
        %v891 = vsub.s32 %v888, %v890
        %v892 = vrot.slane %v884, %v891
        %v894 = vunpack.c.l.s4 1966171168
        %v895 = vunpack.c.0.s8 %v894
        %v896 = vlaneseq
        %v897 = vshrl.u32 %v896, 7
        %v898 = vsub.s32 %v895, %v897
        %v899 = vrot.slane %v885, %v898
        %v900 = vcombine.high %v892, %v892
        %v901 = vcombine.high %v899, %v899
        %v903 = vunpack.c.l.s4 1966171168
        %v904 = vunpack.c.0.s8 %v903
        %v905 = vlaneseq
        %v906 = vshrl.u32 %v905, 7
        %v907 = vsub.s32 %v904, %v906
        %v908 = vrot.slane %v359, %v907
        %v909 = vcombine.high %v908, %v908
        %v911 = vunpack.c.l.s4 1966171168
        %v912 = vunpack.c.0.s8 %v911
        %v913 = vlaneseq
        %v914 = vshrl.u32 %v913, 7
        %v915 = vsub.s32 %v912, %v914
        %v916 = vrot.slane %v908, %v915
        %v918 = vunpack.c.l.s4 1966171168
        %v919 = vunpack.c.0.s8 %v918
        %v920 = vlaneseq
        %v921 = vshrl.u32 %v920, 7
        %v922 = vsub.s32 %v919, %v921
        %v923 = vrot.slane %v909, %v922
        %v924 = vcombine.high %v916, %v916
        %v925 = vcombine.high %v923, %v923
        %v927 = vunpack.c.l.s4 1966171168
        %v928 = vunpack.c.0.s8 %v927
        %v929 = vlaneseq
        %v930 = vshrl.u32 %v929, 7
        %v931 = vsub.s32 %v928, %v930
        %v932 = vrot.slane %v360, %v931
        %v933 = vcombine.high %v932, %v932
        %v935 = vunpack.c.l.s4 1966171168
        %v936 = vunpack.c.0.s8 %v935
        %v937 = vlaneseq
        %v938 = vshrl.u32 %v937, 7
        %v939 = vsub.s32 %v936, %v938
        %v940 = vrot.slane %v932, %v939
        %v942 = vunpack.c.l.s4 1966171168
        %v943 = vunpack.c.0.s8 %v942
        %v944 = vlaneseq
        %v945 = vshrl.u32 %v944, 7
        %v946 = vsub.s32 %v943, %v945
        %v947 = vrot.slane %v933, %v946
        %vm948 = vsmask.f32 256
        %vm949 = vsmask.f32 1284
        %vm950 = vmor %vm948, %vm949
        %vm951 = vsmask.f32 2312
        %vm952 = vmor %vm950, %vm951
        %vm953 = vsmask.f32 3340
        %vm954 = vmor %vm952, %vm953
        %vm955 = vsmask.f32 4368
        %vm956 = vmor %vm954, %vm955
        %vm957 = vsmask.f32 5396
        %vm958 = vmor %vm956, %vm957
        %vm959 = vsmask.f32 6424
        %vm960 = vmor %vm958, %vm959
        %vm961 = vsmask.f32 7452
        %vm962 = vmor %vm960, %vm961
        %v964 = vshrl.u32 %v402, 16
        %v966 = vrot.slane %v964, 7
        %v967 = vrot.slane %v966, 1
        %v969 = vshll.u32 %v409, 16
        %v971 = vsel %vm962, %v967, %v969
        %v972 = vshrl.u32 %v409, 16
        %v974 = vrot.slane %v972, 7
        %v975 = vrot.slane %v974, 1
        %v977 = vshll.u32 %v410, 16
        %v979 = vsel %vm962, %v975, %v977
        %v980 = vshrl.u32 %v410, 16
        %v982 = vrot.slane %v980, 7
        %v983 = vrot.slane %v982, 1
        %v985 = vshll.u32 %v411, 16
        %v987 = vsel %vm962, %v983, %v985
        %v988 = vshrl.u32 %v411, 16
        %v990 = vrot.slane %v988, 7
        %v991 = vrot.slane %v990, 1
        %v993 = vshll.u32 %v426, 16
        %v995 = vsel %vm962, %v991, %v993
        %v996 = vshrl.u32 %v426, 16
        %v998 = vrot.slane %v996, 7
        %v999 = vrot.slane %v998, 1
        %v1001 = vshll.u32 %v433, 16
        %v1003 = vsel %vm962, %v999, %v1001
        %v1004 = vshrl.u32 %v433, 16
        %v1006 = vrot.slane %v1004, 7
        %v1007 = vrot.slane %v1006, 1
        %v1009 = vshll.u32 %v434, 16
        %v1011 = vsel %vm962, %v1007, %v1009
        %v1012 = vshrl.u32 %v434, 16
        %v1014 = vrot.slane %v1012, 7
        %v1015 = vrot.slane %v1014, 1
        %v1017 = vshll.u32 %v435, 16
        %v1019 = vsel %vm962, %v1015, %v1017
        %v1020 = vshrl.u32 %v435, 16
        %v1022 = vrot.slane %v1020, 7
        %v1023 = vrot.slane %v1022, 1
        %v1025 = vshll.u32 %v450, 16
        %v1027 = vsel %vm962, %v1023, %v1025
        %v1028 = vshrl.u32 %v450, 16
        %v1030 = vrot.slane %v1028, 7
        %v1031 = vrot.slane %v1030, 1
        %v1033 = vshll.u32 %v457, 16
        %v1035 = vsel %vm962, %v1031, %v1033
        %v1037 = vshrl.u32 %v472, 16
        %v1039 = vrot.slane %v1037, 7
        %v1040 = vrot.slane %v1039, 1
        %v1042 = vshll.u32 %v479, 16
        %v1044 = vsel %vm962, %v1040, %v1042
        %v1045 = vshrl.u32 %v479, 16
        %v1047 = vrot.slane %v1045, 7
        %v1048 = vrot.slane %v1047, 1
        %v1050 = vshll.u32 %v480, 16
        %v1052 = vsel %vm962, %v1048, %v1050
        %v1053 = vshrl.u32 %v480, 16
        %v1055 = vrot.slane %v1053, 7
        %v1056 = vrot.slane %v1055, 1
        %v1058 = vshll.u32 %v481, 16
        %v1060 = vsel %vm962, %v1056, %v1058
        %v1061 = vshrl.u32 %v481, 16
        %v1063 = vrot.slane %v1061, 7
        %v1064 = vrot.slane %v1063, 1
        %v1066 = vshll.u32 %v496, 16
        %v1068 = vsel %vm962, %v1064, %v1066
        %v1069 = vshrl.u32 %v496, 16
        %v1071 = vrot.slane %v1069, 7
        %v1072 = vrot.slane %v1071, 1
        %v1074 = vshll.u32 %v503, 16
        %v1076 = vsel %vm962, %v1072, %v1074
        %v1077 = vshrl.u32 %v503, 16
        %v1079 = vrot.slane %v1077, 7
        %v1080 = vrot.slane %v1079, 1
        %v1082 = vshll.u32 %v504, 16
        %v1084 = vsel %vm962, %v1080, %v1082
        %v1085 = vshrl.u32 %v504, 16
        %v1087 = vrot.slane %v1085, 7
        %v1088 = vrot.slane %v1087, 1
        %v1090 = vshll.u32 %v505, 16
        %v1092 = vsel %vm962, %v1088, %v1090
        %v1093 = vshrl.u32 %v505, 16
        %v1095 = vrot.slane %v1093, 7
        %v1096 = vrot.slane %v1095, 1
        %v1098 = vshll.u32 %v520, 16
        %v1100 = vsel %vm962, %v1096, %v1098
        %v1101 = vshrl.u32 %v520, 16
        %v1103 = vrot.slane %v1101, 7
        %v1104 = vrot.slane %v1103, 1
        %v1106 = vshll.u32 %v527, 16
        %v1108 = vsel %vm962, %v1104, %v1106
        %v1110 = vshrl.u32 %v542, 16
        %v1112 = vrot.slane %v1110, 7
        %v1113 = vrot.slane %v1112, 1
        %v1115 = vshll.u32 %v549, 16
        %v1117 = vsel %vm962, %v1113, %v1115
        %v1118 = vshrl.u32 %v549, 16
        %v1120 = vrot.slane %v1118, 7
        %v1121 = vrot.slane %v1120, 1
        %v1123 = vshll.u32 %v550, 16
        %v1125 = vsel %vm962, %v1121, %v1123
        %v1126 = vshrl.u32 %v550, 16
        %v1128 = vrot.slane %v1126, 7
        %v1129 = vrot.slane %v1128, 1
        %v1131 = vshll.u32 %v551, 16
        %v1133 = vsel %vm962, %v1129, %v1131
        %v1134 = vshrl.u32 %v551, 16
        %v1136 = vrot.slane %v1134, 7
        %v1137 = vrot.slane %v1136, 1
        %v1139 = vshll.u32 %v566, 16
        %v1141 = vsel %vm962, %v1137, %v1139
        %v1142 = vshrl.u32 %v566, 16
        %v1144 = vrot.slane %v1142, 7
        %v1145 = vrot.slane %v1144, 1
        %v1147 = vshll.u32 %v573, 16
        %v1149 = vsel %vm962, %v1145, %v1147
        %v1150 = vshrl.u32 %v573, 16
        %v1152 = vrot.slane %v1150, 7
        %v1153 = vrot.slane %v1152, 1
        %v1155 = vshll.u32 %v574, 16
        %v1157 = vsel %vm962, %v1153, %v1155
        %v1158 = vshrl.u32 %v574, 16
        %v1160 = vrot.slane %v1158, 7
        %v1161 = vrot.slane %v1160, 1
        %v1163 = vshll.u32 %v575, 16
        %v1165 = vsel %vm962, %v1161, %v1163
        %v1166 = vshrl.u32 %v575, 16
        %v1168 = vrot.slane %v1166, 7
        %v1169 = vrot.slane %v1168, 1
        %v1171 = vshll.u32 %v590, 16
        %v1173 = vsel %vm962, %v1169, %v1171
        %v1174 = vshrl.u32 %v590, 16
        %v1176 = vrot.slane %v1174, 7
        %v1177 = vrot.slane %v1176, 1
        %v1179 = vshll.u32 %v597, 16
        %v1181 = vsel %vm962, %v1177, %v1179
        %v1183 = vshrl.u32 %v612, 16
        %v1185 = vrot.slane %v1183, 7
        %v1186 = vrot.slane %v1185, 1
        %v1188 = vshll.u32 %v619, 16
        %v1190 = vsel %vm962, %v1186, %v1188
        %v1191 = vshrl.u32 %v619, 16
        %v1193 = vrot.slane %v1191, 7
        %v1194 = vrot.slane %v1193, 1
        %v1196 = vshll.u32 %v620, 16
        %v1198 = vsel %vm962, %v1194, %v1196
        %v1199 = vshrl.u32 %v620, 16
        %v1201 = vrot.slane %v1199, 7
        %v1202 = vrot.slane %v1201, 1
        %v1204 = vshll.u32 %v621, 16
        %v1206 = vsel %vm962, %v1202, %v1204
        %v1207 = vshrl.u32 %v621, 16
        %v1209 = vrot.slane %v1207, 7
        %v1210 = vrot.slane %v1209, 1
        %v1212 = vshll.u32 %v636, 16
        %v1214 = vsel %vm962, %v1210, %v1212
        %v1215 = vshrl.u32 %v636, 16
        %v1217 = vrot.slane %v1215, 7
        %v1218 = vrot.slane %v1217, 1
        %v1220 = vshll.u32 %v643, 16
        %v1222 = vsel %vm962, %v1218, %v1220
        %v1223 = vshrl.u32 %v643, 16
        %v1225 = vrot.slane %v1223, 7
        %v1226 = vrot.slane %v1225, 1
        %v1228 = vshll.u32 %v644, 16
        %v1230 = vsel %vm962, %v1226, %v1228
        %v1231 = vshrl.u32 %v644, 16
        %v1233 = vrot.slane %v1231, 7
        %v1234 = vrot.slane %v1233, 1
        %v1236 = vshll.u32 %v645, 16
        %v1238 = vsel %vm962, %v1234, %v1236
        %v1239 = vshrl.u32 %v645, 16
        %v1241 = vrot.slane %v1239, 7
        %v1242 = vrot.slane %v1241, 1
        %v1244 = vshll.u32 %v660, 16
        %v1246 = vsel %vm962, %v1242, %v1244
        %v1247 = vshrl.u32 %v660, 16
        %v1249 = vrot.slane %v1247, 7
        %v1250 = vrot.slane %v1249, 1
        %v1252 = vshll.u32 %v667, 16
        %v1254 = vsel %vm962, %v1250, %v1252
        %v1256 = vshrl.u32 %v682, 16
        %v1258 = vrot.slane %v1256, 7
        %v1259 = vrot.slane %v1258, 1
        %v1261 = vshll.u32 %v689, 16
        %v1263 = vsel %vm962, %v1259, %v1261
        %v1264 = vshrl.u32 %v689, 16
        %v1266 = vrot.slane %v1264, 7
        %v1267 = vrot.slane %v1266, 1
        %v1269 = vshll.u32 %v690, 16
        %v1271 = vsel %vm962, %v1267, %v1269
        %v1272 = vshrl.u32 %v690, 16
        %v1274 = vrot.slane %v1272, 7
        %v1275 = vrot.slane %v1274, 1
        %v1277 = vshll.u32 %v691, 16
        %v1279 = vsel %vm962, %v1275, %v1277
        %v1280 = vshrl.u32 %v691, 16
        %v1282 = vrot.slane %v1280, 7
        %v1283 = vrot.slane %v1282, 1
        %v1285 = vshll.u32 %v706, 16
        %v1287 = vsel %vm962, %v1283, %v1285
        %v1288 = vshrl.u32 %v706, 16
        %v1290 = vrot.slane %v1288, 7
        %v1291 = vrot.slane %v1290, 1
        %v1293 = vshll.u32 %v713, 16
        %v1295 = vsel %vm962, %v1291, %v1293
        %v1296 = vshrl.u32 %v713, 16
        %v1298 = vrot.slane %v1296, 7
        %v1299 = vrot.slane %v1298, 1
        %v1301 = vshll.u32 %v714, 16
        %v1303 = vsel %vm962, %v1299, %v1301
        %v1304 = vshrl.u32 %v714, 16
        %v1306 = vrot.slane %v1304, 7
        %v1307 = vrot.slane %v1306, 1
        %v1309 = vshll.u32 %v715, 16
        %v1311 = vsel %vm962, %v1307, %v1309
        %v1312 = vshrl.u32 %v715, 16
        %v1314 = vrot.slane %v1312, 7
        %v1315 = vrot.slane %v1314, 1
        %v1317 = vshll.u32 %v730, 16
        %v1319 = vsel %vm962, %v1315, %v1317
        %v1320 = vshrl.u32 %v730, 16
        %v1322 = vrot.slane %v1320, 7
        %v1323 = vrot.slane %v1322, 1
        %v1325 = vshll.u32 %v737, 16
        %v1327 = vsel %vm962, %v1323, %v1325
        %v1329 = vshrl.u32 %v752, 16
        %v1331 = vrot.slane %v1329, 7
        %v1332 = vrot.slane %v1331, 1
        %v1334 = vshll.u32 %v759, 16
        %v1336 = vsel %vm962, %v1332, %v1334
        %v1337 = vshrl.u32 %v759, 16
        %v1339 = vrot.slane %v1337, 7
        %v1340 = vrot.slane %v1339, 1
        %v1342 = vshll.u32 %v760, 16
        %v1344 = vsel %vm962, %v1340, %v1342
        %v1345 = vshrl.u32 %v760, 16
        %v1347 = vrot.slane %v1345, 7
        %v1348 = vrot.slane %v1347, 1
        %v1350 = vshll.u32 %v761, 16
        %v1352 = vsel %vm962, %v1348, %v1350
        %v1353 = vshrl.u32 %v761, 16
        %v1355 = vrot.slane %v1353, 7
        %v1356 = vrot.slane %v1355, 1
        %v1358 = vshll.u32 %v776, 16
        %v1360 = vsel %vm962, %v1356, %v1358
        %v1361 = vshrl.u32 %v776, 16
        %v1363 = vrot.slane %v1361, 7
        %v1364 = vrot.slane %v1363, 1
        %v1366 = vshll.u32 %v783, 16
        %v1368 = vsel %vm962, %v1364, %v1366
        %v1369 = vshrl.u32 %v783, 16
        %v1371 = vrot.slane %v1369, 7
        %v1372 = vrot.slane %v1371, 1
        %v1374 = vshll.u32 %v784, 16
        %v1376 = vsel %vm962, %v1372, %v1374
        %v1377 = vshrl.u32 %v784, 16
        %v1379 = vrot.slane %v1377, 7
        %v1380 = vrot.slane %v1379, 1
        %v1382 = vshll.u32 %v785, 16
        %v1384 = vsel %vm962, %v1380, %v1382
        %v1385 = vshrl.u32 %v785, 16
        %v1387 = vrot.slane %v1385, 7
        %v1388 = vrot.slane %v1387, 1
        %v1390 = vshll.u32 %v800, 16
        %v1392 = vsel %vm962, %v1388, %v1390
        %v1393 = vshrl.u32 %v800, 16
        %v1395 = vrot.slane %v1393, 7
        %v1396 = vrot.slane %v1395, 1
        %v1398 = vshll.u32 %v807, 16
        %v1400 = vsel %vm962, %v1396, %v1398
        %v1402 = vshrl.u32 %v822, 16
        %v1404 = vrot.slane %v1402, 7
        %v1405 = vrot.slane %v1404, 1
        %v1407 = vshll.u32 %v829, 16
        %v1409 = vsel %vm962, %v1405, %v1407
        %v1410 = vshrl.u32 %v829, 16
        %v1412 = vrot.slane %v1410, 7
        %v1413 = vrot.slane %v1412, 1
        %v1415 = vshll.u32 %v830, 16
        %v1417 = vsel %vm962, %v1413, %v1415
        %v1418 = vshrl.u32 %v830, 16
        %v1420 = vrot.slane %v1418, 7
        %v1421 = vrot.slane %v1420, 1
        %v1423 = vshll.u32 %v831, 16
        %v1425 = vsel %vm962, %v1421, %v1423
        %v1426 = vshrl.u32 %v831, 16
        %v1428 = vrot.slane %v1426, 7
        %v1429 = vrot.slane %v1428, 1
        %v1431 = vshll.u32 %v846, 16
        %v1433 = vsel %vm962, %v1429, %v1431
        %v1434 = vshrl.u32 %v846, 16
        %v1436 = vrot.slane %v1434, 7
        %v1437 = vrot.slane %v1436, 1
        %v1439 = vshll.u32 %v853, 16
        %v1441 = vsel %vm962, %v1437, %v1439
        %v1442 = vshrl.u32 %v853, 16
        %v1444 = vrot.slane %v1442, 7
        %v1445 = vrot.slane %v1444, 1
        %v1447 = vshll.u32 %v854, 16
        %v1449 = vsel %vm962, %v1445, %v1447
        %v1450 = vshrl.u32 %v854, 16
        %v1452 = vrot.slane %v1450, 7
        %v1453 = vrot.slane %v1452, 1
        %v1455 = vshll.u32 %v855, 16
        %v1457 = vsel %vm962, %v1453, %v1455
        %v1458 = vshrl.u32 %v855, 16
        %v1460 = vrot.slane %v1458, 7
        %v1461 = vrot.slane %v1460, 1
        %v1463 = vshll.u32 %v870, 16
        %v1465 = vsel %vm962, %v1461, %v1463
        %v1466 = vshrl.u32 %v870, 16
        %v1468 = vrot.slane %v1466, 7
        %v1469 = vrot.slane %v1468, 1
        %v1471 = vshll.u32 %v877, 16
        %v1473 = vsel %vm962, %v1469, %v1471
        %v1475 = vshrl.u32 %v892, 16
        %v1477 = vrot.slane %v1475, 7
        %v1478 = vrot.slane %v1477, 1
        %v1480 = vshll.u32 %v899, 16
        %v1482 = vsel %vm962, %v1478, %v1480
        %v1483 = vshrl.u32 %v899, 16
        %v1485 = vrot.slane %v1483, 7
        %v1486 = vrot.slane %v1485, 1
        %v1488 = vshll.u32 %v900, 16
        %v1490 = vsel %vm962, %v1486, %v1488
        %v1491 = vshrl.u32 %v900, 16
        %v1493 = vrot.slane %v1491, 7
        %v1494 = vrot.slane %v1493, 1
        %v1496 = vshll.u32 %v901, 16
        %v1498 = vsel %vm962, %v1494, %v1496
        %v1499 = vshrl.u32 %v901, 16
        %v1501 = vrot.slane %v1499, 7
        %v1502 = vrot.slane %v1501, 1
        %v1504 = vshll.u32 %v916, 16
        %v1506 = vsel %vm962, %v1502, %v1504
        %v1507 = vshrl.u32 %v916, 16
        %v1509 = vrot.slane %v1507, 7
        %v1510 = vrot.slane %v1509, 1
        %v1512 = vshll.u32 %v923, 16
        %v1514 = vsel %vm962, %v1510, %v1512
        %v1515 = vshrl.u32 %v923, 16
        %v1517 = vrot.slane %v1515, 7
        %v1518 = vrot.slane %v1517, 1
        %v1520 = vshll.u32 %v924, 16
        %v1522 = vsel %vm962, %v1518, %v1520
        %v1523 = vshrl.u32 %v924, 16
        %v1525 = vrot.slane %v1523, 7
        %v1526 = vrot.slane %v1525, 1
        %v1528 = vshll.u32 %v925, 16
        %v1530 = vsel %vm962, %v1526, %v1528
        %v1531 = vshrl.u32 %v925, 16
        %v1533 = vrot.slane %v1531, 7
        %v1534 = vrot.slane %v1533, 1
        %v1536 = vshll.u32 %v940, 16
        %v1538 = vsel %vm962, %v1534, %v1536
        %v1539 = vshrl.u32 %v940, 16
        %v1541 = vrot.slane %v1539, 7
        %v1542 = vrot.slane %v1541, 1
        %v1544 = vshll.u32 %v947, 16
        %v1546 = vsel %vm962, %v1542, %v1544
        %v1547 = vcombine.low %v971, %v979
        %v1548 = vcombine.low %v987, %v995
        %v1549 = vcombine.low %v1003, %v1011
        %v1550 = vcombine.low %v1019, %v1027
        %v1552 = vunpack.c.l.s4 1966171168
        %v1553 = vunpack.c.0.s8 %v1552
        %v1554 = vlaneseq
        %v1555 = vshrl.u32 %v1554, 7
        %v1556 = vsub.s32 %v1553, %v1555
        %v1557 = vrot.slane %v1547, %v1556
        %v1559 = vunpack.c.l.s4 1966171168
        %v1560 = vunpack.c.0.s8 %v1559
        %v1561 = vlaneseq
        %v1562 = vshrl.u32 %v1561, 7
        %v1563 = vsub.s32 %v1560, %v1562
        %v1564 = vrot.slane %v1548, %v1563
        %v1566 = vunpack.c.l.s4 1966171168
        %v1567 = vunpack.c.0.s8 %v1566
        %v1568 = vlaneseq
        %v1569 = vshrl.u32 %v1568, 7
        %v1570 = vsub.s32 %v1567, %v1569
        %v1571 = vrot.slane %v1549, %v1570
        %v1573 = vunpack.c.l.s4 1966171168
        %v1574 = vunpack.c.0.s8 %v1573
        %v1575 = vlaneseq
        %v1576 = vshrl.u32 %v1575, 7
        %v1577 = vsub.s32 %v1574, %v1576
        %v1578 = vrot.slane %v1550, %v1577
        %v1579 = vcombine.low %v1557, %v1564
        %v1580 = vcombine.low %v1571, %v1578
        %v1582 = vunpack.c.l.s4 1966171168
        %v1583 = vunpack.c.0.s8 %v1582
        %v1584 = vlaneseq
        %v1585 = vshrl.u32 %v1584, 7
        %v1586 = vsub.s32 %v1583, %v1585
        %v1587 = vrot.slane %v1579, %v1586
        %v1589 = vunpack.c.l.s4 1966171168
        %v1590 = vunpack.c.0.s8 %v1589
        %v1591 = vlaneseq
        %v1592 = vshrl.u32 %v1591, 7
        %v1593 = vsub.s32 %v1590, %v1592
        %v1594 = vrot.slane %v1580, %v1593
        %v1595 = vcombine.low %v1587, %v1594
        %v1596 = vcombine.low %v1035, %v1044
        %v1597 = vcombine.low %v1052, %v1060
        %v1598 = vcombine.low %v1068, %v1076
        %v1599 = vcombine.low %v1084, %v1092
        %v1601 = vunpack.c.l.s4 1966171168
        %v1602 = vunpack.c.0.s8 %v1601
        %v1603 = vlaneseq
        %v1604 = vshrl.u32 %v1603, 7
        %v1605 = vsub.s32 %v1602, %v1604
        %v1606 = vrot.slane %v1596, %v1605
        %v1608 = vunpack.c.l.s4 1966171168
        %v1609 = vunpack.c.0.s8 %v1608
        %v1610 = vlaneseq
        %v1611 = vshrl.u32 %v1610, 7
        %v1612 = vsub.s32 %v1609, %v1611
        %v1613 = vrot.slane %v1597, %v1612
        %v1615 = vunpack.c.l.s4 1966171168
        %v1616 = vunpack.c.0.s8 %v1615
        %v1617 = vlaneseq
        %v1618 = vshrl.u32 %v1617, 7
        %v1619 = vsub.s32 %v1616, %v1618
        %v1620 = vrot.slane %v1598, %v1619
        %v1622 = vunpack.c.l.s4 1966171168
        %v1623 = vunpack.c.0.s8 %v1622
        %v1624 = vlaneseq
        %v1625 = vshrl.u32 %v1624, 7
        %v1626 = vsub.s32 %v1623, %v1625
        %v1627 = vrot.slane %v1599, %v1626
        %v1628 = vcombine.low %v1606, %v1613
        %v1629 = vcombine.low %v1620, %v1627
        %v1631 = vunpack.c.l.s4 1966171168
        %v1632 = vunpack.c.0.s8 %v1631
        %v1633 = vlaneseq
        %v1634 = vshrl.u32 %v1633, 7
        %v1635 = vsub.s32 %v1632, %v1634
        %v1636 = vrot.slane %v1628, %v1635
        %v1638 = vunpack.c.l.s4 1966171168
        %v1639 = vunpack.c.0.s8 %v1638
        %v1640 = vlaneseq
        %v1641 = vshrl.u32 %v1640, 7
        %v1642 = vsub.s32 %v1639, %v1641
        %v1643 = vrot.slane %v1629, %v1642
        %v1644 = vcombine.low %v1636, %v1643
        %v1645 = vcombine.low %v1100, %v1108
        %v1646 = vcombine.low %v1117, %v1125
        %v1647 = vcombine.low %v1133, %v1141
        %v1648 = vcombine.low %v1149, %v1157
        %v1650 = vunpack.c.l.s4 1966171168
        %v1651 = vunpack.c.0.s8 %v1650
        %v1652 = vlaneseq
        %v1653 = vshrl.u32 %v1652, 7
        %v1654 = vsub.s32 %v1651, %v1653
        %v1655 = vrot.slane %v1645, %v1654
        %v1657 = vunpack.c.l.s4 1966171168
        %v1658 = vunpack.c.0.s8 %v1657
        %v1659 = vlaneseq
        %v1660 = vshrl.u32 %v1659, 7
        %v1661 = vsub.s32 %v1658, %v1660
        %v1662 = vrot.slane %v1646, %v1661
        %v1664 = vunpack.c.l.s4 1966171168
        %v1665 = vunpack.c.0.s8 %v1664
        %v1666 = vlaneseq
        %v1667 = vshrl.u32 %v1666, 7
        %v1668 = vsub.s32 %v1665, %v1667
        %v1669 = vrot.slane %v1647, %v1668
        %v1671 = vunpack.c.l.s4 1966171168
        %v1672 = vunpack.c.0.s8 %v1671
        %v1673 = vlaneseq
        %v1674 = vshrl.u32 %v1673, 7
        %v1675 = vsub.s32 %v1672, %v1674
        %v1676 = vrot.slane %v1648, %v1675
        %v1677 = vcombine.low %v1655, %v1662
        %v1678 = vcombine.low %v1669, %v1676
        %v1680 = vunpack.c.l.s4 1966171168
        %v1681 = vunpack.c.0.s8 %v1680
        %v1682 = vlaneseq
        %v1683 = vshrl.u32 %v1682, 7
        %v1684 = vsub.s32 %v1681, %v1683
        %v1685 = vrot.slane %v1677, %v1684
        %v1687 = vunpack.c.l.s4 1966171168
        %v1688 = vunpack.c.0.s8 %v1687
        %v1689 = vlaneseq
        %v1690 = vshrl.u32 %v1689, 7
        %v1691 = vsub.s32 %v1688, %v1690
        %v1692 = vrot.slane %v1678, %v1691
        %v1693 = vcombine.low %v1685, %v1692
        %v1694 = vcombine.low %v1165, %v1173
        %v1695 = vcombine.low %v1181, %v1190
        %v1696 = vcombine.low %v1198, %v1206
        %v1697 = vcombine.low %v1214, %v1222
        %v1699 = vunpack.c.l.s4 1966171168
        %v1700 = vunpack.c.0.s8 %v1699
        %v1701 = vlaneseq
        %v1702 = vshrl.u32 %v1701, 7
        %v1703 = vsub.s32 %v1700, %v1702
        %v1704 = vrot.slane %v1694, %v1703
        %v1706 = vunpack.c.l.s4 1966171168
        %v1707 = vunpack.c.0.s8 %v1706
        %v1708 = vlaneseq
        %v1709 = vshrl.u32 %v1708, 7
        %v1710 = vsub.s32 %v1707, %v1709
        %v1711 = vrot.slane %v1695, %v1710
        %v1713 = vunpack.c.l.s4 1966171168
        %v1714 = vunpack.c.0.s8 %v1713
        %v1715 = vlaneseq
        %v1716 = vshrl.u32 %v1715, 7
        %v1717 = vsub.s32 %v1714, %v1716
        %v1718 = vrot.slane %v1696, %v1717
        %v1720 = vunpack.c.l.s4 1966171168
        %v1721 = vunpack.c.0.s8 %v1720
        %v1722 = vlaneseq
        %v1723 = vshrl.u32 %v1722, 7
        %v1724 = vsub.s32 %v1721, %v1723
        %v1725 = vrot.slane %v1697, %v1724
        %v1726 = vcombine.low %v1704, %v1711
        %v1727 = vcombine.low %v1718, %v1725
        %v1729 = vunpack.c.l.s4 1966171168
        %v1730 = vunpack.c.0.s8 %v1729
        %v1731 = vlaneseq
        %v1732 = vshrl.u32 %v1731, 7
        %v1733 = vsub.s32 %v1730, %v1732
        %v1734 = vrot.slane %v1726, %v1733
        %v1736 = vunpack.c.l.s4 1966171168
        %v1737 = vunpack.c.0.s8 %v1736
        %v1738 = vlaneseq
        %v1739 = vshrl.u32 %v1738, 7
        %v1740 = vsub.s32 %v1737, %v1739
        %v1741 = vrot.slane %v1727, %v1740
        %v1742 = vcombine.low %v1734, %v1741
        %v1743 = vcombine.low %v1230, %v1238
        %v1744 = vcombine.low %v1246, %v1254
        %v1745 = vcombine.low %v1263, %v1271
        %v1746 = vcombine.low %v1279, %v1287
        %v1748 = vunpack.c.l.s4 1966171168
        %v1749 = vunpack.c.0.s8 %v1748
        %v1750 = vlaneseq
        %v1751 = vshrl.u32 %v1750, 7
        %v1752 = vsub.s32 %v1749, %v1751
        %v1753 = vrot.slane %v1743, %v1752
        %v1755 = vunpack.c.l.s4 1966171168
        %v1756 = vunpack.c.0.s8 %v1755
        %v1757 = vlaneseq
        %v1758 = vshrl.u32 %v1757, 7
        %v1759 = vsub.s32 %v1756, %v1758
        %v1760 = vrot.slane %v1744, %v1759
        %v1762 = vunpack.c.l.s4 1966171168
        %v1763 = vunpack.c.0.s8 %v1762
        %v1764 = vlaneseq
        %v1765 = vshrl.u32 %v1764, 7
        %v1766 = vsub.s32 %v1763, %v1765
        %v1767 = vrot.slane %v1745, %v1766
        %v1769 = vunpack.c.l.s4 1966171168
        %v1770 = vunpack.c.0.s8 %v1769
        %v1771 = vlaneseq
        %v1772 = vshrl.u32 %v1771, 7
        %v1773 = vsub.s32 %v1770, %v1772
        %v1774 = vrot.slane %v1746, %v1773
        %v1775 = vcombine.low %v1753, %v1760
        %v1776 = vcombine.low %v1767, %v1774
        %v1778 = vunpack.c.l.s4 1966171168
        %v1779 = vunpack.c.0.s8 %v1778
        %v1780 = vlaneseq
        %v1781 = vshrl.u32 %v1780, 7
        %v1782 = vsub.s32 %v1779, %v1781
        %v1783 = vrot.slane %v1775, %v1782
        %v1785 = vunpack.c.l.s4 1966171168
        %v1786 = vunpack.c.0.s8 %v1785
        %v1787 = vlaneseq
        %v1788 = vshrl.u32 %v1787, 7
        %v1789 = vsub.s32 %v1786, %v1788
        %v1790 = vrot.slane %v1776, %v1789
        %v1791 = vcombine.low %v1783, %v1790
        %v1792 = vcombine.low %v1295, %v1303
        %v1793 = vcombine.low %v1311, %v1319
        %v1794 = vcombine.low %v1327, %v1336
        %v1795 = vcombine.low %v1344, %v1352
        %v1797 = vunpack.c.l.s4 1966171168
        %v1798 = vunpack.c.0.s8 %v1797
        %v1799 = vlaneseq
        %v1800 = vshrl.u32 %v1799, 7
        %v1801 = vsub.s32 %v1798, %v1800
        %v1802 = vrot.slane %v1792, %v1801
        %v1804 = vunpack.c.l.s4 1966171168
        %v1805 = vunpack.c.0.s8 %v1804
        %v1806 = vlaneseq
        %v1807 = vshrl.u32 %v1806, 7
        %v1808 = vsub.s32 %v1805, %v1807
        %v1809 = vrot.slane %v1793, %v1808
        %v1811 = vunpack.c.l.s4 1966171168
        %v1812 = vunpack.c.0.s8 %v1811
        %v1813 = vlaneseq
        %v1814 = vshrl.u32 %v1813, 7
        %v1815 = vsub.s32 %v1812, %v1814
        %v1816 = vrot.slane %v1794, %v1815
        %v1818 = vunpack.c.l.s4 1966171168
        %v1819 = vunpack.c.0.s8 %v1818
        %v1820 = vlaneseq
        %v1821 = vshrl.u32 %v1820, 7
        %v1822 = vsub.s32 %v1819, %v1821
        %v1823 = vrot.slane %v1795, %v1822
        %v1824 = vcombine.low %v1802, %v1809
        %v1825 = vcombine.low %v1816, %v1823
        %v1827 = vunpack.c.l.s4 1966171168
        %v1828 = vunpack.c.0.s8 %v1827
        %v1829 = vlaneseq
        %v1830 = vshrl.u32 %v1829, 7
        %v1831 = vsub.s32 %v1828, %v1830
        %v1832 = vrot.slane %v1824, %v1831
        %v1834 = vunpack.c.l.s4 1966171168
        %v1835 = vunpack.c.0.s8 %v1834
        %v1836 = vlaneseq
        %v1837 = vshrl.u32 %v1836, 7
        %v1838 = vsub.s32 %v1835, %v1837
        %v1839 = vrot.slane %v1825, %v1838
        %v1840 = vcombine.low %v1832, %v1839
        %v1841 = vcombine.low %v1360, %v1368
        %v1842 = vcombine.low %v1376, %v1384
        %v1843 = vcombine.low %v1392, %v1400
        %v1844 = vcombine.low %v1409, %v1417
        %v1846 = vunpack.c.l.s4 1966171168
        %v1847 = vunpack.c.0.s8 %v1846
        %v1848 = vlaneseq
        %v1849 = vshrl.u32 %v1848, 7
        %v1850 = vsub.s32 %v1847, %v1849
        %v1851 = vrot.slane %v1841, %v1850
        %v1853 = vunpack.c.l.s4 1966171168
        %v1854 = vunpack.c.0.s8 %v1853
        %v1855 = vlaneseq
        %v1856 = vshrl.u32 %v1855, 7
        %v1857 = vsub.s32 %v1854, %v1856
        %v1858 = vrot.slane %v1842, %v1857
        %v1860 = vunpack.c.l.s4 1966171168
        %v1861 = vunpack.c.0.s8 %v1860
        %v1862 = vlaneseq
        %v1863 = vshrl.u32 %v1862, 7
        %v1864 = vsub.s32 %v1861, %v1863
        %v1865 = vrot.slane %v1843, %v1864
        %v1867 = vunpack.c.l.s4 1966171168
        %v1868 = vunpack.c.0.s8 %v1867
        %v1869 = vlaneseq
        %v1870 = vshrl.u32 %v1869, 7
        %v1871 = vsub.s32 %v1868, %v1870
        %v1872 = vrot.slane %v1844, %v1871
        %v1873 = vcombine.low %v1851, %v1858
        %v1874 = vcombine.low %v1865, %v1872
        %v1876 = vunpack.c.l.s4 1966171168
        %v1877 = vunpack.c.0.s8 %v1876
        %v1878 = vlaneseq
        %v1879 = vshrl.u32 %v1878, 7
        %v1880 = vsub.s32 %v1877, %v1879
        %v1881 = vrot.slane %v1873, %v1880
        %v1883 = vunpack.c.l.s4 1966171168
        %v1884 = vunpack.c.0.s8 %v1883
        %v1885 = vlaneseq
        %v1886 = vshrl.u32 %v1885, 7
        %v1887 = vsub.s32 %v1884, %v1886
        %v1888 = vrot.slane %v1874, %v1887
        %v1889 = vcombine.low %v1881, %v1888
        %v1890 = vcombine.low %v1425, %v1433
        %v1891 = vcombine.low %v1441, %v1449
        %v1892 = vcombine.low %v1457, %v1465
        %v1893 = vcombine.low %v1473, %v1482
        %v1895 = vunpack.c.l.s4 1966171168
        %v1896 = vunpack.c.0.s8 %v1895
        %v1897 = vlaneseq
        %v1898 = vshrl.u32 %v1897, 7
        %v1899 = vsub.s32 %v1896, %v1898
        %v1900 = vrot.slane %v1890, %v1899
        %v1902 = vunpack.c.l.s4 1966171168
        %v1903 = vunpack.c.0.s8 %v1902
        %v1904 = vlaneseq
        %v1905 = vshrl.u32 %v1904, 7
        %v1906 = vsub.s32 %v1903, %v1905
        %v1907 = vrot.slane %v1891, %v1906
        %v1909 = vunpack.c.l.s4 1966171168
        %v1910 = vunpack.c.0.s8 %v1909
        %v1911 = vlaneseq
        %v1912 = vshrl.u32 %v1911, 7
        %v1913 = vsub.s32 %v1910, %v1912
        %v1914 = vrot.slane %v1892, %v1913
        %v1916 = vunpack.c.l.s4 1966171168
        %v1917 = vunpack.c.0.s8 %v1916
        %v1918 = vlaneseq
        %v1919 = vshrl.u32 %v1918, 7
        %v1920 = vsub.s32 %v1917, %v1919
        %v1921 = vrot.slane %v1893, %v1920
        %v1922 = vcombine.low %v1900, %v1907
        %v1923 = vcombine.low %v1914, %v1921
        %v1925 = vunpack.c.l.s4 1966171168
        %v1926 = vunpack.c.0.s8 %v1925
        %v1927 = vlaneseq
        %v1928 = vshrl.u32 %v1927, 7
        %v1929 = vsub.s32 %v1926, %v1928
        %v1930 = vrot.slane %v1922, %v1929
        %v1932 = vunpack.c.l.s4 1966171168
        %v1933 = vunpack.c.0.s8 %v1932
        %v1934 = vlaneseq
        %v1935 = vshrl.u32 %v1934, 7
        %v1936 = vsub.s32 %v1933, %v1935
        %v1937 = vrot.slane %v1923, %v1936
        %v1938 = vcombine.low %v1930, %v1937
        %v1939 = vcombine.low %v1490, %v1498
        %v1940 = vcombine.low %v1506, %v1514
        %v1941 = vcombine.low %v1522, %v1530
        %v1942 = vcombine.low %v1538, %v1546
        %v1944 = vunpack.c.l.s4 1966171168
        %v1945 = vunpack.c.0.s8 %v1944
        %v1946 = vlaneseq
        %v1947 = vshrl.u32 %v1946, 7
        %v1948 = vsub.s32 %v1945, %v1947
        %v1949 = vrot.slane %v1939, %v1948
        %v1951 = vunpack.c.l.s4 1966171168
        %v1952 = vunpack.c.0.s8 %v1951
        %v1953 = vlaneseq
        %v1954 = vshrl.u32 %v1953, 7
        %v1955 = vsub.s32 %v1952, %v1954
        %v1956 = vrot.slane %v1940, %v1955
        %v1958 = vunpack.c.l.s4 1966171168
        %v1959 = vunpack.c.0.s8 %v1958
        %v1960 = vlaneseq
        %v1961 = vshrl.u32 %v1960, 7
        %v1962 = vsub.s32 %v1959, %v1961
        %v1963 = vrot.slane %v1941, %v1962
        %v1965 = vunpack.c.l.s4 1966171168
        %v1966 = vunpack.c.0.s8 %v1965
        %v1967 = vlaneseq
        %v1968 = vshrl.u32 %v1967, 7
        %v1969 = vsub.s32 %v1966, %v1968
        %v1970 = vrot.slane %v1942, %v1969
        %v1971 = vcombine.low %v1949, %v1956
        %v1972 = vcombine.low %v1963, %v1970
        %v1974 = vunpack.c.l.s4 1966171168
        %v1975 = vunpack.c.0.s8 %v1974
        %v1976 = vlaneseq
        %v1977 = vshrl.u32 %v1976, 7
        %v1978 = vsub.s32 %v1975, %v1977
        %v1979 = vrot.slane %v1971, %v1978
        %v1981 = vunpack.c.l.s4 1966171168
        %v1982 = vunpack.c.0.s8 %v1981
        %v1983 = vlaneseq
        %v1984 = vshrl.u32 %v1983, 7
        %v1985 = vsub.s32 %v1982, %v1984
        %v1986 = vrot.slane %v1972, %v1985
        %v1987 = vcombine.low %v1979, %v1986
        %vm1988 = vcmask 31744
        %v1990 = vsel %vm1988, %v1595, 0
        %v1993 = vsel %vm1988, %v1644, 0
        %v1996 = vsel %vm1988, %v1693, 0
        %v1999 = vsel %vm1988, %v1742, 0
        %v2002 = vsel %vm1988, %v1791, 0
        %v2005 = vsel %vm1988, %v1840, 0
        %v2008 = vsel %vm1988, %v1889, 0
        %v2011 = vsel %vm1988, %v1938, 0
        %v2014 = vsel %vm1988, %v1987, 0
        %vm2016 = vcmask 1041408
        %v2018 = vsel %vm2016, %v363, 0
        %2020 = vmatprep.subr.bf16.mxu0 0
        %2021 = vmatpush1.bf16.msra.mxu0 0
        %2022 = vmatprep.subr.bf16.mxu0 0
        %2023 = vmatpush1.bf16.msra.mxu0 0
        %2024 = vmatprep.subr.bf16.mxu0 0
        %2025 = vmatpush1.bf16.msra.mxu0 0
        %2026 = vmatprep.subr.bf16.mxu0 0
        %2027 = vmatpush1.bf16.msra.mxu0 0
        %2028 = vmatprep.subr.bf16.mxu0 0
        %2029 = vmatpush1.bf16.msra.mxu0 0
        %2030 = vmatprep.subr.bf16.mxu0 0
        %2031 = vmatpush1.bf16.msra.mxu0 0
        %2032 = vmatprep.subr.bf16.mxu0 0
        %2033 = vmatpush1.bf16.msra.mxu0 0
        %2034 = vmatprep.subr.bf16.mxu0 0
        %2035 = vmatpush1.bf16.msra.mxu0 %v2018
        %2036 = vmatprep.subr.bf16.mxu0 0
        %2037 = vmatpush2.bf16.msra.mxu0 0
        %2038 = vmatprep.subr.bf16.mxu0 0
        %2039 = vmatpush2.bf16.msra.mxu0 0
        %2040 = vmatprep.subr.bf16.mxu0 0
        %2041 = vmatpush2.bf16.msra.mxu0 0
        %2042 = vmatprep.subr.bf16.mxu0 0
        %2043 = vmatpush2.bf16.msra.mxu0 0
        %2044 = vmatprep.subr.bf16.mxu0 0
        %2045 = vmatpush2.bf16.msra.mxu0 0
        %2046 = vmatprep.subr.bf16.mxu0 0
        %2047 = vmatpush2.bf16.msra.mxu0 0
        %2048 = vmatprep.subr.bf16.mxu0 0
        %2049 = vmatpush2.bf16.msra.mxu0 0
        %2050 = vmatprep.subr.bf16.mxu0 0
        %2051 = vmatpush2.bf16.msra.mxu0 0
        %2052 = vmatprep.mubr.bf16.mxu0 0
        %2053 = vmatmul.mubr.bf16.gmra.mxu0 %v1990
        %v2054 = vpop.f32.mrf.mxu0
        %v2055 = vadd.f32 0.0, %v2054
        %v2056 = vpop.f32.mrf.mxu0
        %v2057 = vpop.f32.mrf.mxu0
        %v2058 = vadd.f32 0.0, %v2057
        %v2059 = vpop.f32.mrf.mxu0
        %2060 = vmatprep.mubr.bf16.mxu0 0
        %2061 = vmatmul.mubr.bf16.gmra.mxu0 %v1993
        %v2062 = vpop.f32.mrf.mxu0
        %v2063 = vadd.f32 0.0, %v2062
        %v2064 = vpop.f32.mrf.mxu0
        %v2065 = vpop.f32.mrf.mxu0
        %v2066 = vadd.f32 0.0, %v2065
        %v2067 = vpop.f32.mrf.mxu0
        %2068 = vmatprep.mubr.bf16.mxu0 0
        %2069 = vmatmul.mubr.bf16.gmra.mxu0 %v1996
        %v2070 = vpop.f32.mrf.mxu0
        %v2071 = vadd.f32 0.0, %v2070
        %v2072 = vpop.f32.mrf.mxu0
        %v2073 = vpop.f32.mrf.mxu0
        %v2074 = vadd.f32 0.0, %v2073
        %v2075 = vpop.f32.mrf.mxu0
        %2076 = vmatprep.mubr.bf16.mxu0 0
        %2077 = vmatmul.mubr.bf16.gmra.mxu0 %v1999
        %v2078 = vpop.f32.mrf.mxu0
        %v2079 = vadd.f32 0.0, %v2078
        %v2080 = vpop.f32.mrf.mxu0
        %v2081 = vpop.f32.mrf.mxu0
        %v2082 = vadd.f32 0.0, %v2081
        %v2083 = vpop.f32.mrf.mxu0
        %2084 = vmatprep.mubr.bf16.mxu0 0
        %2085 = vmatmul.mubr.bf16.gmra.mxu0 %v2002
        %v2086 = vpop.f32.mrf.mxu0
        %v2087 = vadd.f32 0.0, %v2086
        %v2088 = vpop.f32.mrf.mxu0
        %v2089 = vpop.f32.mrf.mxu0
        %v2090 = vadd.f32 0.0, %v2089
        %v2091 = vpop.f32.mrf.mxu0
        %2092 = vmatprep.mubr.bf16.mxu0 0
        %2093 = vmatmul.mubr.bf16.gmra.mxu0 %v2005
        %v2094 = vpop.f32.mrf.mxu0
        %v2095 = vadd.f32 0.0, %v2094
        %v2096 = vpop.f32.mrf.mxu0
        %v2097 = vpop.f32.mrf.mxu0
        %v2098 = vadd.f32 0.0, %v2097
        %v2099 = vpop.f32.mrf.mxu0
        %2100 = vmatprep.mubr.bf16.mxu0 0
        %2101 = vmatmul.mubr.bf16.gmra.mxu0 %v2008
        %v2102 = vpop.f32.mrf.mxu0
        %v2103 = vadd.f32 0.0, %v2102
        %v2104 = vpop.f32.mrf.mxu0
        %v2105 = vpop.f32.mrf.mxu0
        %v2106 = vadd.f32 0.0, %v2105
        %v2107 = vpop.f32.mrf.mxu0
        %2108 = vmatprep.mubr.bf16.mxu0 0
        %2109 = vmatmul.mubr.bf16.gmra.mxu0 %v2011
        %v2110 = vpop.f32.mrf.mxu0
        %v2111 = vadd.f32 0.0, %v2110
        %v2112 = vpop.f32.mrf.mxu0
        %v2113 = vpop.f32.mrf.mxu0
        %v2114 = vadd.f32 0.0, %v2113
        %v2115 = vpop.f32.mrf.mxu0
        %2116 = vmatprep.mubr.bf16.mxu0 0
        %2117 = vmatmul.mubr.bf16.gmra.mxu0 %v2014
        %v2118 = vpop.f32.mrf.mxu0
        %v2119 = vadd.f32 0.0, %v2118
        %v2120 = vpop.f32.mrf.mxu0
        %v2121 = vpop.f32.mrf.mxu0
        %v2122 = vadd.f32 0.0, %v2121
        %v2123 = vpop.f32.mrf.mxu0
        %2124 = vdwg.mxu0
        %v2125 = vcombine.low %v402, %v409
        %v2126 = vcombine.low %v410, %v411
        %v2127 = vcombine.low %v426, %v433
        %v2128 = vcombine.low %v434, %v435
        %v2130 = vunpack.c.l.s4 1966171168
        %v2131 = vunpack.c.0.s8 %v2130
        %v2132 = vlaneseq
        %v2133 = vshrl.u32 %v2132, 7
        %v2134 = vsub.s32 %v2131, %v2133
        %v2135 = vrot.slane %v2125, %v2134
        %v2137 = vunpack.c.l.s4 1966171168
        %v2138 = vunpack.c.0.s8 %v2137
        %v2139 = vlaneseq
        %v2140 = vshrl.u32 %v2139, 7
        %v2141 = vsub.s32 %v2138, %v2140
        %v2142 = vrot.slane %v2126, %v2141
        %v2144 = vunpack.c.l.s4 1966171168
        %v2145 = vunpack.c.0.s8 %v2144
        %v2146 = vlaneseq
        %v2147 = vshrl.u32 %v2146, 7
        %v2148 = vsub.s32 %v2145, %v2147
        %v2149 = vrot.slane %v2127, %v2148
        %v2151 = vunpack.c.l.s4 1966171168
        %v2152 = vunpack.c.0.s8 %v2151
        %v2153 = vlaneseq
        %v2154 = vshrl.u32 %v2153, 7
        %v2155 = vsub.s32 %v2152, %v2154
        %v2156 = vrot.slane %v2128, %v2155
        %v2157 = vcombine.low %v2135, %v2142
        %v2158 = vcombine.low %v2149, %v2156
        %v2160 = vunpack.c.l.s4 1966171168
        %v2161 = vunpack.c.0.s8 %v2160
        %v2162 = vlaneseq
        %v2163 = vshrl.u32 %v2162, 7
        %v2164 = vsub.s32 %v2161, %v2163
        %v2165 = vrot.slane %v2157, %v2164
        %v2167 = vunpack.c.l.s4 1966171168
        %v2168 = vunpack.c.0.s8 %v2167
        %v2169 = vlaneseq
        %v2170 = vshrl.u32 %v2169, 7
        %v2171 = vsub.s32 %v2168, %v2170
        %v2172 = vrot.slane %v2158, %v2171
        %v2173 = vcombine.low %v2165, %v2172
        %v2174 = vcombine.low %v450, %v472
        %v2175 = vcombine.low %v479, %v480
        %v2176 = vcombine.low %v481, %v496
        %v2177 = vcombine.low %v503, %v504
        %v2179 = vunpack.c.l.s4 1966171168
        %v2180 = vunpack.c.0.s8 %v2179
        %v2181 = vlaneseq
        %v2182 = vshrl.u32 %v2181, 7
        %v2183 = vsub.s32 %v2180, %v2182
        %v2184 = vrot.slane %v2174, %v2183
        %v2186 = vunpack.c.l.s4 1966171168
        %v2187 = vunpack.c.0.s8 %v2186
        %v2188 = vlaneseq
        %v2189 = vshrl.u32 %v2188, 7
        %v2190 = vsub.s32 %v2187, %v2189
        %v2191 = vrot.slane %v2175, %v2190
        %v2193 = vunpack.c.l.s4 1966171168
        %v2194 = vunpack.c.0.s8 %v2193
        %v2195 = vlaneseq
        %v2196 = vshrl.u32 %v2195, 7
        %v2197 = vsub.s32 %v2194, %v2196
        %v2198 = vrot.slane %v2176, %v2197
        %v2200 = vunpack.c.l.s4 1966171168
        %v2201 = vunpack.c.0.s8 %v2200
        %v2202 = vlaneseq
        %v2203 = vshrl.u32 %v2202, 7
        %v2204 = vsub.s32 %v2201, %v2203
        %v2205 = vrot.slane %v2177, %v2204
        %v2206 = vcombine.low %v2184, %v2191
        %v2207 = vcombine.low %v2198, %v2205
        %v2209 = vunpack.c.l.s4 1966171168
        %v2210 = vunpack.c.0.s8 %v2209
        %v2211 = vlaneseq
        %v2212 = vshrl.u32 %v2211, 7
        %v2213 = vsub.s32 %v2210, %v2212
        %v2214 = vrot.slane %v2206, %v2213
        %v2216 = vunpack.c.l.s4 1966171168
        %v2217 = vunpack.c.0.s8 %v2216
        %v2218 = vlaneseq
        %v2219 = vshrl.u32 %v2218, 7
        %v2220 = vsub.s32 %v2217, %v2219
        %v2221 = vrot.slane %v2207, %v2220
        %v2222 = vcombine.low %v2214, %v2221
        %v2223 = vcombine.low %v505, %v520
        %v2224 = vcombine.low %v542, %v549
        %v2225 = vcombine.low %v550, %v551
        %v2226 = vcombine.low %v566, %v573
        %v2228 = vunpack.c.l.s4 1966171168
        %v2229 = vunpack.c.0.s8 %v2228
        %v2230 = vlaneseq
        %v2231 = vshrl.u32 %v2230, 7
        %v2232 = vsub.s32 %v2229, %v2231
        %v2233 = vrot.slane %v2223, %v2232
        %v2235 = vunpack.c.l.s4 1966171168
        %v2236 = vunpack.c.0.s8 %v2235
        %v2237 = vlaneseq
        %v2238 = vshrl.u32 %v2237, 7
        %v2239 = vsub.s32 %v2236, %v2238
        %v2240 = vrot.slane %v2224, %v2239
        %v2242 = vunpack.c.l.s4 1966171168
        %v2243 = vunpack.c.0.s8 %v2242
        %v2244 = vlaneseq
        %v2245 = vshrl.u32 %v2244, 7
        %v2246 = vsub.s32 %v2243, %v2245
        %v2247 = vrot.slane %v2225, %v2246
        %v2249 = vunpack.c.l.s4 1966171168
        %v2250 = vunpack.c.0.s8 %v2249
        %v2251 = vlaneseq
        %v2252 = vshrl.u32 %v2251, 7
        %v2253 = vsub.s32 %v2250, %v2252
        %v2254 = vrot.slane %v2226, %v2253
        %v2255 = vcombine.low %v2233, %v2240
        %v2256 = vcombine.low %v2247, %v2254
        %v2258 = vunpack.c.l.s4 1966171168
        %v2259 = vunpack.c.0.s8 %v2258
        %v2260 = vlaneseq
        %v2261 = vshrl.u32 %v2260, 7
        %v2262 = vsub.s32 %v2259, %v2261
        %v2263 = vrot.slane %v2255, %v2262
        %v2265 = vunpack.c.l.s4 1966171168
        %v2266 = vunpack.c.0.s8 %v2265
        %v2267 = vlaneseq
        %v2268 = vshrl.u32 %v2267, 7
        %v2269 = vsub.s32 %v2266, %v2268
        %v2270 = vrot.slane %v2256, %v2269
        %v2271 = vcombine.low %v2263, %v2270
        %v2272 = vcombine.low %v574, %v575
        %v2273 = vcombine.low %v590, %v612
        %v2274 = vcombine.low %v619, %v620
        %v2275 = vcombine.low %v621, %v636
        %v2277 = vunpack.c.l.s4 1966171168
        %v2278 = vunpack.c.0.s8 %v2277
        %v2279 = vlaneseq
        %v2280 = vshrl.u32 %v2279, 7
        %v2281 = vsub.s32 %v2278, %v2280
        %v2282 = vrot.slane %v2272, %v2281
        %v2284 = vunpack.c.l.s4 1966171168
        %v2285 = vunpack.c.0.s8 %v2284
        %v2286 = vlaneseq
        %v2287 = vshrl.u32 %v2286, 7
        %v2288 = vsub.s32 %v2285, %v2287
        %v2289 = vrot.slane %v2273, %v2288
        %v2291 = vunpack.c.l.s4 1966171168
        %v2292 = vunpack.c.0.s8 %v2291
        %v2293 = vlaneseq
        %v2294 = vshrl.u32 %v2293, 7
        %v2295 = vsub.s32 %v2292, %v2294
        %v2296 = vrot.slane %v2274, %v2295
        %v2298 = vunpack.c.l.s4 1966171168
        %v2299 = vunpack.c.0.s8 %v2298
        %v2300 = vlaneseq
        %v2301 = vshrl.u32 %v2300, 7
        %v2302 = vsub.s32 %v2299, %v2301
        %v2303 = vrot.slane %v2275, %v2302
        %v2304 = vcombine.low %v2282, %v2289
        %v2305 = vcombine.low %v2296, %v2303
        %v2307 = vunpack.c.l.s4 1966171168
        %v2308 = vunpack.c.0.s8 %v2307
        %v2309 = vlaneseq
        %v2310 = vshrl.u32 %v2309, 7
        %v2311 = vsub.s32 %v2308, %v2310
        %v2312 = vrot.slane %v2304, %v2311
        %v2314 = vunpack.c.l.s4 1966171168
        %v2315 = vunpack.c.0.s8 %v2314
        %v2316 = vlaneseq
        %v2317 = vshrl.u32 %v2316, 7
        %v2318 = vsub.s32 %v2315, %v2317
        %v2319 = vrot.slane %v2305, %v2318
        %v2320 = vcombine.low %v2312, %v2319
        %v2321 = vcombine.low %v643, %v644
        %v2322 = vcombine.low %v645, %v660
        %v2323 = vcombine.low %v682, %v689
        %v2324 = vcombine.low %v690, %v691
        %v2326 = vunpack.c.l.s4 1966171168
        %v2327 = vunpack.c.0.s8 %v2326
        %v2328 = vlaneseq
        %v2329 = vshrl.u32 %v2328, 7
        %v2330 = vsub.s32 %v2327, %v2329
        %v2331 = vrot.slane %v2321, %v2330
        %v2333 = vunpack.c.l.s4 1966171168
        %v2334 = vunpack.c.0.s8 %v2333
        %v2335 = vlaneseq
        %v2336 = vshrl.u32 %v2335, 7
        %v2337 = vsub.s32 %v2334, %v2336
        %v2338 = vrot.slane %v2322, %v2337
        %v2340 = vunpack.c.l.s4 1966171168
        %v2341 = vunpack.c.0.s8 %v2340
        %v2342 = vlaneseq
        %v2343 = vshrl.u32 %v2342, 7
        %v2344 = vsub.s32 %v2341, %v2343
        %v2345 = vrot.slane %v2323, %v2344
        %v2347 = vunpack.c.l.s4 1966171168
        %v2348 = vunpack.c.0.s8 %v2347
        %v2349 = vlaneseq
        %v2350 = vshrl.u32 %v2349, 7
        %v2351 = vsub.s32 %v2348, %v2350
        %v2352 = vrot.slane %v2324, %v2351
        %v2353 = vcombine.low %v2331, %v2338
        %v2354 = vcombine.low %v2345, %v2352
        %v2356 = vunpack.c.l.s4 1966171168
        %v2357 = vunpack.c.0.s8 %v2356
        %v2358 = vlaneseq
        %v2359 = vshrl.u32 %v2358, 7
        %v2360 = vsub.s32 %v2357, %v2359
        %v2361 = vrot.slane %v2353, %v2360
        %v2363 = vunpack.c.l.s4 1966171168
        %v2364 = vunpack.c.0.s8 %v2363
        %v2365 = vlaneseq
        %v2366 = vshrl.u32 %v2365, 7
        %v2367 = vsub.s32 %v2364, %v2366
        %v2368 = vrot.slane %v2354, %v2367
        %v2369 = vcombine.low %v2361, %v2368
        %v2370 = vcombine.low %v706, %v713
        %v2371 = vcombine.low %v714, %v715
        %v2372 = vcombine.low %v730, %v752
        %v2373 = vcombine.low %v759, %v760
        %v2375 = vunpack.c.l.s4 1966171168
        %v2376 = vunpack.c.0.s8 %v2375
        %v2377 = vlaneseq
        %v2378 = vshrl.u32 %v2377, 7
        %v2379 = vsub.s32 %v2376, %v2378
        %v2380 = vrot.slane %v2370, %v2379
        %v2382 = vunpack.c.l.s4 1966171168
        %v2383 = vunpack.c.0.s8 %v2382
        %v2384 = vlaneseq
        %v2385 = vshrl.u32 %v2384, 7
        %v2386 = vsub.s32 %v2383, %v2385
        %v2387 = vrot.slane %v2371, %v2386
        %v2389 = vunpack.c.l.s4 1966171168
        %v2390 = vunpack.c.0.s8 %v2389
        %v2391 = vlaneseq
        %v2392 = vshrl.u32 %v2391, 7
        %v2393 = vsub.s32 %v2390, %v2392
        %v2394 = vrot.slane %v2372, %v2393
        %v2396 = vunpack.c.l.s4 1966171168
        %v2397 = vunpack.c.0.s8 %v2396
        %v2398 = vlaneseq
        %v2399 = vshrl.u32 %v2398, 7
        %v2400 = vsub.s32 %v2397, %v2399
        %v2401 = vrot.slane %v2373, %v2400
        %v2402 = vcombine.low %v2380, %v2387
        %v2403 = vcombine.low %v2394, %v2401
        %v2405 = vunpack.c.l.s4 1966171168
        %v2406 = vunpack.c.0.s8 %v2405
        %v2407 = vlaneseq
        %v2408 = vshrl.u32 %v2407, 7
        %v2409 = vsub.s32 %v2406, %v2408
        %v2410 = vrot.slane %v2402, %v2409
        %v2412 = vunpack.c.l.s4 1966171168
        %v2413 = vunpack.c.0.s8 %v2412
        %v2414 = vlaneseq
        %v2415 = vshrl.u32 %v2414, 7
        %v2416 = vsub.s32 %v2413, %v2415
        %v2417 = vrot.slane %v2403, %v2416
        %v2418 = vcombine.low %v2410, %v2417
        %v2419 = vcombine.low %v761, %v776
        %v2420 = vcombine.low %v783, %v784
        %v2421 = vcombine.low %v785, %v800
        %v2422 = vcombine.low %v822, %v829
        %v2424 = vunpack.c.l.s4 1966171168
        %v2425 = vunpack.c.0.s8 %v2424
        %v2426 = vlaneseq
        %v2427 = vshrl.u32 %v2426, 7
        %v2428 = vsub.s32 %v2425, %v2427
        %v2429 = vrot.slane %v2419, %v2428
        %v2431 = vunpack.c.l.s4 1966171168
        %v2432 = vunpack.c.0.s8 %v2431
        %v2433 = vlaneseq
        %v2434 = vshrl.u32 %v2433, 7
        %v2435 = vsub.s32 %v2432, %v2434
        %v2436 = vrot.slane %v2420, %v2435
        %v2438 = vunpack.c.l.s4 1966171168
        %v2439 = vunpack.c.0.s8 %v2438
        %v2440 = vlaneseq
        %v2441 = vshrl.u32 %v2440, 7
        %v2442 = vsub.s32 %v2439, %v2441
        %v2443 = vrot.slane %v2421, %v2442
        %v2445 = vunpack.c.l.s4 1966171168
        %v2446 = vunpack.c.0.s8 %v2445
        %v2447 = vlaneseq
        %v2448 = vshrl.u32 %v2447, 7
        %v2449 = vsub.s32 %v2446, %v2448
        %v2450 = vrot.slane %v2422, %v2449
        %v2451 = vcombine.low %v2429, %v2436
        %v2452 = vcombine.low %v2443, %v2450
        %v2454 = vunpack.c.l.s4 1966171168
        %v2455 = vunpack.c.0.s8 %v2454
        %v2456 = vlaneseq
        %v2457 = vshrl.u32 %v2456, 7
        %v2458 = vsub.s32 %v2455, %v2457
        %v2459 = vrot.slane %v2451, %v2458
        %v2461 = vunpack.c.l.s4 1966171168
        %v2462 = vunpack.c.0.s8 %v2461
        %v2463 = vlaneseq
        %v2464 = vshrl.u32 %v2463, 7
        %v2465 = vsub.s32 %v2462, %v2464
        %v2466 = vrot.slane %v2452, %v2465
        %v2467 = vcombine.low %v2459, %v2466
        %v2468 = vcombine.low %v830, %v831
        %v2469 = vcombine.low %v846, %v853
        %v2470 = vcombine.low %v854, %v855
        %v2471 = vcombine.low %v870, %v892
        %v2473 = vunpack.c.l.s4 1966171168
        %v2474 = vunpack.c.0.s8 %v2473
        %v2475 = vlaneseq
        %v2476 = vshrl.u32 %v2475, 7
        %v2477 = vsub.s32 %v2474, %v2476
        %v2478 = vrot.slane %v2468, %v2477
        %v2480 = vunpack.c.l.s4 1966171168
        %v2481 = vunpack.c.0.s8 %v2480
        %v2482 = vlaneseq
        %v2483 = vshrl.u32 %v2482, 7
        %v2484 = vsub.s32 %v2481, %v2483
        %v2485 = vrot.slane %v2469, %v2484
        %v2487 = vunpack.c.l.s4 1966171168
        %v2488 = vunpack.c.0.s8 %v2487
        %v2489 = vlaneseq
        %v2490 = vshrl.u32 %v2489, 7
        %v2491 = vsub.s32 %v2488, %v2490
        %v2492 = vrot.slane %v2470, %v2491
        %v2494 = vunpack.c.l.s4 1966171168
        %v2495 = vunpack.c.0.s8 %v2494
        %v2496 = vlaneseq
        %v2497 = vshrl.u32 %v2496, 7
        %v2498 = vsub.s32 %v2495, %v2497
        %v2499 = vrot.slane %v2471, %v2498
        %v2500 = vcombine.low %v2478, %v2485
        %v2501 = vcombine.low %v2492, %v2499
        %v2503 = vunpack.c.l.s4 1966171168
        %v2504 = vunpack.c.0.s8 %v2503
        %v2505 = vlaneseq
        %v2506 = vshrl.u32 %v2505, 7
        %v2507 = vsub.s32 %v2504, %v2506
        %v2508 = vrot.slane %v2500, %v2507
        %v2510 = vunpack.c.l.s4 1966171168
        %v2511 = vunpack.c.0.s8 %v2510
        %v2512 = vlaneseq
        %v2513 = vshrl.u32 %v2512, 7
        %v2514 = vsub.s32 %v2511, %v2513
        %v2515 = vrot.slane %v2501, %v2514
        %v2516 = vcombine.low %v2508, %v2515
        %v2517 = vcombine.low %v899, %v900
        %v2518 = vcombine.low %v901, %v916
        %v2519 = vcombine.low %v923, %v924
        %v2520 = vcombine.low %v925, %v940
        %v2522 = vunpack.c.l.s4 1966171168
        %v2523 = vunpack.c.0.s8 %v2522
        %v2524 = vlaneseq
        %v2525 = vshrl.u32 %v2524, 7
        %v2526 = vsub.s32 %v2523, %v2525
        %v2527 = vrot.slane %v2517, %v2526
        %v2529 = vunpack.c.l.s4 1966171168
        %v2530 = vunpack.c.0.s8 %v2529
        %v2531 = vlaneseq
        %v2532 = vshrl.u32 %v2531, 7
        %v2533 = vsub.s32 %v2530, %v2532
        %v2534 = vrot.slane %v2518, %v2533
        %v2536 = vunpack.c.l.s4 1966171168
        %v2537 = vunpack.c.0.s8 %v2536
        %v2538 = vlaneseq
        %v2539 = vshrl.u32 %v2538, 7
        %v2540 = vsub.s32 %v2537, %v2539
        %v2541 = vrot.slane %v2519, %v2540
        %v2543 = vunpack.c.l.s4 1966171168
        %v2544 = vunpack.c.0.s8 %v2543
        %v2545 = vlaneseq
        %v2546 = vshrl.u32 %v2545, 7
        %v2547 = vsub.s32 %v2544, %v2546
        %v2548 = vrot.slane %v2520, %v2547
        %v2549 = vcombine.low %v2527, %v2534
        %v2550 = vcombine.low %v2541, %v2548
        %v2552 = vunpack.c.l.s4 1966171168
        %v2553 = vunpack.c.0.s8 %v2552
        %v2554 = vlaneseq
        %v2555 = vshrl.u32 %v2554, 7
        %v2556 = vsub.s32 %v2553, %v2555
        %v2557 = vrot.slane %v2549, %v2556
        %v2559 = vunpack.c.l.s4 1966171168
        %v2560 = vunpack.c.0.s8 %v2559
        %v2561 = vlaneseq
        %v2562 = vshrl.u32 %v2561, 7
        %v2563 = vsub.s32 %v2560, %v2562
        %v2564 = vrot.slane %v2550, %v2563
        %v2565 = vcombine.low %v2557, %v2564
        %v2567 = vsel %vm1988, %v2173, 0
        %v2570 = vsel %vm1988, %v2222, 0
        %v2573 = vsel %vm1988, %v2271, 0
        %v2576 = vsel %vm1988, %v2320, 0
        %v2579 = vsel %vm1988, %v2369, 0
        %v2582 = vsel %vm1988, %v2418, 0
        %v2585 = vsel %vm1988, %v2467, 0
        %v2588 = vsel %vm1988, %v2516, 0
        %v2591 = vsel %vm1988, %v2565, 0
        %v2594 = vsel %vm2016, %v361, 0
        %2596 = vmatprep.subr.bf16.mxu0 0
        %2597 = vmatpush1.bf16.msra.mxu0 0
        %2598 = vmatprep.subr.bf16.mxu0 0
        %2599 = vmatpush1.bf16.msra.mxu0 0
        %2600 = vmatprep.subr.bf16.mxu0 0
        %2601 = vmatpush1.bf16.msra.mxu0 0
        %2602 = vmatprep.subr.bf16.mxu0 0
        %2603 = vmatpush1.bf16.msra.mxu0 0
        %2604 = vmatprep.subr.bf16.mxu0 0
        %2605 = vmatpush1.bf16.msra.mxu0 0
        %2606 = vmatprep.subr.bf16.mxu0 0
        %2607 = vmatpush1.bf16.msra.mxu0 0
        %2608 = vmatprep.subr.bf16.mxu0 0
        %2609 = vmatpush1.bf16.msra.mxu0 0
        %2610 = vmatprep.subr.bf16.mxu0 0
        %2611 = vmatpush1.bf16.msra.mxu0 %v2594
        %2612 = vmatprep.subr.bf16.mxu0 0
        %2613 = vmatpush2.bf16.msra.mxu0 0
        %2614 = vmatprep.subr.bf16.mxu0 0
        %2615 = vmatpush2.bf16.msra.mxu0 0
        %2616 = vmatprep.subr.bf16.mxu0 0
        %2617 = vmatpush2.bf16.msra.mxu0 0
        %2618 = vmatprep.subr.bf16.mxu0 0
        %2619 = vmatpush2.bf16.msra.mxu0 0
        %2620 = vmatprep.subr.bf16.mxu0 0
        %2621 = vmatpush2.bf16.msra.mxu0 0
        %2622 = vmatprep.subr.bf16.mxu0 0
        %2623 = vmatpush2.bf16.msra.mxu0 0
        %2624 = vmatprep.subr.bf16.mxu0 0
        %2625 = vmatpush2.bf16.msra.mxu0 0
        %2626 = vmatprep.subr.bf16.mxu0 0
        %2627 = vmatpush2.bf16.msra.mxu0 0
        %2628 = vmatprep.mubr.bf16.mxu0 0
        %2629 = vmatmul.mubr.bf16.gmra.mxu0 %v2567
        %v2630 = vpop.f32.mrf.mxu0
        %v2631 = vadd.f32 %v2055, %v2630
        %v2632 = vpop.f32.mrf.mxu0
        %v2633 = vpop.f32.mrf.mxu0
        %v2634 = vadd.f32 %v2058, %v2633
        %v2635 = vpop.f32.mrf.mxu0
        %2636 = vmatprep.mubr.bf16.mxu0 0
        %2637 = vmatmul.mubr.bf16.gmra.mxu0 %v2570
        %v2638 = vpop.f32.mrf.mxu0
        %v2639 = vadd.f32 %v2063, %v2638
        %v2640 = vpop.f32.mrf.mxu0
        %v2641 = vpop.f32.mrf.mxu0
        %v2642 = vadd.f32 %v2066, %v2641
        %v2643 = vpop.f32.mrf.mxu0
        %2644 = vmatprep.mubr.bf16.mxu0 0
        %2645 = vmatmul.mubr.bf16.gmra.mxu0 %v2573
        %v2646 = vpop.f32.mrf.mxu0
        %v2647 = vadd.f32 %v2071, %v2646
        %v2648 = vpop.f32.mrf.mxu0
        %v2649 = vpop.f32.mrf.mxu0
        %v2650 = vadd.f32 %v2074, %v2649
        %v2651 = vpop.f32.mrf.mxu0
        %2652 = vmatprep.mubr.bf16.mxu0 0
        %2653 = vmatmul.mubr.bf16.gmra.mxu0 %v2576
        %v2654 = vpop.f32.mrf.mxu0
        %v2655 = vadd.f32 %v2079, %v2654
        %v2656 = vpop.f32.mrf.mxu0
        %v2657 = vpop.f32.mrf.mxu0
        %v2658 = vadd.f32 %v2082, %v2657
        %v2659 = vpop.f32.mrf.mxu0
        %2660 = vmatprep.mubr.bf16.mxu0 0
        %2661 = vmatmul.mubr.bf16.gmra.mxu0 %v2579
        %v2662 = vpop.f32.mrf.mxu0
        %v2663 = vadd.f32 %v2087, %v2662
        %v2664 = vpop.f32.mrf.mxu0
        %v2665 = vpop.f32.mrf.mxu0
        %v2666 = vadd.f32 %v2090, %v2665
        %v2667 = vpop.f32.mrf.mxu0
        %2668 = vmatprep.mubr.bf16.mxu0 0
        %2669 = vmatmul.mubr.bf16.gmra.mxu0 %v2582
        %v2670 = vpop.f32.mrf.mxu0
        %v2671 = vadd.f32 %v2095, %v2670
        %v2672 = vpop.f32.mrf.mxu0
        %v2673 = vpop.f32.mrf.mxu0
        %v2674 = vadd.f32 %v2098, %v2673
        %v2675 = vpop.f32.mrf.mxu0
        %2676 = vmatprep.mubr.bf16.mxu0 0
        %2677 = vmatmul.mubr.bf16.gmra.mxu0 %v2585
        %v2678 = vpop.f32.mrf.mxu0
        %v2679 = vadd.f32 %v2103, %v2678
        %v2680 = vpop.f32.mrf.mxu0
        %v2681 = vpop.f32.mrf.mxu0
        %v2682 = vadd.f32 %v2106, %v2681
        %v2683 = vpop.f32.mrf.mxu0
        %2684 = vmatprep.mubr.bf16.mxu0 0
        %2685 = vmatmul.mubr.bf16.gmra.mxu0 %v2588
        %v2686 = vpop.f32.mrf.mxu0
        %v2687 = vadd.f32 %v2111, %v2686
        %v2688 = vpop.f32.mrf.mxu0
        %v2689 = vpop.f32.mrf.mxu0
        %v2690 = vadd.f32 %v2114, %v2689
        %v2691 = vpop.f32.mrf.mxu0
        %2692 = vmatprep.mubr.bf16.mxu0 0
        %2693 = vmatmul.mubr.bf16.gmra.mxu0 %v2591
        %v2694 = vpop.f32.mrf.mxu0
        %v2695 = vadd.f32 %v2119, %v2694
        %v2696 = vpop.f32.mrf.mxu0
        %v2697 = vpop.f32.mrf.mxu0
        %v2698 = vadd.f32 %v2122, %v2697
        %v2699 = vpop.f32.mrf.mxu0
        %2700 = vdwg.mxu0
        %v2719 = vcombine.high %v2631, %v2631
        %v2721 = vunpack.c.l.s4 1983009808
        %v2722 = vunpack.c.0.s8 %v2721
        %v2723 = vlaneseq
        %v2724 = vshrl.u32 %v2723, 7
        %v2725 = vsub.s32 %v2722, %v2724
        %v2726 = vrot.slane %v2631, %v2725
        %v2728 = vunpack.c.l.s4 1983009808
        %v2729 = vunpack.c.0.s8 %v2728
        %v2730 = vlaneseq
        %v2731 = vshrl.u32 %v2730, 7
        %v2732 = vsub.s32 %v2729, %v2731
        %v2733 = vrot.slane %v2719, %v2732
        %v2734 = vcombine.high %v2726, %v2726
        %v2735 = vcombine.high %v2733, %v2733
        %v2736 = vcombine.high %v2634, %v2634
        %v2738 = vunpack.c.l.s4 1983009808
        %v2739 = vunpack.c.0.s8 %v2738
        %v2740 = vlaneseq
        %v2741 = vshrl.u32 %v2740, 7
        %v2742 = vsub.s32 %v2739, %v2741
        %v2743 = vrot.slane %v2634, %v2742
        %v2745 = vunpack.c.l.s4 1983009808
        %v2746 = vunpack.c.0.s8 %v2745
        %v2747 = vlaneseq
        %v2748 = vshrl.u32 %v2747, 7
        %v2749 = vsub.s32 %v2746, %v2748
        %v2750 = vrot.slane %v2736, %v2749
        %v2751 = vcombine.high %v2743, %v2743
        %v2752 = vcombine.high %v2750, %v2750
        %v2753 = vcombine.high %v2639, %v2639
        %v2755 = vunpack.c.l.s4 1983009808
        %v2756 = vunpack.c.0.s8 %v2755
        %v2757 = vlaneseq
        %v2758 = vshrl.u32 %v2757, 7
        %v2759 = vsub.s32 %v2756, %v2758
        %v2760 = vrot.slane %v2639, %v2759
        %v2762 = vunpack.c.l.s4 1983009808
        %v2763 = vunpack.c.0.s8 %v2762
        %v2764 = vlaneseq
        %v2765 = vshrl.u32 %v2764, 7
        %v2766 = vsub.s32 %v2763, %v2765
        %v2767 = vrot.slane %v2753, %v2766
        %v2768 = vcombine.high %v2760, %v2760
        %v2769 = vcombine.high %v2767, %v2767
        %v2770 = vcombine.high %v2642, %v2642
        %v2772 = vunpack.c.l.s4 1983009808
        %v2773 = vunpack.c.0.s8 %v2772
        %v2774 = vlaneseq
        %v2775 = vshrl.u32 %v2774, 7
        %v2776 = vsub.s32 %v2773, %v2775
        %v2777 = vrot.slane %v2642, %v2776
        %v2779 = vunpack.c.l.s4 1983009808
        %v2780 = vunpack.c.0.s8 %v2779
        %v2781 = vlaneseq
        %v2782 = vshrl.u32 %v2781, 7
        %v2783 = vsub.s32 %v2780, %v2782
        %v2784 = vrot.slane %v2770, %v2783
        %v2785 = vcombine.high %v2777, %v2777
        %v2786 = vcombine.high %v2784, %v2784
        %v2787 = vcombine.high %v2647, %v2647
        %v2789 = vunpack.c.l.s4 1983009808
        %v2790 = vunpack.c.0.s8 %v2789
        %v2791 = vlaneseq
        %v2792 = vshrl.u32 %v2791, 7
        %v2793 = vsub.s32 %v2790, %v2792
        %v2794 = vrot.slane %v2647, %v2793
        %v2796 = vunpack.c.l.s4 1983009808
        %v2797 = vunpack.c.0.s8 %v2796
        %v2798 = vlaneseq
        %v2799 = vshrl.u32 %v2798, 7
        %v2800 = vsub.s32 %v2797, %v2799
        %v2801 = vrot.slane %v2787, %v2800
        %v2802 = vcombine.high %v2794, %v2794
        %v2803 = vcombine.high %v2801, %v2801
        %v2804 = vcombine.high %v2650, %v2650
        %v2806 = vunpack.c.l.s4 1983009808
        %v2807 = vunpack.c.0.s8 %v2806
        %v2808 = vlaneseq
        %v2809 = vshrl.u32 %v2808, 7
        %v2810 = vsub.s32 %v2807, %v2809
        %v2811 = vrot.slane %v2650, %v2810
        %v2813 = vunpack.c.l.s4 1983009808
        %v2814 = vunpack.c.0.s8 %v2813
        %v2815 = vlaneseq
        %v2816 = vshrl.u32 %v2815, 7
        %v2817 = vsub.s32 %v2814, %v2816
        %v2818 = vrot.slane %v2804, %v2817
        %v2819 = vcombine.high %v2811, %v2811
        %v2820 = vcombine.high %v2818, %v2818
        %v2821 = vcombine.high %v2655, %v2655
        %v2823 = vunpack.c.l.s4 1983009808
        %v2824 = vunpack.c.0.s8 %v2823
        %v2825 = vlaneseq
        %v2826 = vshrl.u32 %v2825, 7
        %v2827 = vsub.s32 %v2824, %v2826
        %v2828 = vrot.slane %v2655, %v2827
        %v2830 = vunpack.c.l.s4 1983009808
        %v2831 = vunpack.c.0.s8 %v2830
        %v2832 = vlaneseq
        %v2833 = vshrl.u32 %v2832, 7
        %v2834 = vsub.s32 %v2831, %v2833
        %v2835 = vrot.slane %v2821, %v2834
        %v2836 = vcombine.high %v2828, %v2828
        %v2837 = vcombine.high %v2835, %v2835
        %v2838 = vcombine.high %v2658, %v2658
        %v2840 = vunpack.c.l.s4 1983009808
        %v2841 = vunpack.c.0.s8 %v2840
        %v2842 = vlaneseq
        %v2843 = vshrl.u32 %v2842, 7
        %v2844 = vsub.s32 %v2841, %v2843
        %v2845 = vrot.slane %v2658, %v2844
        %v2847 = vunpack.c.l.s4 1983009808
        %v2848 = vunpack.c.0.s8 %v2847
        %v2849 = vlaneseq
        %v2850 = vshrl.u32 %v2849, 7
        %v2851 = vsub.s32 %v2848, %v2850
        %v2852 = vrot.slane %v2838, %v2851
        %v2853 = vcombine.high %v2845, %v2845
        %v2854 = vcombine.high %v2852, %v2852
        %v2855 = vcombine.high %v2663, %v2663
        %v2857 = vunpack.c.l.s4 1983009808
        %v2858 = vunpack.c.0.s8 %v2857
        %v2859 = vlaneseq
        %v2860 = vshrl.u32 %v2859, 7
        %v2861 = vsub.s32 %v2858, %v2860
        %v2862 = vrot.slane %v2663, %v2861
        %v2864 = vunpack.c.l.s4 1983009808
        %v2865 = vunpack.c.0.s8 %v2864
        %v2866 = vlaneseq
        %v2867 = vshrl.u32 %v2866, 7
        %v2868 = vsub.s32 %v2865, %v2867
        %v2869 = vrot.slane %v2855, %v2868
        %v2870 = vcombine.high %v2862, %v2862
        %v2871 = vcombine.high %v2869, %v2869
        %v2872 = vcombine.high %v2666, %v2666
        %v2874 = vunpack.c.l.s4 1983009808
        %v2875 = vunpack.c.0.s8 %v2874
        %v2876 = vlaneseq
        %v2877 = vshrl.u32 %v2876, 7
        %v2878 = vsub.s32 %v2875, %v2877
        %v2879 = vrot.slane %v2666, %v2878
        %v2881 = vunpack.c.l.s4 1983009808
        %v2882 = vunpack.c.0.s8 %v2881
        %v2883 = vlaneseq
        %v2884 = vshrl.u32 %v2883, 7
        %v2885 = vsub.s32 %v2882, %v2884
        %v2886 = vrot.slane %v2872, %v2885
        %v2887 = vcombine.high %v2879, %v2879
        %v2888 = vcombine.high %v2886, %v2886
        %v2889 = vcombine.high %v2671, %v2671
        %v2891 = vunpack.c.l.s4 1983009808
        %v2892 = vunpack.c.0.s8 %v2891
        %v2893 = vlaneseq
        %v2894 = vshrl.u32 %v2893, 7
        %v2895 = vsub.s32 %v2892, %v2894
        %v2896 = vrot.slane %v2671, %v2895
        %v2898 = vunpack.c.l.s4 1983009808
        %v2899 = vunpack.c.0.s8 %v2898
        %v2900 = vlaneseq
        %v2901 = vshrl.u32 %v2900, 7
        %v2902 = vsub.s32 %v2899, %v2901
        %v2903 = vrot.slane %v2889, %v2902
        %v2904 = vcombine.high %v2896, %v2896
        %v2905 = vcombine.high %v2903, %v2903
        %v2906 = vcombine.high %v2674, %v2674
        %v2908 = vunpack.c.l.s4 1983009808
        %v2909 = vunpack.c.0.s8 %v2908
        %v2910 = vlaneseq
        %v2911 = vshrl.u32 %v2910, 7
        %v2912 = vsub.s32 %v2909, %v2911
        %v2913 = vrot.slane %v2674, %v2912
        %v2915 = vunpack.c.l.s4 1983009808
        %v2916 = vunpack.c.0.s8 %v2915
        %v2917 = vlaneseq
        %v2918 = vshrl.u32 %v2917, 7
        %v2919 = vsub.s32 %v2916, %v2918
        %v2920 = vrot.slane %v2906, %v2919
        %v2921 = vcombine.high %v2913, %v2913
        %v2922 = vcombine.high %v2920, %v2920
        %v2923 = vcombine.high %v2679, %v2679
        %v2925 = vunpack.c.l.s4 1983009808
        %v2926 = vunpack.c.0.s8 %v2925
        %v2927 = vlaneseq
        %v2928 = vshrl.u32 %v2927, 7
        %v2929 = vsub.s32 %v2926, %v2928
        %v2930 = vrot.slane %v2679, %v2929
        %v2932 = vunpack.c.l.s4 1983009808
        %v2933 = vunpack.c.0.s8 %v2932
        %v2934 = vlaneseq
        %v2935 = vshrl.u32 %v2934, 7
        %v2936 = vsub.s32 %v2933, %v2935
        %v2937 = vrot.slane %v2923, %v2936
        %v2938 = vcombine.high %v2930, %v2930
        %v2939 = vcombine.high %v2937, %v2937
        %v2940 = vcombine.high %v2682, %v2682
        %v2942 = vunpack.c.l.s4 1983009808
        %v2943 = vunpack.c.0.s8 %v2942
        %v2944 = vlaneseq
        %v2945 = vshrl.u32 %v2944, 7
        %v2946 = vsub.s32 %v2943, %v2945
        %v2947 = vrot.slane %v2682, %v2946
        %v2949 = vunpack.c.l.s4 1983009808
        %v2950 = vunpack.c.0.s8 %v2949
        %v2951 = vlaneseq
        %v2952 = vshrl.u32 %v2951, 7
        %v2953 = vsub.s32 %v2950, %v2952
        %v2954 = vrot.slane %v2940, %v2953
        %v2955 = vcombine.high %v2947, %v2947
        %v2956 = vcombine.high %v2954, %v2954
        %v2957 = vcombine.high %v2687, %v2687
        %v2959 = vunpack.c.l.s4 1983009808
        %v2960 = vunpack.c.0.s8 %v2959
        %v2961 = vlaneseq
        %v2962 = vshrl.u32 %v2961, 7
        %v2963 = vsub.s32 %v2960, %v2962
        %v2964 = vrot.slane %v2687, %v2963
        %v2966 = vunpack.c.l.s4 1983009808
        %v2967 = vunpack.c.0.s8 %v2966
        %v2968 = vlaneseq
        %v2969 = vshrl.u32 %v2968, 7
        %v2970 = vsub.s32 %v2967, %v2969
        %v2971 = vrot.slane %v2957, %v2970
        %v2972 = vcombine.high %v2964, %v2964
        %v2973 = vcombine.high %v2971, %v2971
        %v2974 = vcombine.high %v2690, %v2690
        %v2976 = vunpack.c.l.s4 1983009808
        %v2977 = vunpack.c.0.s8 %v2976
        %v2978 = vlaneseq
        %v2979 = vshrl.u32 %v2978, 7
        %v2980 = vsub.s32 %v2977, %v2979
        %v2981 = vrot.slane %v2690, %v2980
        %v2983 = vunpack.c.l.s4 1983009808
        %v2984 = vunpack.c.0.s8 %v2983
        %v2985 = vlaneseq
        %v2986 = vshrl.u32 %v2985, 7
        %v2987 = vsub.s32 %v2984, %v2986
        %v2988 = vrot.slane %v2974, %v2987
        %v2989 = vcombine.high %v2981, %v2981
        %v2990 = vcombine.high %v2988, %v2988
        %v2991 = vcombine.high %v2695, %v2695
        %v2993 = vunpack.c.l.s4 1983009808
        %v2994 = vunpack.c.0.s8 %v2993
        %v2995 = vlaneseq
        %v2996 = vshrl.u32 %v2995, 7
        %v2997 = vsub.s32 %v2994, %v2996
        %v2998 = vrot.slane %v2695, %v2997
        %v3000 = vunpack.c.l.s4 1983009808
        %v3001 = vunpack.c.0.s8 %v3000
        %v3002 = vlaneseq
        %v3003 = vshrl.u32 %v3002, 7
        %v3004 = vsub.s32 %v3001, %v3003
        %v3005 = vrot.slane %v2991, %v3004
        %v3006 = vcombine.high %v2998, %v2998
        %v3007 = vcombine.high %v3005, %v3005
        %v3008 = vcombine.high %v2698, %v2698
        %v3010 = vunpack.c.l.s4 1983009808
        %v3011 = vunpack.c.0.s8 %v3010
        %v3012 = vlaneseq
        %v3013 = vshrl.u32 %v3012, 7
        %v3014 = vsub.s32 %v3011, %v3013
        %v3015 = vrot.slane %v2698, %v3014
        %v3017 = vunpack.c.l.s4 1983009808
        %v3018 = vunpack.c.0.s8 %v3017
        %v3019 = vlaneseq
        %v3020 = vshrl.u32 %v3019, 7
        %v3021 = vsub.s32 %v3018, %v3020
        %v3022 = vrot.slane %v3008, %v3021
        %v3023 = vcombine.high %v3015, %v3015
        %v3024 = vcombine.high %v3022, %v3022
        %s3097 = scalar_lea.vmem %s1, 4
        %v3098 = vld [vmem:[%s3097] sm:$0x3]
        %v3099 = vcombine.low %v409, %v410
        %v3100 = vcombine.low %v411, %v426
        %v3101 = vcombine.low %v433, %v434
        %v3102 = vcombine.low %v435, %v450
        %v3104 = vunpack.c.l.s4 1966171168
        %v3105 = vunpack.c.0.s8 %v3104
        %v3106 = vlaneseq
        %v3107 = vshrl.u32 %v3106, 7
        %v3108 = vsub.s32 %v3105, %v3107
        %v3109 = vrot.slane %v3099, %v3108
        %v3111 = vunpack.c.l.s4 1966171168
        %v3112 = vunpack.c.0.s8 %v3111
        %v3113 = vlaneseq
        %v3114 = vshrl.u32 %v3113, 7
        %v3115 = vsub.s32 %v3112, %v3114
        %v3116 = vrot.slane %v3100, %v3115
        %v3118 = vunpack.c.l.s4 1966171168
        %v3119 = vunpack.c.0.s8 %v3118
        %v3120 = vlaneseq
        %v3121 = vshrl.u32 %v3120, 7
        %v3122 = vsub.s32 %v3119, %v3121
        %v3123 = vrot.slane %v3101, %v3122
        %v3125 = vunpack.c.l.s4 1966171168
        %v3126 = vunpack.c.0.s8 %v3125
        %v3127 = vlaneseq
        %v3128 = vshrl.u32 %v3127, 7
        %v3129 = vsub.s32 %v3126, %v3128
        %v3130 = vrot.slane %v3102, %v3129
        %v3131 = vcombine.low %v3109, %v3116
        %v3132 = vcombine.low %v3123, %v3130
        %v3134 = vunpack.c.l.s4 1966171168
        %v3135 = vunpack.c.0.s8 %v3134
        %v3136 = vlaneseq
        %v3137 = vshrl.u32 %v3136, 7
        %v3138 = vsub.s32 %v3135, %v3137
        %v3139 = vrot.slane %v3131, %v3138
        %v3141 = vunpack.c.l.s4 1966171168
        %v3142 = vunpack.c.0.s8 %v3141
        %v3143 = vlaneseq
        %v3144 = vshrl.u32 %v3143, 7
        %v3145 = vsub.s32 %v3142, %v3144
        %v3146 = vrot.slane %v3132, %v3145
        %v3147 = vcombine.low %v3139, %v3146
        %v3148 = vcombine.low %v457, %v479
        %v3149 = vcombine.low %v480, %v481
        %v3150 = vcombine.low %v496, %v503
        %v3151 = vcombine.low %v504, %v505
        %v3153 = vunpack.c.l.s4 1966171168
        %v3154 = vunpack.c.0.s8 %v3153
        %v3155 = vlaneseq
        %v3156 = vshrl.u32 %v3155, 7
        %v3157 = vsub.s32 %v3154, %v3156
        %v3158 = vrot.slane %v3148, %v3157
        %v3160 = vunpack.c.l.s4 1966171168
        %v3161 = vunpack.c.0.s8 %v3160
        %v3162 = vlaneseq
        %v3163 = vshrl.u32 %v3162, 7
        %v3164 = vsub.s32 %v3161, %v3163
        %v3165 = vrot.slane %v3149, %v3164
        %v3167 = vunpack.c.l.s4 1966171168
        %v3168 = vunpack.c.0.s8 %v3167
        %v3169 = vlaneseq
        %v3170 = vshrl.u32 %v3169, 7
        %v3171 = vsub.s32 %v3168, %v3170
        %v3172 = vrot.slane %v3150, %v3171
        %v3174 = vunpack.c.l.s4 1966171168
        %v3175 = vunpack.c.0.s8 %v3174
        %v3176 = vlaneseq
        %v3177 = vshrl.u32 %v3176, 7
        %v3178 = vsub.s32 %v3175, %v3177
        %v3179 = vrot.slane %v3151, %v3178
        %v3180 = vcombine.low %v3158, %v3165
        %v3181 = vcombine.low %v3172, %v3179
        %v3183 = vunpack.c.l.s4 1966171168
        %v3184 = vunpack.c.0.s8 %v3183
        %v3185 = vlaneseq
        %v3186 = vshrl.u32 %v3185, 7
        %v3187 = vsub.s32 %v3184, %v3186
        %v3188 = vrot.slane %v3180, %v3187
        %v3190 = vunpack.c.l.s4 1966171168
        %v3191 = vunpack.c.0.s8 %v3190
        %v3192 = vlaneseq
        %v3193 = vshrl.u32 %v3192, 7
        %v3194 = vsub.s32 %v3191, %v3193
        %v3195 = vrot.slane %v3181, %v3194
        %v3196 = vcombine.low %v3188, %v3195
        %v3197 = vcombine.low %v520, %v527
        %v3198 = vcombine.low %v549, %v550
        %v3199 = vcombine.low %v551, %v566
        %v3200 = vcombine.low %v573, %v574
        %v3202 = vunpack.c.l.s4 1966171168
        %v3203 = vunpack.c.0.s8 %v3202
        %v3204 = vlaneseq
        %v3205 = vshrl.u32 %v3204, 7
        %v3206 = vsub.s32 %v3203, %v3205
        %v3207 = vrot.slane %v3197, %v3206
        %v3209 = vunpack.c.l.s4 1966171168
        %v3210 = vunpack.c.0.s8 %v3209
        %v3211 = vlaneseq
        %v3212 = vshrl.u32 %v3211, 7
        %v3213 = vsub.s32 %v3210, %v3212
        %v3214 = vrot.slane %v3198, %v3213
        %v3216 = vunpack.c.l.s4 1966171168
        %v3217 = vunpack.c.0.s8 %v3216
        %v3218 = vlaneseq
        %v3219 = vshrl.u32 %v3218, 7
        %v3220 = vsub.s32 %v3217, %v3219
        %v3221 = vrot.slane %v3199, %v3220
        %v3223 = vunpack.c.l.s4 1966171168
        %v3224 = vunpack.c.0.s8 %v3223
        %v3225 = vlaneseq
        %v3226 = vshrl.u32 %v3225, 7
        %v3227 = vsub.s32 %v3224, %v3226
        %v3228 = vrot.slane %v3200, %v3227
        %v3229 = vcombine.low %v3207, %v3214
        %v3230 = vcombine.low %v3221, %v3228
        %v3232 = vunpack.c.l.s4 1966171168
        %v3233 = vunpack.c.0.s8 %v3232
        %v3234 = vlaneseq
        %v3235 = vshrl.u32 %v3234, 7
        %v3236 = vsub.s32 %v3233, %v3235
        %v3237 = vrot.slane %v3229, %v3236
        %v3239 = vunpack.c.l.s4 1966171168
        %v3240 = vunpack.c.0.s8 %v3239
        %v3241 = vlaneseq
        %v3242 = vshrl.u32 %v3241, 7
        %v3243 = vsub.s32 %v3240, %v3242
        %v3244 = vrot.slane %v3230, %v3243
        %v3245 = vcombine.low %v3237, %v3244
        %v3246 = vcombine.low %v575, %v590
        %v3247 = vcombine.low %v597, %v619
        %v3248 = vcombine.low %v620, %v621
        %v3249 = vcombine.low %v636, %v643
        %v3251 = vunpack.c.l.s4 1966171168
        %v3252 = vunpack.c.0.s8 %v3251
        %v3253 = vlaneseq
        %v3254 = vshrl.u32 %v3253, 7
        %v3255 = vsub.s32 %v3252, %v3254
        %v3256 = vrot.slane %v3246, %v3255
        %v3258 = vunpack.c.l.s4 1966171168
        %v3259 = vunpack.c.0.s8 %v3258
        %v3260 = vlaneseq
        %v3261 = vshrl.u32 %v3260, 7
        %v3262 = vsub.s32 %v3259, %v3261
        %v3263 = vrot.slane %v3247, %v3262
        %v3265 = vunpack.c.l.s4 1966171168
        %v3266 = vunpack.c.0.s8 %v3265
        %v3267 = vlaneseq
        %v3268 = vshrl.u32 %v3267, 7
        %v3269 = vsub.s32 %v3266, %v3268
        %v3270 = vrot.slane %v3248, %v3269
        %v3272 = vunpack.c.l.s4 1966171168
        %v3273 = vunpack.c.0.s8 %v3272
        %v3274 = vlaneseq
        %v3275 = vshrl.u32 %v3274, 7
        %v3276 = vsub.s32 %v3273, %v3275
        %v3277 = vrot.slane %v3249, %v3276
        %v3278 = vcombine.low %v3256, %v3263
        %v3279 = vcombine.low %v3270, %v3277
        %v3281 = vunpack.c.l.s4 1966171168
        %v3282 = vunpack.c.0.s8 %v3281
        %v3283 = vlaneseq
        %v3284 = vshrl.u32 %v3283, 7
        %v3285 = vsub.s32 %v3282, %v3284
        %v3286 = vrot.slane %v3278, %v3285
        %v3288 = vunpack.c.l.s4 1966171168
        %v3289 = vunpack.c.0.s8 %v3288
        %v3290 = vlaneseq
        %v3291 = vshrl.u32 %v3290, 7
        %v3292 = vsub.s32 %v3289, %v3291
        %v3293 = vrot.slane %v3279, %v3292
        %v3294 = vcombine.low %v3286, %v3293
        %v3295 = vcombine.low %v644, %v645
        %v3296 = vcombine.low %v660, %v667
        %v3297 = vcombine.low %v689, %v690
        %v3298 = vcombine.low %v691, %v706
        %v3300 = vunpack.c.l.s4 1966171168
        %v3301 = vunpack.c.0.s8 %v3300
        %v3302 = vlaneseq
        %v3303 = vshrl.u32 %v3302, 7
        %v3304 = vsub.s32 %v3301, %v3303
        %v3305 = vrot.slane %v3295, %v3304
        %v3307 = vunpack.c.l.s4 1966171168
        %v3308 = vunpack.c.0.s8 %v3307
        %v3309 = vlaneseq
        %v3310 = vshrl.u32 %v3309, 7
        %v3311 = vsub.s32 %v3308, %v3310
        %v3312 = vrot.slane %v3296, %v3311
        %v3314 = vunpack.c.l.s4 1966171168
        %v3315 = vunpack.c.0.s8 %v3314
        %v3316 = vlaneseq
        %v3317 = vshrl.u32 %v3316, 7
        %v3318 = vsub.s32 %v3315, %v3317
        %v3319 = vrot.slane %v3297, %v3318
        %v3321 = vunpack.c.l.s4 1966171168
        %v3322 = vunpack.c.0.s8 %v3321
        %v3323 = vlaneseq
        %v3324 = vshrl.u32 %v3323, 7
        %v3325 = vsub.s32 %v3322, %v3324
        %v3326 = vrot.slane %v3298, %v3325
        %v3327 = vcombine.low %v3305, %v3312
        %v3328 = vcombine.low %v3319, %v3326
        %v3330 = vunpack.c.l.s4 1966171168
        %v3331 = vunpack.c.0.s8 %v3330
        %v3332 = vlaneseq
        %v3333 = vshrl.u32 %v3332, 7
        %v3334 = vsub.s32 %v3331, %v3333
        %v3335 = vrot.slane %v3327, %v3334
        %v3337 = vunpack.c.l.s4 1966171168
        %v3338 = vunpack.c.0.s8 %v3337
        %v3339 = vlaneseq
        %v3340 = vshrl.u32 %v3339, 7
        %v3341 = vsub.s32 %v3338, %v3340
        %v3342 = vrot.slane %v3328, %v3341
        %v3343 = vcombine.low %v3335, %v3342
        %v3344 = vcombine.low %v713, %v714
        %v3345 = vcombine.low %v715, %v730
        %v3346 = vcombine.low %v737, %v759
        %v3347 = vcombine.low %v760, %v761
        %v3349 = vunpack.c.l.s4 1966171168
        %v3350 = vunpack.c.0.s8 %v3349
        %v3351 = vlaneseq
        %v3352 = vshrl.u32 %v3351, 7
        %v3353 = vsub.s32 %v3350, %v3352
        %v3354 = vrot.slane %v3344, %v3353
        %v3356 = vunpack.c.l.s4 1966171168
        %v3357 = vunpack.c.0.s8 %v3356
        %v3358 = vlaneseq
        %v3359 = vshrl.u32 %v3358, 7
        %v3360 = vsub.s32 %v3357, %v3359
        %v3361 = vrot.slane %v3345, %v3360
        %v3363 = vunpack.c.l.s4 1966171168
        %v3364 = vunpack.c.0.s8 %v3363
        %v3365 = vlaneseq
        %v3366 = vshrl.u32 %v3365, 7
        %v3367 = vsub.s32 %v3364, %v3366
        %v3368 = vrot.slane %v3346, %v3367
        %v3370 = vunpack.c.l.s4 1966171168
        %v3371 = vunpack.c.0.s8 %v3370
        %v3372 = vlaneseq
        %v3373 = vshrl.u32 %v3372, 7
        %v3374 = vsub.s32 %v3371, %v3373
        %v3375 = vrot.slane %v3347, %v3374
        %v3376 = vcombine.low %v3354, %v3361
        %v3377 = vcombine.low %v3368, %v3375
        %v3379 = vunpack.c.l.s4 1966171168
        %v3380 = vunpack.c.0.s8 %v3379
        %v3381 = vlaneseq
        %v3382 = vshrl.u32 %v3381, 7
        %v3383 = vsub.s32 %v3380, %v3382
        %v3384 = vrot.slane %v3376, %v3383
        %v3386 = vunpack.c.l.s4 1966171168
        %v3387 = vunpack.c.0.s8 %v3386
        %v3388 = vlaneseq
        %v3389 = vshrl.u32 %v3388, 7
        %v3390 = vsub.s32 %v3387, %v3389
        %v3391 = vrot.slane %v3377, %v3390
        %v3392 = vcombine.low %v3384, %v3391
        %v3393 = vcombine.low %v776, %v783
        %v3394 = vcombine.low %v784, %v785
        %v3395 = vcombine.low %v800, %v807
        %v3396 = vcombine.low %v829, %v830
        %v3398 = vunpack.c.l.s4 1966171168
        %v3399 = vunpack.c.0.s8 %v3398
        %v3400 = vlaneseq
        %v3401 = vshrl.u32 %v3400, 7
        %v3402 = vsub.s32 %v3399, %v3401
        %v3403 = vrot.slane %v3393, %v3402
        %v3405 = vunpack.c.l.s4 1966171168
        %v3406 = vunpack.c.0.s8 %v3405
        %v3407 = vlaneseq
        %v3408 = vshrl.u32 %v3407, 7
        %v3409 = vsub.s32 %v3406, %v3408
        %v3410 = vrot.slane %v3394, %v3409
        %v3412 = vunpack.c.l.s4 1966171168
        %v3413 = vunpack.c.0.s8 %v3412
        %v3414 = vlaneseq
        %v3415 = vshrl.u32 %v3414, 7
        %v3416 = vsub.s32 %v3413, %v3415
        %v3417 = vrot.slane %v3395, %v3416
        %v3419 = vunpack.c.l.s4 1966171168
        %v3420 = vunpack.c.0.s8 %v3419
        %v3421 = vlaneseq
        %v3422 = vshrl.u32 %v3421, 7
        %v3423 = vsub.s32 %v3420, %v3422
        %v3424 = vrot.slane %v3396, %v3423
        %v3425 = vcombine.low %v3403, %v3410
        %v3426 = vcombine.low %v3417, %v3424
        %v3428 = vunpack.c.l.s4 1966171168
        %v3429 = vunpack.c.0.s8 %v3428
        %v3430 = vlaneseq
        %v3431 = vshrl.u32 %v3430, 7
        %v3432 = vsub.s32 %v3429, %v3431
        %v3433 = vrot.slane %v3425, %v3432
        %v3435 = vunpack.c.l.s4 1966171168
        %v3436 = vunpack.c.0.s8 %v3435
        %v3437 = vlaneseq
        %v3438 = vshrl.u32 %v3437, 7
        %v3439 = vsub.s32 %v3436, %v3438
        %v3440 = vrot.slane %v3426, %v3439
        %v3441 = vcombine.low %v3433, %v3440
        %v3442 = vcombine.low %v831, %v846
        %v3443 = vcombine.low %v853, %v854
        %v3444 = vcombine.low %v855, %v870
        %v3445 = vcombine.low %v877, %v899
        %v3447 = vunpack.c.l.s4 1966171168
        %v3448 = vunpack.c.0.s8 %v3447
        %v3449 = vlaneseq
        %v3450 = vshrl.u32 %v3449, 7
        %v3451 = vsub.s32 %v3448, %v3450
        %v3452 = vrot.slane %v3442, %v3451
        %v3454 = vunpack.c.l.s4 1966171168
        %v3455 = vunpack.c.0.s8 %v3454
        %v3456 = vlaneseq
        %v3457 = vshrl.u32 %v3456, 7
        %v3458 = vsub.s32 %v3455, %v3457
        %v3459 = vrot.slane %v3443, %v3458
        %v3461 = vunpack.c.l.s4 1966171168
        %v3462 = vunpack.c.0.s8 %v3461
        %v3463 = vlaneseq
        %v3464 = vshrl.u32 %v3463, 7
        %v3465 = vsub.s32 %v3462, %v3464
        %v3466 = vrot.slane %v3444, %v3465
        %v3468 = vunpack.c.l.s4 1966171168
        %v3469 = vunpack.c.0.s8 %v3468
        %v3470 = vlaneseq
        %v3471 = vshrl.u32 %v3470, 7
        %v3472 = vsub.s32 %v3469, %v3471
        %v3473 = vrot.slane %v3445, %v3472
        %v3474 = vcombine.low %v3452, %v3459
        %v3475 = vcombine.low %v3466, %v3473
        %v3477 = vunpack.c.l.s4 1966171168
        %v3478 = vunpack.c.0.s8 %v3477
        %v3479 = vlaneseq
        %v3480 = vshrl.u32 %v3479, 7
        %v3481 = vsub.s32 %v3478, %v3480
        %v3482 = vrot.slane %v3474, %v3481
        %v3484 = vunpack.c.l.s4 1966171168
        %v3485 = vunpack.c.0.s8 %v3484
        %v3486 = vlaneseq
        %v3487 = vshrl.u32 %v3486, 7
        %v3488 = vsub.s32 %v3485, %v3487
        %v3489 = vrot.slane %v3475, %v3488
        %v3490 = vcombine.low %v3482, %v3489
        %v3491 = vcombine.low %v900, %v901
        %v3492 = vcombine.low %v916, %v923
        %v3493 = vcombine.low %v924, %v925
        %v3494 = vcombine.low %v940, %v947
        %v3496 = vunpack.c.l.s4 1966171168
        %v3497 = vunpack.c.0.s8 %v3496
        %v3498 = vlaneseq
        %v3499 = vshrl.u32 %v3498, 7
        %v3500 = vsub.s32 %v3497, %v3499
        %v3501 = vrot.slane %v3491, %v3500
        %v3503 = vunpack.c.l.s4 1966171168
        %v3504 = vunpack.c.0.s8 %v3503
        %v3505 = vlaneseq
        %v3506 = vshrl.u32 %v3505, 7
        %v3507 = vsub.s32 %v3504, %v3506
        %v3508 = vrot.slane %v3492, %v3507
        %v3510 = vunpack.c.l.s4 1966171168
        %v3511 = vunpack.c.0.s8 %v3510
        %v3512 = vlaneseq
        %v3513 = vshrl.u32 %v3512, 7
        %v3514 = vsub.s32 %v3511, %v3513
        %v3515 = vrot.slane %v3493, %v3514
        %v3517 = vunpack.c.l.s4 1966171168
        %v3518 = vunpack.c.0.s8 %v3517
        %v3519 = vlaneseq
        %v3520 = vshrl.u32 %v3519, 7
        %v3521 = vsub.s32 %v3518, %v3520
        %v3522 = vrot.slane %v3494, %v3521
        %v3523 = vcombine.low %v3501, %v3508
        %v3524 = vcombine.low %v3515, %v3522
        %v3526 = vunpack.c.l.s4 1966171168
        %v3527 = vunpack.c.0.s8 %v3526
        %v3528 = vlaneseq
        %v3529 = vshrl.u32 %v3528, 7
        %v3530 = vsub.s32 %v3527, %v3529
        %v3531 = vrot.slane %v3523, %v3530
        %v3533 = vunpack.c.l.s4 1966171168
        %v3534 = vunpack.c.0.s8 %v3533
        %v3535 = vlaneseq
        %v3536 = vshrl.u32 %v3535, 7
        %v3537 = vsub.s32 %v3534, %v3536
        %v3538 = vrot.slane %v3524, %v3537
        %v3539 = vcombine.low %v3531, %v3538
        %v3541 = vsel %vm1988, %v3147, 0
        %v3544 = vsel %vm1988, %v3196, 0
        %v3547 = vsel %vm1988, %v3245, 0
        %v3550 = vsel %vm1988, %v3294, 0
        %v3553 = vsel %vm1988, %v3343, 0
        %v3556 = vsel %vm1988, %v3392, 0
        %v3559 = vsel %vm1988, %v3441, 0
        %v3562 = vsel %vm1988, %v3490, 0
        %v3565 = vsel %vm1988, %v3539, 0
        %v3568 = vsel %vm2016, %v3098, 0
        %3570 = vmatprep.subr.bf16.mxu0 0
        %3571 = vmatpush1.bf16.msra.mxu0 0
        %3572 = vmatprep.subr.bf16.mxu0 0
        %3573 = vmatpush1.bf16.msra.mxu0 0
        %3574 = vmatprep.subr.bf16.mxu0 0
        %3575 = vmatpush1.bf16.msra.mxu0 0
        %3576 = vmatprep.subr.bf16.mxu0 0
        %3577 = vmatpush1.bf16.msra.mxu0 0
        %3578 = vmatprep.subr.bf16.mxu0 0
        %3579 = vmatpush1.bf16.msra.mxu0 0
        %3580 = vmatprep.subr.bf16.mxu0 0
        %3581 = vmatpush1.bf16.msra.mxu0 0
        %3582 = vmatprep.subr.bf16.mxu0 0
        %3583 = vmatpush1.bf16.msra.mxu0 0
        %3584 = vmatprep.subr.bf16.mxu0 0
        %3585 = vmatpush1.bf16.msra.mxu0 %v3568
        %3586 = vmatprep.subr.bf16.mxu0 0
        %3587 = vmatpush2.bf16.msra.mxu0 0
        %3588 = vmatprep.subr.bf16.mxu0 0
        %3589 = vmatpush2.bf16.msra.mxu0 0
        %3590 = vmatprep.subr.bf16.mxu0 0
        %3591 = vmatpush2.bf16.msra.mxu0 0
        %3592 = vmatprep.subr.bf16.mxu0 0
        %3593 = vmatpush2.bf16.msra.mxu0 0
        %3594 = vmatprep.subr.bf16.mxu0 0
        %3595 = vmatpush2.bf16.msra.mxu0 0
        %3596 = vmatprep.subr.bf16.mxu0 0
        %3597 = vmatpush2.bf16.msra.mxu0 0
        %3598 = vmatprep.subr.bf16.mxu0 0
        %3599 = vmatpush2.bf16.msra.mxu0 0
        %3600 = vmatprep.subr.bf16.mxu0 0
        %3601 = vmatpush2.bf16.msra.mxu0 0
        %3602 = vmatprep.mubr.bf16.mxu0 0
        %3603 = vmatmul.mubr.bf16.gmra.mxu0 %v3541
        %v3604 = vpop.f32.mrf.mxu0
        %v3605 = vadd.f32 0.0, %v3604
        %v3606 = vpop.f32.mrf.mxu0
        %v3607 = vpop.f32.mrf.mxu0
        %v3608 = vadd.f32 0.0, %v3607
        %v3609 = vpop.f32.mrf.mxu0
        %3610 = vmatprep.mubr.bf16.mxu0 0
        %3611 = vmatmul.mubr.bf16.gmra.mxu0 %v3544
        %v3612 = vpop.f32.mrf.mxu0
        %v3613 = vadd.f32 0.0, %v3612
        %v3614 = vpop.f32.mrf.mxu0
        %v3615 = vpop.f32.mrf.mxu0
        %v3616 = vadd.f32 0.0, %v3615
        %v3617 = vpop.f32.mrf.mxu0
        %3618 = vmatprep.mubr.bf16.mxu0 0
        %3619 = vmatmul.mubr.bf16.gmra.mxu0 %v3547
        %v3620 = vpop.f32.mrf.mxu0
        %v3621 = vadd.f32 0.0, %v3620
        %v3622 = vpop.f32.mrf.mxu0
        %v3623 = vpop.f32.mrf.mxu0
        %v3624 = vadd.f32 0.0, %v3623
        %v3625 = vpop.f32.mrf.mxu0
        %3626 = vmatprep.mubr.bf16.mxu0 0
        %3627 = vmatmul.mubr.bf16.gmra.mxu0 %v3550
        %v3628 = vpop.f32.mrf.mxu0
        %v3629 = vadd.f32 0.0, %v3628
        %v3630 = vpop.f32.mrf.mxu0
        %v3631 = vpop.f32.mrf.mxu0
        %v3632 = vadd.f32 0.0, %v3631
        %v3633 = vpop.f32.mrf.mxu0
        %3634 = vmatprep.mubr.bf16.mxu0 0
        %3635 = vmatmul.mubr.bf16.gmra.mxu0 %v3553
        %v3636 = vpop.f32.mrf.mxu0
        %v3637 = vadd.f32 0.0, %v3636
        %v3638 = vpop.f32.mrf.mxu0
        %v3639 = vpop.f32.mrf.mxu0
        %v3640 = vadd.f32 0.0, %v3639
        %v3641 = vpop.f32.mrf.mxu0
        %3642 = vmatprep.mubr.bf16.mxu0 0
        %3643 = vmatmul.mubr.bf16.gmra.mxu0 %v3556
        %v3644 = vpop.f32.mrf.mxu0
        %v3645 = vadd.f32 0.0, %v3644
        %v3646 = vpop.f32.mrf.mxu0
        %v3647 = vpop.f32.mrf.mxu0
        %v3648 = vadd.f32 0.0, %v3647
        %v3649 = vpop.f32.mrf.mxu0
        %3650 = vmatprep.mubr.bf16.mxu0 0
        %3651 = vmatmul.mubr.bf16.gmra.mxu0 %v3559
        %v3652 = vpop.f32.mrf.mxu0
        %v3653 = vadd.f32 0.0, %v3652
        %v3654 = vpop.f32.mrf.mxu0
        %v3655 = vpop.f32.mrf.mxu0
        %v3656 = vadd.f32 0.0, %v3655
        %v3657 = vpop.f32.mrf.mxu0
        %3658 = vmatprep.mubr.bf16.mxu0 0
        %3659 = vmatmul.mubr.bf16.gmra.mxu0 %v3562
        %v3660 = vpop.f32.mrf.mxu0
        %v3661 = vadd.f32 0.0, %v3660
        %v3662 = vpop.f32.mrf.mxu0
        %v3663 = vpop.f32.mrf.mxu0
        %v3664 = vadd.f32 0.0, %v3663
        %v3665 = vpop.f32.mrf.mxu0
        %3666 = vmatprep.mubr.bf16.mxu0 0
        %3667 = vmatmul.mubr.bf16.gmra.mxu0 %v3565
        %v3668 = vpop.f32.mrf.mxu0
        %v3669 = vadd.f32 0.0, %v3668
        %v3670 = vpop.f32.mrf.mxu0
        %v3671 = vpop.f32.mrf.mxu0
        %v3672 = vadd.f32 0.0, %v3671
        %v3673 = vpop.f32.mrf.mxu0
        %3674 = vdwg.mxu0
        %v3693 = vcombine.high %v3605, %v3605
        %v3695 = vunpack.c.l.s4 1983009808
        %v3696 = vunpack.c.0.s8 %v3695
        %v3697 = vlaneseq
        %v3698 = vshrl.u32 %v3697, 7
        %v3699 = vsub.s32 %v3696, %v3698
        %v3700 = vrot.slane %v3605, %v3699
        %v3702 = vunpack.c.l.s4 1983009808
        %v3703 = vunpack.c.0.s8 %v3702
        %v3704 = vlaneseq
        %v3705 = vshrl.u32 %v3704, 7
        %v3706 = vsub.s32 %v3703, %v3705
        %v3707 = vrot.slane %v3693, %v3706
        %v3708 = vcombine.high %v3700, %v3700
        %v3709 = vcombine.high %v3707, %v3707
        %v3710 = vcombine.high %v3608, %v3608
        %v3712 = vunpack.c.l.s4 1983009808
        %v3713 = vunpack.c.0.s8 %v3712
        %v3714 = vlaneseq
        %v3715 = vshrl.u32 %v3714, 7
        %v3716 = vsub.s32 %v3713, %v3715
        %v3717 = vrot.slane %v3608, %v3716
        %v3719 = vunpack.c.l.s4 1983009808
        %v3720 = vunpack.c.0.s8 %v3719
        %v3721 = vlaneseq
        %v3722 = vshrl.u32 %v3721, 7
        %v3723 = vsub.s32 %v3720, %v3722
        %v3724 = vrot.slane %v3710, %v3723
        %v3725 = vcombine.high %v3717, %v3717
        %v3726 = vcombine.high %v3724, %v3724
        %v3727 = vcombine.high %v3613, %v3613
        %v3729 = vunpack.c.l.s4 1983009808
        %v3730 = vunpack.c.0.s8 %v3729
        %v3731 = vlaneseq
        %v3732 = vshrl.u32 %v3731, 7
        %v3733 = vsub.s32 %v3730, %v3732
        %v3734 = vrot.slane %v3613, %v3733
        %v3736 = vunpack.c.l.s4 1983009808
        %v3737 = vunpack.c.0.s8 %v3736
        %v3738 = vlaneseq
        %v3739 = vshrl.u32 %v3738, 7
        %v3740 = vsub.s32 %v3737, %v3739
        %v3741 = vrot.slane %v3727, %v3740
        %v3742 = vcombine.high %v3734, %v3734
        %v3743 = vcombine.high %v3741, %v3741
        %v3744 = vcombine.high %v3616, %v3616
        %v3746 = vunpack.c.l.s4 1983009808
        %v3747 = vunpack.c.0.s8 %v3746
        %v3748 = vlaneseq
        %v3749 = vshrl.u32 %v3748, 7
        %v3750 = vsub.s32 %v3747, %v3749
        %v3751 = vrot.slane %v3616, %v3750
        %v3753 = vunpack.c.l.s4 1983009808
        %v3754 = vunpack.c.0.s8 %v3753
        %v3755 = vlaneseq
        %v3756 = vshrl.u32 %v3755, 7
        %v3757 = vsub.s32 %v3754, %v3756
        %v3758 = vrot.slane %v3744, %v3757
        %v3759 = vcombine.high %v3751, %v3751
        %v3760 = vcombine.high %v3758, %v3758
        %v3761 = vcombine.high %v3621, %v3621
        %v3763 = vunpack.c.l.s4 1983009808
        %v3764 = vunpack.c.0.s8 %v3763
        %v3765 = vlaneseq
        %v3766 = vshrl.u32 %v3765, 7
        %v3767 = vsub.s32 %v3764, %v3766
        %v3768 = vrot.slane %v3621, %v3767
        %v3770 = vunpack.c.l.s4 1983009808
        %v3771 = vunpack.c.0.s8 %v3770
        %v3772 = vlaneseq
        %v3773 = vshrl.u32 %v3772, 7
        %v3774 = vsub.s32 %v3771, %v3773
        %v3775 = vrot.slane %v3761, %v3774
        %v3776 = vcombine.high %v3768, %v3768
        %v3777 = vcombine.high %v3775, %v3775
        %v3778 = vcombine.high %v3624, %v3624
        %v3780 = vunpack.c.l.s4 1983009808
        %v3781 = vunpack.c.0.s8 %v3780
        %v3782 = vlaneseq
        %v3783 = vshrl.u32 %v3782, 7
        %v3784 = vsub.s32 %v3781, %v3783
        %v3785 = vrot.slane %v3624, %v3784
        %v3787 = vunpack.c.l.s4 1983009808
        %v3788 = vunpack.c.0.s8 %v3787
        %v3789 = vlaneseq
        %v3790 = vshrl.u32 %v3789, 7
        %v3791 = vsub.s32 %v3788, %v3790
        %v3792 = vrot.slane %v3778, %v3791
        %v3793 = vcombine.high %v3785, %v3785
        %v3794 = vcombine.high %v3792, %v3792
        %v3795 = vcombine.high %v3629, %v3629
        %v3797 = vunpack.c.l.s4 1983009808
        %v3798 = vunpack.c.0.s8 %v3797
        %v3799 = vlaneseq
        %v3800 = vshrl.u32 %v3799, 7
        %v3801 = vsub.s32 %v3798, %v3800
        %v3802 = vrot.slane %v3629, %v3801
        %v3804 = vunpack.c.l.s4 1983009808
        %v3805 = vunpack.c.0.s8 %v3804
        %v3806 = vlaneseq
        %v3807 = vshrl.u32 %v3806, 7
        %v3808 = vsub.s32 %v3805, %v3807
        %v3809 = vrot.slane %v3795, %v3808
        %v3810 = vcombine.high %v3802, %v3802
        %v3811 = vcombine.high %v3809, %v3809
        %v3812 = vcombine.high %v3632, %v3632
        %v3814 = vunpack.c.l.s4 1983009808
        %v3815 = vunpack.c.0.s8 %v3814
        %v3816 = vlaneseq
        %v3817 = vshrl.u32 %v3816, 7
        %v3818 = vsub.s32 %v3815, %v3817
        %v3819 = vrot.slane %v3632, %v3818
        %v3821 = vunpack.c.l.s4 1983009808
        %v3822 = vunpack.c.0.s8 %v3821
        %v3823 = vlaneseq
        %v3824 = vshrl.u32 %v3823, 7
        %v3825 = vsub.s32 %v3822, %v3824
        %v3826 = vrot.slane %v3812, %v3825
        %v3827 = vcombine.high %v3819, %v3819
        %v3828 = vcombine.high %v3826, %v3826
        %v3829 = vcombine.high %v3637, %v3637
        %v3831 = vunpack.c.l.s4 1983009808
        %v3832 = vunpack.c.0.s8 %v3831
        %v3833 = vlaneseq
        %v3834 = vshrl.u32 %v3833, 7
        %v3835 = vsub.s32 %v3832, %v3834
        %v3836 = vrot.slane %v3637, %v3835
        %v3838 = vunpack.c.l.s4 1983009808
        %v3839 = vunpack.c.0.s8 %v3838
        %v3840 = vlaneseq
        %v3841 = vshrl.u32 %v3840, 7
        %v3842 = vsub.s32 %v3839, %v3841
        %v3843 = vrot.slane %v3829, %v3842
        %v3844 = vcombine.high %v3836, %v3836
        %v3845 = vcombine.high %v3843, %v3843
        %v3846 = vcombine.high %v3640, %v3640
        %v3848 = vunpack.c.l.s4 1983009808
        %v3849 = vunpack.c.0.s8 %v3848
        %v3850 = vlaneseq
        %v3851 = vshrl.u32 %v3850, 7
        %v3852 = vsub.s32 %v3849, %v3851
        %v3853 = vrot.slane %v3640, %v3852
        %v3855 = vunpack.c.l.s4 1983009808
        %v3856 = vunpack.c.0.s8 %v3855
        %v3857 = vlaneseq
        %v3858 = vshrl.u32 %v3857, 7
        %v3859 = vsub.s32 %v3856, %v3858
        %v3860 = vrot.slane %v3846, %v3859
        %v3861 = vcombine.high %v3853, %v3853
        %v3862 = vcombine.high %v3860, %v3860
        %v3863 = vcombine.high %v3645, %v3645
        %v3865 = vunpack.c.l.s4 1983009808
        %v3866 = vunpack.c.0.s8 %v3865
        %v3867 = vlaneseq
        %v3868 = vshrl.u32 %v3867, 7
        %v3869 = vsub.s32 %v3866, %v3868
        %v3870 = vrot.slane %v3645, %v3869
        %v3872 = vunpack.c.l.s4 1983009808
        %v3873 = vunpack.c.0.s8 %v3872
        %v3874 = vlaneseq
        %v3875 = vshrl.u32 %v3874, 7
        %v3876 = vsub.s32 %v3873, %v3875
        %v3877 = vrot.slane %v3863, %v3876
        %v3878 = vcombine.high %v3870, %v3870
        %v3879 = vcombine.high %v3877, %v3877
        %v3880 = vcombine.high %v3648, %v3648
        %v3882 = vunpack.c.l.s4 1983009808
        %v3883 = vunpack.c.0.s8 %v3882
        %v3884 = vlaneseq
        %v3885 = vshrl.u32 %v3884, 7
        %v3886 = vsub.s32 %v3883, %v3885
        %v3887 = vrot.slane %v3648, %v3886
        %v3889 = vunpack.c.l.s4 1983009808
        %v3890 = vunpack.c.0.s8 %v3889
        %v3891 = vlaneseq
        %v3892 = vshrl.u32 %v3891, 7
        %v3893 = vsub.s32 %v3890, %v3892
        %v3894 = vrot.slane %v3880, %v3893
        %v3895 = vcombine.high %v3887, %v3887
        %v3896 = vcombine.high %v3894, %v3894
        %v3897 = vcombine.high %v3653, %v3653
        %v3899 = vunpack.c.l.s4 1983009808
        %v3900 = vunpack.c.0.s8 %v3899
        %v3901 = vlaneseq
        %v3902 = vshrl.u32 %v3901, 7
        %v3903 = vsub.s32 %v3900, %v3902
        %v3904 = vrot.slane %v3653, %v3903
        %v3906 = vunpack.c.l.s4 1983009808
        %v3907 = vunpack.c.0.s8 %v3906
        %v3908 = vlaneseq
        %v3909 = vshrl.u32 %v3908, 7
        %v3910 = vsub.s32 %v3907, %v3909
        %v3911 = vrot.slane %v3897, %v3910
        %v3912 = vcombine.high %v3904, %v3904
        %v3913 = vcombine.high %v3911, %v3911
        %v3914 = vcombine.high %v3656, %v3656
        %v3916 = vunpack.c.l.s4 1983009808
        %v3917 = vunpack.c.0.s8 %v3916
        %v3918 = vlaneseq
        %v3919 = vshrl.u32 %v3918, 7
        %v3920 = vsub.s32 %v3917, %v3919
        %v3921 = vrot.slane %v3656, %v3920
        %v3923 = vunpack.c.l.s4 1983009808
        %v3924 = vunpack.c.0.s8 %v3923
        %v3925 = vlaneseq
        %v3926 = vshrl.u32 %v3925, 7
        %v3927 = vsub.s32 %v3924, %v3926
        %v3928 = vrot.slane %v3914, %v3927
        %v3929 = vcombine.high %v3921, %v3921
        %v3930 = vcombine.high %v3928, %v3928
        %v3931 = vcombine.high %v3661, %v3661
        %v3933 = vunpack.c.l.s4 1983009808
        %v3934 = vunpack.c.0.s8 %v3933
        %v3935 = vlaneseq
        %v3936 = vshrl.u32 %v3935, 7
        %v3937 = vsub.s32 %v3934, %v3936
        %v3938 = vrot.slane %v3661, %v3937
        %v3940 = vunpack.c.l.s4 1983009808
        %v3941 = vunpack.c.0.s8 %v3940
        %v3942 = vlaneseq
        %v3943 = vshrl.u32 %v3942, 7
        %v3944 = vsub.s32 %v3941, %v3943
        %v3945 = vrot.slane %v3931, %v3944
        %v3946 = vcombine.high %v3938, %v3938
        %v3947 = vcombine.high %v3945, %v3945
        %v3948 = vcombine.high %v3664, %v3664
        %v3950 = vunpack.c.l.s4 1983009808
        %v3951 = vunpack.c.0.s8 %v3950
        %v3952 = vlaneseq
        %v3953 = vshrl.u32 %v3952, 7
        %v3954 = vsub.s32 %v3951, %v3953
        %v3955 = vrot.slane %v3664, %v3954
        %v3957 = vunpack.c.l.s4 1983009808
        %v3958 = vunpack.c.0.s8 %v3957
        %v3959 = vlaneseq
        %v3960 = vshrl.u32 %v3959, 7
        %v3961 = vsub.s32 %v3958, %v3960
        %v3962 = vrot.slane %v3948, %v3961
        %v3963 = vcombine.high %v3955, %v3955
        %v3964 = vcombine.high %v3962, %v3962
        %v3965 = vcombine.high %v3669, %v3669
        %v3967 = vunpack.c.l.s4 1983009808
        %v3968 = vunpack.c.0.s8 %v3967
        %v3969 = vlaneseq
        %v3970 = vshrl.u32 %v3969, 7
        %v3971 = vsub.s32 %v3968, %v3970
        %v3972 = vrot.slane %v3669, %v3971
        %v3974 = vunpack.c.l.s4 1983009808
        %v3975 = vunpack.c.0.s8 %v3974
        %v3976 = vlaneseq
        %v3977 = vshrl.u32 %v3976, 7
        %v3978 = vsub.s32 %v3975, %v3977
        %v3979 = vrot.slane %v3965, %v3978
        %v3980 = vcombine.high %v3972, %v3972
        %v3981 = vcombine.high %v3979, %v3979
        %v3982 = vcombine.high %v3672, %v3672
        %v3984 = vunpack.c.l.s4 1983009808
        %v3985 = vunpack.c.0.s8 %v3984
        %v3986 = vlaneseq
        %v3987 = vshrl.u32 %v3986, 7
        %v3988 = vsub.s32 %v3985, %v3987
        %v3989 = vrot.slane %v3672, %v3988
        %v3991 = vunpack.c.l.s4 1983009808
        %v3992 = vunpack.c.0.s8 %v3991
        %v3993 = vlaneseq
        %v3994 = vshrl.u32 %v3993, 7
        %v3995 = vsub.s32 %v3992, %v3994
        %v3996 = vrot.slane %v3982, %v3995
        %v3997 = vcombine.high %v3989, %v3989
        %v3998 = vcombine.high %v3996, %v3996
        %v4071 = vadd.f32 %v2726, %v3700
        %v4072 = vadd.f32 %v2734, %v3708
        %v4073 = vadd.f32 %v2733, %v3707
        %v4074 = vadd.f32 %v2735, %v3709
        %v4075 = vadd.f32 %v2743, %v3717
        %v4076 = vadd.f32 %v2751, %v3725
        %v4077 = vadd.f32 %v2750, %v3724
        %v4078 = vadd.f32 %v2752, %v3726
        %v4079 = vadd.f32 %v2760, %v3734
        %v4080 = vadd.f32 %v2768, %v3742
        %v4081 = vadd.f32 %v2767, %v3741
        %v4082 = vadd.f32 %v2769, %v3743
        %v4083 = vadd.f32 %v2777, %v3751
        %v4084 = vadd.f32 %v2785, %v3759
        %v4085 = vadd.f32 %v2784, %v3758
        %v4086 = vadd.f32 %v2786, %v3760
        %v4087 = vadd.f32 %v2794, %v3768
        %v4088 = vadd.f32 %v2802, %v3776
        %v4089 = vadd.f32 %v2801, %v3775
        %v4090 = vadd.f32 %v2803, %v3777
        %v4091 = vadd.f32 %v2811, %v3785
        %v4092 = vadd.f32 %v2819, %v3793
        %v4093 = vadd.f32 %v2818, %v3792
        %v4094 = vadd.f32 %v2820, %v3794
        %v4095 = vadd.f32 %v2828, %v3802
        %v4096 = vadd.f32 %v2836, %v3810
        %v4097 = vadd.f32 %v2835, %v3809
        %v4098 = vadd.f32 %v2837, %v3811
        %v4099 = vadd.f32 %v2845, %v3819
        %v4100 = vadd.f32 %v2853, %v3827
        %v4101 = vadd.f32 %v2852, %v3826
        %v4102 = vadd.f32 %v2854, %v3828
        %v4103 = vadd.f32 %v2862, %v3836
        %v4104 = vadd.f32 %v2870, %v3844
        %v4105 = vadd.f32 %v2869, %v3843
        %v4106 = vadd.f32 %v2871, %v3845
        %v4107 = vadd.f32 %v2879, %v3853
        %v4108 = vadd.f32 %v2887, %v3861
        %v4109 = vadd.f32 %v2886, %v3860
        %v4110 = vadd.f32 %v2888, %v3862
        %v4111 = vadd.f32 %v2896, %v3870
        %v4112 = vadd.f32 %v2904, %v3878
        %v4113 = vadd.f32 %v2903, %v3877
        %v4114 = vadd.f32 %v2905, %v3879
        %v4115 = vadd.f32 %v2913, %v3887
        %v4116 = vadd.f32 %v2921, %v3895
        %v4117 = vadd.f32 %v2920, %v3894
        %v4118 = vadd.f32 %v2922, %v3896
        %v4119 = vadd.f32 %v2930, %v3904
        %v4120 = vadd.f32 %v2938, %v3912
        %v4121 = vadd.f32 %v2937, %v3911
        %v4122 = vadd.f32 %v2939, %v3913
        %v4123 = vadd.f32 %v2947, %v3921
        %v4124 = vadd.f32 %v2955, %v3929
        %v4125 = vadd.f32 %v2954, %v3928
        %v4126 = vadd.f32 %v2956, %v3930
        %v4127 = vadd.f32 %v2964, %v3938
        %v4128 = vadd.f32 %v2972, %v3946
        %v4129 = vadd.f32 %v2971, %v3945
        %v4130 = vadd.f32 %v2973, %v3947
        %v4131 = vadd.f32 %v2981, %v3955
        %v4132 = vadd.f32 %v2989, %v3963
        %v4133 = vadd.f32 %v2988, %v3962
        %v4134 = vadd.f32 %v2990, %v3964
        %v4135 = vadd.f32 %v2998, %v3972
        %v4136 = vadd.f32 %v3006, %v3980
        %v4137 = vadd.f32 %v3005, %v3979
        %v4138 = vadd.f32 %v3007, %v3981
        %v4139 = vadd.f32 %v3015, %v3989
        %v4140 = vadd.f32 %v3023, %v3997
        %v4141 = vadd.f32 %v3022, %v3996
        %v4142 = vadd.f32 %v3024, %v3998
        %v4143 = vld [vmem:[%s2] sm:$0x1]
        %v4145 = vlaneseq
        %v4146 = vshrl.u32 %v4145, 7
        %v4147 = vsub.s32 0, %v4146
        %v4148 = vrot.slane %v4143, %v4147
        %v4149 = vcombine.high %v4148, %v4148
        %v4151 = vunpack.c.l.s4 1983009808
        %v4152 = vunpack.c.0.s8 %v4151
        %v4153 = vlaneseq
        %v4154 = vshrl.u32 %v4153, 7
        %v4155 = vsub.s32 %v4152, %v4154
        %v4156 = vrot.slane %v4148, %v4155
        %v4158 = vunpack.c.l.s4 1983009808
        %v4159 = vunpack.c.0.s8 %v4158
        %v4160 = vlaneseq
        %v4161 = vshrl.u32 %v4160, 7
        %v4162 = vsub.s32 %v4159, %v4161
        %v4163 = vrot.slane %v4149, %v4162
        %v4164 = vcombine.high %v4156, %v4156
        %v4165 = vcombine.high %v4163, %v4163
        %v4170 = vadd.f32 %v4071, %v4156
        %v4171 = vadd.f32 %v4072, %v4164
        %v4172 = vadd.f32 %v4073, %v4163
        %v4173 = vadd.f32 %v4074, %v4165
        %v4174 = vadd.f32 %v4075, %v4156
        %v4175 = vadd.f32 %v4076, %v4164
        %v4176 = vadd.f32 %v4077, %v4163
        %v4177 = vadd.f32 %v4078, %v4165
        %v4178 = vadd.f32 %v4079, %v4156
        %v4179 = vadd.f32 %v4080, %v4156
        %v4180 = vadd.f32 %v4081, %v4164
        %v4181 = vadd.f32 %v4082, %v4163
        %v4182 = vadd.f32 %v4083, %v4165
        %v4183 = vadd.f32 %v4084, %v4156
        %v4184 = vadd.f32 %v4085, %v4164
        %v4185 = vadd.f32 %v4086, %v4163
        %v4186 = vadd.f32 %v4087, %v4165
        %v4187 = vadd.f32 %v4088, %v4156
        %v4188 = vadd.f32 %v4089, %v4156
        %v4189 = vadd.f32 %v4090, %v4164
        %v4190 = vadd.f32 %v4091, %v4163
        %v4191 = vadd.f32 %v4092, %v4165
        %v4192 = vadd.f32 %v4093, %v4156
        %v4193 = vadd.f32 %v4094, %v4164
        %v4194 = vadd.f32 %v4095, %v4163
        %v4195 = vadd.f32 %v4096, %v4165
        %v4196 = vadd.f32 %v4097, %v4156
        %v4197 = vadd.f32 %v4098, %v4156
        %v4198 = vadd.f32 %v4099, %v4164
        %v4199 = vadd.f32 %v4100, %v4163
        %v4200 = vadd.f32 %v4101, %v4165
        %v4201 = vadd.f32 %v4102, %v4156
        %v4202 = vadd.f32 %v4103, %v4164
        %v4203 = vadd.f32 %v4104, %v4163
        %v4204 = vadd.f32 %v4105, %v4165
        %v4205 = vadd.f32 %v4106, %v4156
        %v4206 = vadd.f32 %v4107, %v4156
        %v4207 = vadd.f32 %v4108, %v4164
        %v4208 = vadd.f32 %v4109, %v4163
        %v4209 = vadd.f32 %v4110, %v4165
        %v4210 = vadd.f32 %v4111, %v4156
        %v4211 = vadd.f32 %v4112, %v4164
        %v4212 = vadd.f32 %v4113, %v4163
        %v4213 = vadd.f32 %v4114, %v4165
        %v4214 = vadd.f32 %v4115, %v4156
        %v4215 = vadd.f32 %v4116, %v4156
        %v4216 = vadd.f32 %v4117, %v4164
        %v4217 = vadd.f32 %v4118, %v4163
        %v4218 = vadd.f32 %v4119, %v4165
        %v4219 = vadd.f32 %v4120, %v4156
        %v4220 = vadd.f32 %v4121, %v4164
        %v4221 = vadd.f32 %v4122, %v4163
        %v4222 = vadd.f32 %v4123, %v4165
        %v4223 = vadd.f32 %v4124, %v4156
        %v4224 = vadd.f32 %v4125, %v4156
        %v4225 = vadd.f32 %v4126, %v4164
        %v4226 = vadd.f32 %v4127, %v4163
        %v4227 = vadd.f32 %v4128, %v4165
        %v4228 = vadd.f32 %v4129, %v4156
        %v4229 = vadd.f32 %v4130, %v4164
        %v4230 = vadd.f32 %v4131, %v4163
        %v4231 = vadd.f32 %v4132, %v4165
        %v4232 = vadd.f32 %v4133, %v4156
        %v4233 = vadd.f32 %v4134, %v4156
        %v4234 = vadd.f32 %v4135, %v4164
        %v4235 = vadd.f32 %v4136, %v4163
        %v4236 = vadd.f32 %v4137, %v4165
        %v4237 = vadd.f32 %v4138, %v4156
        %v4238 = vadd.f32 %v4139, %v4164
        %v4239 = vadd.f32 %v4140, %v4163
        %v4240 = vadd.f32 %v4141, %v4165
        %v4241 = vadd.f32 %v4142, %v4156
        %v4242 = vmul.f32 %v4170, 0.5
        %v4243 = vmul.f32 %v4171, 0.5
        %v4244 = vmul.f32 %v4172, 0.5
        %v4245 = vmul.f32 %v4173, 0.5
        %v4246 = vmul.f32 %v4174, 0.5
        %v4247 = vmul.f32 %v4175, 0.5
        %v4248 = vmul.f32 %v4176, 0.5
        %v4249 = vmul.f32 %v4177, 0.5
        %v4250 = vmul.f32 %v4178, 0.5
        %v4251 = vmul.f32 %v4179, 0.5
        %v4252 = vmul.f32 %v4180, 0.5
        %v4253 = vmul.f32 %v4181, 0.5
        %v4254 = vmul.f32 %v4182, 0.5
        %v4255 = vmul.f32 %v4183, 0.5
        %v4256 = vmul.f32 %v4184, 0.5
        %v4257 = vmul.f32 %v4185, 0.5
        %v4258 = vmul.f32 %v4186, 0.5
        %v4259 = vmul.f32 %v4187, 0.5
        %v4260 = vmul.f32 %v4188, 0.5
        %v4261 = vmul.f32 %v4189, 0.5
        %v4262 = vmul.f32 %v4190, 0.5
        %v4263 = vmul.f32 %v4191, 0.5
        %v4264 = vmul.f32 %v4192, 0.5
        %v4265 = vmul.f32 %v4193, 0.5
        %v4266 = vmul.f32 %v4194, 0.5
        %v4267 = vmul.f32 %v4195, 0.5
        %v4268 = vmul.f32 %v4196, 0.5
        %v4269 = vmul.f32 %v4197, 0.5
        %v4270 = vmul.f32 %v4198, 0.5
        %v4271 = vmul.f32 %v4199, 0.5
        %v4272 = vmul.f32 %v4200, 0.5
        %v4273 = vmul.f32 %v4201, 0.5
        %v4274 = vmul.f32 %v4202, 0.5
        %v4275 = vmul.f32 %v4203, 0.5
        %v4276 = vmul.f32 %v4204, 0.5
        %v4277 = vmul.f32 %v4205, 0.5
        %v4278 = vmul.f32 %v4206, 0.5
        %v4279 = vmul.f32 %v4207, 0.5
        %v4280 = vmul.f32 %v4208, 0.5
        %v4281 = vmul.f32 %v4209, 0.5
        %v4282 = vmul.f32 %v4210, 0.5
        %v4283 = vmul.f32 %v4211, 0.5
        %v4284 = vmul.f32 %v4212, 0.5
        %v4285 = vmul.f32 %v4213, 0.5
        %v4286 = vmul.f32 %v4214, 0.5
        %v4287 = vmul.f32 %v4215, 0.5
        %v4288 = vmul.f32 %v4216, 0.5
        %v4289 = vmul.f32 %v4217, 0.5
        %v4290 = vmul.f32 %v4218, 0.5
        %v4291 = vmul.f32 %v4219, 0.5
        %v4292 = vmul.f32 %v4220, 0.5
        %v4293 = vmul.f32 %v4221, 0.5
        %v4294 = vmul.f32 %v4222, 0.5
        %v4295 = vmul.f32 %v4223, 0.5
        %v4296 = vmul.f32 %v4224, 0.5
        %v4297 = vmul.f32 %v4225, 0.5
        %v4298 = vmul.f32 %v4226, 0.5
        %v4299 = vmul.f32 %v4227, 0.5
        %v4300 = vmul.f32 %v4228, 0.5
        %v4301 = vmul.f32 %v4229, 0.5
        %v4302 = vmul.f32 %v4230, 0.5
        %v4303 = vmul.f32 %v4231, 0.5
        %v4304 = vmul.f32 %v4232, 0.5
        %v4305 = vmul.f32 %v4233, 0.5
        %v4306 = vmul.f32 %v4234, 0.5
        %v4307 = vmul.f32 %v4235, 0.5
        %v4308 = vmul.f32 %v4236, 0.5
        %v4309 = vmul.f32 %v4237, 0.5
        %v4310 = vmul.f32 %v4238, 0.5
        %v4311 = vmul.f32 %v4239, 0.5
        %v4312 = vmul.f32 %v4240, 0.5
        %v4313 = vmul.f32 %v4241, 0.5
        %v4314 = vmul.f32 %v4170, 0.70710677
        %v4315 = vmul.f32 %v4171, 0.70710677
        %v4316 = vmul.f32 %v4172, 0.70710677
        %v4317 = vmul.f32 %v4173, 0.70710677
        %v4318 = vmul.f32 %v4174, 0.70710677
        %v4319 = vmul.f32 %v4175, 0.70710677
        %v4320 = vmul.f32 %v4176, 0.70710677
        %v4321 = vmul.f32 %v4177, 0.70710677
        %v4322 = vmul.f32 %v4178, 0.70710677
        %v4323 = vmul.f32 %v4179, 0.70710677
        %v4324 = vmul.f32 %v4180, 0.70710677
        %v4325 = vmul.f32 %v4181, 0.70710677
        %v4326 = vmul.f32 %v4182, 0.70710677
        %v4327 = vmul.f32 %v4183, 0.70710677
        %v4328 = vmul.f32 %v4184, 0.70710677
        %v4329 = vmul.f32 %v4185, 0.70710677
        %v4330 = vmul.f32 %v4186, 0.70710677
        %v4331 = vmul.f32 %v4187, 0.70710677
        %v4332 = vmul.f32 %v4188, 0.70710677
        %v4333 = vmul.f32 %v4189, 0.70710677
        %v4334 = vmul.f32 %v4190, 0.70710677
        %v4335 = vmul.f32 %v4191, 0.70710677
        %v4336 = vmul.f32 %v4192, 0.70710677
        %v4337 = vmul.f32 %v4193, 0.70710677
        %v4338 = vmul.f32 %v4194, 0.70710677
        %v4339 = vmul.f32 %v4195, 0.70710677
        %v4340 = vmul.f32 %v4196, 0.70710677
        %v4341 = vmul.f32 %v4197, 0.70710677
        %v4342 = vmul.f32 %v4198, 0.70710677
        %v4343 = vmul.f32 %v4199, 0.70710677
        %v4344 = vmul.f32 %v4200, 0.70710677
        %v4345 = vmul.f32 %v4201, 0.70710677
        %v4346 = vmul.f32 %v4202, 0.70710677
        %v4347 = vmul.f32 %v4203, 0.70710677
        %v4348 = vmul.f32 %v4204, 0.70710677
        %v4349 = vmul.f32 %v4205, 0.70710677
        %v4350 = vmul.f32 %v4206, 0.70710677
        %v4351 = vmul.f32 %v4207, 0.70710677
        %v4352 = vmul.f32 %v4208, 0.70710677
        %v4353 = vmul.f32 %v4209, 0.70710677
        %v4354 = vmul.f32 %v4210, 0.70710677
        %v4355 = vmul.f32 %v4211, 0.70710677
        %v4356 = vmul.f32 %v4212, 0.70710677
        %v4357 = vmul.f32 %v4213, 0.70710677
        %v4358 = vmul.f32 %v4214, 0.70710677
        %v4359 = vmul.f32 %v4215, 0.70710677
        %v4360 = vmul.f32 %v4216, 0.70710677
        %v4361 = vmul.f32 %v4217, 0.70710677
        %v4362 = vmul.f32 %v4218, 0.70710677
        %v4363 = vmul.f32 %v4219, 0.70710677
        %v4364 = vmul.f32 %v4220, 0.70710677
        %v4365 = vmul.f32 %v4221, 0.70710677
        %v4366 = vmul.f32 %v4222, 0.70710677
        %v4367 = vmul.f32 %v4223, 0.70710677
        %v4368 = vmul.f32 %v4224, 0.70710677
        %v4369 = vmul.f32 %v4225, 0.70710677
        %v4370 = vmul.f32 %v4226, 0.70710677
        %v4371 = vmul.f32 %v4227, 0.70710677
        %v4372 = vmul.f32 %v4228, 0.70710677
        %v4373 = vmul.f32 %v4229, 0.70710677
        %v4374 = vmul.f32 %v4230, 0.70710677
        %v4375 = vmul.f32 %v4231, 0.70710677
        %v4376 = vmul.f32 %v4232, 0.70710677
        %v4377 = vmul.f32 %v4233, 0.70710677
        %v4378 = vmul.f32 %v4234, 0.70710677
        %v4379 = vmul.f32 %v4235, 0.70710677
        %v4380 = vmul.f32 %v4236, 0.70710677
        %v4381 = vmul.f32 %v4237, 0.70710677
        %v4382 = vmul.f32 %v4238, 0.70710677
        %v4383 = vmul.f32 %v4239, 0.70710677
        %v4384 = vmul.f32 %v4240, 0.70710677
        %v4385 = vmul.f32 %v4241, 0.70710677
        %v4386 = verf.f32.pop %v4314
        %v4387 = verf.f32.pop %v4315
        %v4388 = verf.f32.pop %v4316
        %v4389 = verf.f32.pop %v4317
        %v4390 = verf.f32.pop %v4318
        %v4391 = verf.f32.pop %v4319
        %v4392 = verf.f32.pop %v4320
        %v4393 = verf.f32.pop %v4321
        %v4394 = verf.f32.pop %v4322
        %v4395 = verf.f32.pop %v4323
        %v4396 = verf.f32.pop %v4324
        %v4397 = verf.f32.pop %v4325
        %v4398 = verf.f32.pop %v4326
        %v4399 = verf.f32.pop %v4327
        %v4400 = verf.f32.pop %v4328
        %v4401 = verf.f32.pop %v4329
        %v4402 = verf.f32.pop %v4330
        %v4403 = verf.f32.pop %v4331
        %v4404 = verf.f32.pop %v4332
        %v4405 = verf.f32.pop %v4333
        %v4406 = verf.f32.pop %v4334
        %v4407 = verf.f32.pop %v4335
        %v4408 = verf.f32.pop %v4336
        %v4409 = verf.f32.pop %v4337
        %v4410 = verf.f32.pop %v4338
        %v4411 = verf.f32.pop %v4339
        %v4412 = verf.f32.pop %v4340
        %v4413 = verf.f32.pop %v4341
        %v4414 = verf.f32.pop %v4342
        %v4415 = verf.f32.pop %v4343
        %v4416 = verf.f32.pop %v4344
        %v4417 = verf.f32.pop %v4345
        %v4418 = verf.f32.pop %v4346
        %v4419 = verf.f32.pop %v4347
        %v4420 = verf.f32.pop %v4348
        %v4421 = verf.f32.pop %v4349
        %v4422 = verf.f32.pop %v4350
        %v4423 = verf.f32.pop %v4351
        %v4424 = verf.f32.pop %v4352
        %v4425 = verf.f32.pop %v4353
        %v4426 = verf.f32.pop %v4354
        %v4427 = verf.f32.pop %v4355
        %v4428 = verf.f32.pop %v4356
        %v4429 = verf.f32.pop %v4357
        %v4430 = verf.f32.pop %v4358
        %v4431 = verf.f32.pop %v4359
        %v4432 = verf.f32.pop %v4360
        %v4433 = verf.f32.pop %v4361
        %v4434 = verf.f32.pop %v4362
        %v4435 = verf.f32.pop %v4363
        %v4436 = verf.f32.pop %v4364
        %v4437 = verf.f32.pop %v4365
        %v4438 = verf.f32.pop %v4366
        %v4439 = verf.f32.pop %v4367
        %v4440 = verf.f32.pop %v4368
        %v4441 = verf.f32.pop %v4369
        %v4442 = verf.f32.pop %v4370
        %v4443 = verf.f32.pop %v4371
        %v4444 = verf.f32.pop %v4372
        %v4445 = verf.f32.pop %v4373
        %v4446 = verf.f32.pop %v4374
        %v4447 = verf.f32.pop %v4375
        %v4448 = verf.f32.pop %v4376
        %v4449 = verf.f32.pop %v4377
        %v4450 = verf.f32.pop %v4378
        %v4451 = verf.f32.pop %v4379
        %v4452 = verf.f32.pop %v4380
        %v4453 = verf.f32.pop %v4381
        %v4454 = verf.f32.pop %v4382
        %v4455 = verf.f32.pop %v4383
        %v4456 = verf.f32.pop %v4384
        %v4457 = verf.f32.pop %v4385
        %v4458 = vadd.f32 %v4386, 1.0
        %v4459 = vadd.f32 %v4387, 1.0
        %v4460 = vadd.f32 %v4388, 1.0
        %v4461 = vadd.f32 %v4389, 1.0
        %v4462 = vadd.f32 %v4390, 1.0
        %v4463 = vadd.f32 %v4391, 1.0
        %v4464 = vadd.f32 %v4392, 1.0
        %v4465 = vadd.f32 %v4393, 1.0
        %v4466 = vadd.f32 %v4394, 1.0
        %v4467 = vadd.f32 %v4395, 1.0
        %v4468 = vadd.f32 %v4396, 1.0
        %v4469 = vadd.f32 %v4397, 1.0
        %v4470 = vadd.f32 %v4398, 1.0
        %v4471 = vadd.f32 %v4399, 1.0
        %v4472 = vadd.f32 %v4400, 1.0
        %v4473 = vadd.f32 %v4401, 1.0
        %v4474 = vadd.f32 %v4402, 1.0
        %v4475 = vadd.f32 %v4403, 1.0
        %v4476 = vadd.f32 %v4404, 1.0
        %v4477 = vadd.f32 %v4405, 1.0
        %v4478 = vadd.f32 %v4406, 1.0
        %v4479 = vadd.f32 %v4407, 1.0
        %v4480 = vadd.f32 %v4408, 1.0
        %v4481 = vadd.f32 %v4409, 1.0
        %v4482 = vadd.f32 %v4410, 1.0
        %v4483 = vadd.f32 %v4411, 1.0
        %v4484 = vadd.f32 %v4412, 1.0
        %v4485 = vadd.f32 %v4413, 1.0
        %v4486 = vadd.f32 %v4414, 1.0
        %v4487 = vadd.f32 %v4415, 1.0
        %v4488 = vadd.f32 %v4416, 1.0
        %v4489 = vadd.f32 %v4417, 1.0
        %v4490 = vadd.f32 %v4418, 1.0
        %v4491 = vadd.f32 %v4419, 1.0
        %v4492 = vadd.f32 %v4420, 1.0
        %v4493 = vadd.f32 %v4421, 1.0
        %v4494 = vadd.f32 %v4422, 1.0
        %v4495 = vadd.f32 %v4423, 1.0
        %v4496 = vadd.f32 %v4424, 1.0
        %v4497 = vadd.f32 %v4425, 1.0
        %v4498 = vadd.f32 %v4426, 1.0
        %v4499 = vadd.f32 %v4427, 1.0
        %v4500 = vadd.f32 %v4428, 1.0
        %v4501 = vadd.f32 %v4429, 1.0
        %v4502 = vadd.f32 %v4430, 1.0
        %v4503 = vadd.f32 %v4431, 1.0
        %v4504 = vadd.f32 %v4432, 1.0
        %v4505 = vadd.f32 %v4433, 1.0
        %v4506 = vadd.f32 %v4434, 1.0
        %v4507 = vadd.f32 %v4435, 1.0
        %v4508 = vadd.f32 %v4436, 1.0
        %v4509 = vadd.f32 %v4437, 1.0
        %v4510 = vadd.f32 %v4438, 1.0
        %v4511 = vadd.f32 %v4439, 1.0
        %v4512 = vadd.f32 %v4440, 1.0
        %v4513 = vadd.f32 %v4441, 1.0
        %v4514 = vadd.f32 %v4442, 1.0
        %v4515 = vadd.f32 %v4443, 1.0
        %v4516 = vadd.f32 %v4444, 1.0
        %v4517 = vadd.f32 %v4445, 1.0
        %v4518 = vadd.f32 %v4446, 1.0
        %v4519 = vadd.f32 %v4447, 1.0
        %v4520 = vadd.f32 %v4448, 1.0
        %v4521 = vadd.f32 %v4449, 1.0
        %v4522 = vadd.f32 %v4450, 1.0
        %v4523 = vadd.f32 %v4451, 1.0
        %v4524 = vadd.f32 %v4452, 1.0
        %v4525 = vadd.f32 %v4453, 1.0
        %v4526 = vadd.f32 %v4454, 1.0
        %v4527 = vadd.f32 %v4455, 1.0
        %v4528 = vadd.f32 %v4456, 1.0
        %v4529 = vadd.f32 %v4457, 1.0
        %v4530 = vmul.f32 %v4242, %v4458
        %v4531 = vmul.f32 %v4243, %v4459
        %v4532 = vmul.f32 %v4244, %v4460
        %v4533 = vmul.f32 %v4245, %v4461
        %v4534 = vmul.f32 %v4246, %v4462
        %v4535 = vmul.f32 %v4247, %v4463
        %v4536 = vmul.f32 %v4248, %v4464
        %v4537 = vmul.f32 %v4249, %v4465
        %v4538 = vmul.f32 %v4250, %v4466
        %v4539 = vmul.f32 %v4251, %v4467
        %v4540 = vmul.f32 %v4252, %v4468
        %v4541 = vmul.f32 %v4253, %v4469
        %v4542 = vmul.f32 %v4254, %v4470
        %v4543 = vmul.f32 %v4255, %v4471
        %v4544 = vmul.f32 %v4256, %v4472
        %v4545 = vmul.f32 %v4257, %v4473
        %v4546 = vmul.f32 %v4258, %v4474
        %v4547 = vmul.f32 %v4259, %v4475
        %v4548 = vmul.f32 %v4260, %v4476
        %v4549 = vmul.f32 %v4261, %v4477
        %v4550 = vmul.f32 %v4262, %v4478
        %v4551 = vmul.f32 %v4263, %v4479
        %v4552 = vmul.f32 %v4264, %v4480
        %v4553 = vmul.f32 %v4265, %v4481
        %v4554 = vmul.f32 %v4266, %v4482
        %v4555 = vmul.f32 %v4267, %v4483
        %v4556 = vmul.f32 %v4268, %v4484
        %v4557 = vmul.f32 %v4269, %v4485
        %v4558 = vmul.f32 %v4270, %v4486
        %v4559 = vmul.f32 %v4271, %v4487
        %v4560 = vmul.f32 %v4272, %v4488
        %v4561 = vmul.f32 %v4273, %v4489
        %v4562 = vmul.f32 %v4274, %v4490
        %v4563 = vmul.f32 %v4275, %v4491
        %v4564 = vmul.f32 %v4276, %v4492
        %v4565 = vmul.f32 %v4277, %v4493
        %v4566 = vmul.f32 %v4278, %v4494
        %v4567 = vmul.f32 %v4279, %v4495
        %v4568 = vmul.f32 %v4280, %v4496
        %v4569 = vmul.f32 %v4281, %v4497
        %v4570 = vmul.f32 %v4282, %v4498
        %v4571 = vmul.f32 %v4283, %v4499
        %v4572 = vmul.f32 %v4284, %v4500
        %v4573 = vmul.f32 %v4285, %v4501
        %v4574 = vmul.f32 %v4286, %v4502
        %v4575 = vmul.f32 %v4287, %v4503
        %v4576 = vmul.f32 %v4288, %v4504
        %v4577 = vmul.f32 %v4289, %v4505
        %v4578 = vmul.f32 %v4290, %v4506
        %v4579 = vmul.f32 %v4291, %v4507
        %v4580 = vmul.f32 %v4292, %v4508
        %v4581 = vmul.f32 %v4293, %v4509
        %v4582 = vmul.f32 %v4294, %v4510
        %v4583 = vmul.f32 %v4295, %v4511
        %v4584 = vmul.f32 %v4296, %v4512
        %v4585 = vmul.f32 %v4297, %v4513
        %v4586 = vmul.f32 %v4298, %v4514
        %v4587 = vmul.f32 %v4299, %v4515
        %v4588 = vmul.f32 %v4300, %v4516
        %v4589 = vmul.f32 %v4301, %v4517
        %v4590 = vmul.f32 %v4302, %v4518
        %v4591 = vmul.f32 %v4303, %v4519
        %v4592 = vmul.f32 %v4304, %v4520
        %v4593 = vmul.f32 %v4305, %v4521
        %v4594 = vmul.f32 %v4306, %v4522
        %v4595 = vmul.f32 %v4307, %v4523
        %v4596 = vmul.f32 %v4308, %v4524
        %v4597 = vmul.f32 %v4309, %v4525
        %v4598 = vmul.f32 %v4310, %v4526
        %v4599 = vmul.f32 %v4311, %v4527
        %v4600 = vmul.f32 %v4312, %v4528
        %v4601 = vmul.f32 %v4313, %v4529
        %v4602 = vlaneseq
        %v4603 = vshrl.u32 %v4602, 7
        %v4604 = vadd.s32 %v4603, 8
        %v4605 = vadd.s32 %v4603, 16
        %vm4606 = vcmp.gt.s32.totalorder %v4603, 0
        %vm4607 = vcmp.gt.s32.totalorder %v4604, 0
        %vm4608 = vcmp.gt.s32.totalorder %v4605, 0
        %vm4609 = vcmp.lt.s32.totalorder %v4603, 17
        %vm4610 = vcmp.lt.s32.totalorder %v4604, 17
        %vm4611 = vcmp.lt.s32.totalorder %v4605, 17
        %vm4612 = vmand %vm4606, %vm4609
        %vm4613 = vmand %vm4607, %vm4610
        %vm4614 = vmand %vm4608, %vm4611
        %v4687 = vcombine.low %v4530, %v4531
        %v4688 = vcombine.low %v4532, %v4533
        %v4690 = vunpack.c.l.s4 1983009808
        %v4691 = vunpack.c.0.s8 %v4690
        %v4692 = vlaneseq
        %v4693 = vshrl.u32 %v4692, 7
        %v4694 = vsub.s32 %v4691, %v4693
        %v4695 = vrot.slane %v4687, %v4694
        %v4697 = vunpack.c.l.s4 1983009808
        %v4698 = vunpack.c.0.s8 %v4697
        %v4699 = vlaneseq
        %v4700 = vshrl.u32 %v4699, 7
        %v4701 = vsub.s32 %v4698, %v4700
        %v4702 = vrot.slane %v4688, %v4701
        %v4703 = vcombine.low %v4695, %v4702
        %v4704 = vcombine.low %v4534, %v4535
        %v4705 = vcombine.low %v4536, %v4537
        %v4707 = vunpack.c.l.s4 1983009808
        %v4708 = vunpack.c.0.s8 %v4707
        %v4709 = vlaneseq
        %v4710 = vshrl.u32 %v4709, 7
        %v4711 = vsub.s32 %v4708, %v4710
        %v4712 = vrot.slane %v4704, %v4711
        %v4714 = vunpack.c.l.s4 1983009808
        %v4715 = vunpack.c.0.s8 %v4714
        %v4716 = vlaneseq
        %v4717 = vshrl.u32 %v4716, 7
        %v4718 = vsub.s32 %v4715, %v4717
        %v4719 = vrot.slane %v4705, %v4718
        %v4720 = vcombine.low %v4712, %v4719
        %v4722 = vunpack.c.l.s4 1983009808
        %v4723 = vunpack.c.0.s8 %v4722
        %v4724 = vlaneseq
        %v4725 = vshrl.u32 %v4724, 7
        %v4726 = vsub.s32 %v4723, %v4725
        %v4727 = vrot.slane %v4538, %v4726
        %v4728 = vcombine.low %v4539, %v4540
        %v4729 = vcombine.low %v4541, %v4542
        %v4731 = vunpack.c.l.s4 1983009808
        %v4732 = vunpack.c.0.s8 %v4731
        %v4733 = vlaneseq
        %v4734 = vshrl.u32 %v4733, 7
        %v4735 = vsub.s32 %v4732, %v4734
        %v4736 = vrot.slane %v4728, %v4735
        %v4738 = vunpack.c.l.s4 1983009808
        %v4739 = vunpack.c.0.s8 %v4738
        %v4740 = vlaneseq
        %v4741 = vshrl.u32 %v4740, 7
        %v4742 = vsub.s32 %v4739, %v4741
        %v4743 = vrot.slane %v4729, %v4742
        %v4744 = vcombine.low %v4736, %v4743
        %v4745 = vcombine.low %v4543, %v4544
        %v4746 = vcombine.low %v4545, %v4546
        %v4748 = vunpack.c.l.s4 1983009808
        %v4749 = vunpack.c.0.s8 %v4748
        %v4750 = vlaneseq
        %v4751 = vshrl.u32 %v4750, 7
        %v4752 = vsub.s32 %v4749, %v4751
        %v4753 = vrot.slane %v4745, %v4752
        %v4755 = vunpack.c.l.s4 1983009808
        %v4756 = vunpack.c.0.s8 %v4755
        %v4757 = vlaneseq
        %v4758 = vshrl.u32 %v4757, 7
        %v4759 = vsub.s32 %v4756, %v4758
        %v4760 = vrot.slane %v4746, %v4759
        %v4761 = vcombine.low %v4753, %v4760
        %v4763 = vunpack.c.l.s4 1983009808
        %v4764 = vunpack.c.0.s8 %v4763
        %v4765 = vlaneseq
        %v4766 = vshrl.u32 %v4765, 7
        %v4767 = vsub.s32 %v4764, %v4766
        %v4768 = vrot.slane %v4547, %v4767
        %v4769 = vcombine.low %v4548, %v4549
        %v4770 = vcombine.low %v4550, %v4551
        %v4772 = vunpack.c.l.s4 1983009808
        %v4773 = vunpack.c.0.s8 %v4772
        %v4774 = vlaneseq
        %v4775 = vshrl.u32 %v4774, 7
        %v4776 = vsub.s32 %v4773, %v4775
        %v4777 = vrot.slane %v4769, %v4776
        %v4779 = vunpack.c.l.s4 1983009808
        %v4780 = vunpack.c.0.s8 %v4779
        %v4781 = vlaneseq
        %v4782 = vshrl.u32 %v4781, 7
        %v4783 = vsub.s32 %v4780, %v4782
        %v4784 = vrot.slane %v4770, %v4783
        %v4785 = vcombine.low %v4777, %v4784
        %v4786 = vcombine.low %v4552, %v4553
        %v4787 = vcombine.low %v4554, %v4555
        %v4789 = vunpack.c.l.s4 1983009808
        %v4790 = vunpack.c.0.s8 %v4789
        %v4791 = vlaneseq
        %v4792 = vshrl.u32 %v4791, 7
        %v4793 = vsub.s32 %v4790, %v4792
        %v4794 = vrot.slane %v4786, %v4793
        %v4796 = vunpack.c.l.s4 1983009808
        %v4797 = vunpack.c.0.s8 %v4796
        %v4798 = vlaneseq
        %v4799 = vshrl.u32 %v4798, 7
        %v4800 = vsub.s32 %v4797, %v4799
        %v4801 = vrot.slane %v4787, %v4800
        %v4802 = vcombine.low %v4794, %v4801
        %v4804 = vunpack.c.l.s4 1983009808
        %v4805 = vunpack.c.0.s8 %v4804
        %v4806 = vlaneseq
        %v4807 = vshrl.u32 %v4806, 7
        %v4808 = vsub.s32 %v4805, %v4807
        %v4809 = vrot.slane %v4556, %v4808
        %v4810 = vcombine.low %v4557, %v4558
        %v4811 = vcombine.low %v4559, %v4560
        %v4813 = vunpack.c.l.s4 1983009808
        %v4814 = vunpack.c.0.s8 %v4813
        %v4815 = vlaneseq
        %v4816 = vshrl.u32 %v4815, 7
        %v4817 = vsub.s32 %v4814, %v4816
        %v4818 = vrot.slane %v4810, %v4817
        %v4820 = vunpack.c.l.s4 1983009808
        %v4821 = vunpack.c.0.s8 %v4820
        %v4822 = vlaneseq
        %v4823 = vshrl.u32 %v4822, 7
        %v4824 = vsub.s32 %v4821, %v4823
        %v4825 = vrot.slane %v4811, %v4824
        %v4826 = vcombine.low %v4818, %v4825
        %v4827 = vcombine.low %v4561, %v4562
        %v4828 = vcombine.low %v4563, %v4564
        %v4830 = vunpack.c.l.s4 1983009808
        %v4831 = vunpack.c.0.s8 %v4830
        %v4832 = vlaneseq
        %v4833 = vshrl.u32 %v4832, 7
        %v4834 = vsub.s32 %v4831, %v4833
        %v4835 = vrot.slane %v4827, %v4834
        %v4837 = vunpack.c.l.s4 1983009808
        %v4838 = vunpack.c.0.s8 %v4837
        %v4839 = vlaneseq
        %v4840 = vshrl.u32 %v4839, 7
        %v4841 = vsub.s32 %v4838, %v4840
        %v4842 = vrot.slane %v4828, %v4841
        %v4843 = vcombine.low %v4835, %v4842
        %v4845 = vunpack.c.l.s4 1983009808
        %v4846 = vunpack.c.0.s8 %v4845
        %v4847 = vlaneseq
        %v4848 = vshrl.u32 %v4847, 7
        %v4849 = vsub.s32 %v4846, %v4848
        %v4850 = vrot.slane %v4565, %v4849
        %v4851 = vcombine.low %v4566, %v4567
        %v4852 = vcombine.low %v4568, %v4569
        %v4854 = vunpack.c.l.s4 1983009808
        %v4855 = vunpack.c.0.s8 %v4854
        %v4856 = vlaneseq
        %v4857 = vshrl.u32 %v4856, 7
        %v4858 = vsub.s32 %v4855, %v4857
        %v4859 = vrot.slane %v4851, %v4858
        %v4861 = vunpack.c.l.s4 1983009808
        %v4862 = vunpack.c.0.s8 %v4861
        %v4863 = vlaneseq
        %v4864 = vshrl.u32 %v4863, 7
        %v4865 = vsub.s32 %v4862, %v4864
        %v4866 = vrot.slane %v4852, %v4865
        %v4867 = vcombine.low %v4859, %v4866
        %v4868 = vcombine.low %v4570, %v4571
        %v4869 = vcombine.low %v4572, %v4573
        %v4871 = vunpack.c.l.s4 1983009808
        %v4872 = vunpack.c.0.s8 %v4871
        %v4873 = vlaneseq
        %v4874 = vshrl.u32 %v4873, 7
        %v4875 = vsub.s32 %v4872, %v4874
        %v4876 = vrot.slane %v4868, %v4875
        %v4878 = vunpack.c.l.s4 1983009808
        %v4879 = vunpack.c.0.s8 %v4878
        %v4880 = vlaneseq
        %v4881 = vshrl.u32 %v4880, 7
        %v4882 = vsub.s32 %v4879, %v4881
        %v4883 = vrot.slane %v4869, %v4882
        %v4884 = vcombine.low %v4876, %v4883
        %v4886 = vunpack.c.l.s4 1983009808
        %v4887 = vunpack.c.0.s8 %v4886
        %v4888 = vlaneseq
        %v4889 = vshrl.u32 %v4888, 7
        %v4890 = vsub.s32 %v4887, %v4889
        %v4891 = vrot.slane %v4574, %v4890
        %v4892 = vcombine.low %v4575, %v4576
        %v4893 = vcombine.low %v4577, %v4578
        %v4895 = vunpack.c.l.s4 1983009808
        %v4896 = vunpack.c.0.s8 %v4895
        %v4897 = vlaneseq
        %v4898 = vshrl.u32 %v4897, 7
        %v4899 = vsub.s32 %v4896, %v4898
        %v4900 = vrot.slane %v4892, %v4899
        %v4902 = vunpack.c.l.s4 1983009808
        %v4903 = vunpack.c.0.s8 %v4902
        %v4904 = vlaneseq
        %v4905 = vshrl.u32 %v4904, 7
        %v4906 = vsub.s32 %v4903, %v4905
        %v4907 = vrot.slane %v4893, %v4906
        %v4908 = vcombine.low %v4900, %v4907
        %v4909 = vcombine.low %v4579, %v4580
        %v4910 = vcombine.low %v4581, %v4582
        %v4912 = vunpack.c.l.s4 1983009808
        %v4913 = vunpack.c.0.s8 %v4912
        %v4914 = vlaneseq
        %v4915 = vshrl.u32 %v4914, 7
        %v4916 = vsub.s32 %v4913, %v4915
        %v4917 = vrot.slane %v4909, %v4916
        %v4919 = vunpack.c.l.s4 1983009808
        %v4920 = vunpack.c.0.s8 %v4919
        %v4921 = vlaneseq
        %v4922 = vshrl.u32 %v4921, 7
        %v4923 = vsub.s32 %v4920, %v4922
        %v4924 = vrot.slane %v4910, %v4923
        %v4925 = vcombine.low %v4917, %v4924
        %v4927 = vunpack.c.l.s4 1983009808
        %v4928 = vunpack.c.0.s8 %v4927
        %v4929 = vlaneseq
        %v4930 = vshrl.u32 %v4929, 7
        %v4931 = vsub.s32 %v4928, %v4930
        %v4932 = vrot.slane %v4583, %v4931
        %v4933 = vcombine.low %v4584, %v4585
        %v4934 = vcombine.low %v4586, %v4587
        %v4936 = vunpack.c.l.s4 1983009808
        %v4937 = vunpack.c.0.s8 %v4936
        %v4938 = vlaneseq
        %v4939 = vshrl.u32 %v4938, 7
        %v4940 = vsub.s32 %v4937, %v4939
        %v4941 = vrot.slane %v4933, %v4940
        %v4943 = vunpack.c.l.s4 1983009808
        %v4944 = vunpack.c.0.s8 %v4943
        %v4945 = vlaneseq
        %v4946 = vshrl.u32 %v4945, 7
        %v4947 = vsub.s32 %v4944, %v4946
        %v4948 = vrot.slane %v4934, %v4947
        %v4949 = vcombine.low %v4941, %v4948
        %v4950 = vcombine.low %v4588, %v4589
        %v4951 = vcombine.low %v4590, %v4591
        %v4953 = vunpack.c.l.s4 1983009808
        %v4954 = vunpack.c.0.s8 %v4953
        %v4955 = vlaneseq
        %v4956 = vshrl.u32 %v4955, 7
        %v4957 = vsub.s32 %v4954, %v4956
        %v4958 = vrot.slane %v4950, %v4957
        %v4960 = vunpack.c.l.s4 1983009808
        %v4961 = vunpack.c.0.s8 %v4960
        %v4962 = vlaneseq
        %v4963 = vshrl.u32 %v4962, 7
        %v4964 = vsub.s32 %v4961, %v4963
        %v4965 = vrot.slane %v4951, %v4964
        %v4966 = vcombine.low %v4958, %v4965
        %v4968 = vunpack.c.l.s4 1983009808
        %v4969 = vunpack.c.0.s8 %v4968
        %v4970 = vlaneseq
        %v4971 = vshrl.u32 %v4970, 7
        %v4972 = vsub.s32 %v4969, %v4971
        %v4973 = vrot.slane %v4592, %v4972
        %v4974 = vcombine.low %v4593, %v4594
        %v4975 = vcombine.low %v4595, %v4596
        %v4977 = vunpack.c.l.s4 1983009808
        %v4978 = vunpack.c.0.s8 %v4977
        %v4979 = vlaneseq
        %v4980 = vshrl.u32 %v4979, 7
        %v4981 = vsub.s32 %v4978, %v4980
        %v4982 = vrot.slane %v4974, %v4981
        %v4984 = vunpack.c.l.s4 1983009808
        %v4985 = vunpack.c.0.s8 %v4984
        %v4986 = vlaneseq
        %v4987 = vshrl.u32 %v4986, 7
        %v4988 = vsub.s32 %v4985, %v4987
        %v4989 = vrot.slane %v4975, %v4988
        %v4990 = vcombine.low %v4982, %v4989
        %v4991 = vcombine.low %v4597, %v4598
        %v4992 = vcombine.low %v4599, %v4600
        %v4994 = vunpack.c.l.s4 1983009808
        %v4995 = vunpack.c.0.s8 %v4994
        %v4996 = vlaneseq
        %v4997 = vshrl.u32 %v4996, 7
        %v4998 = vsub.s32 %v4995, %v4997
        %v4999 = vrot.slane %v4991, %v4998
        %v5001 = vunpack.c.l.s4 1983009808
        %v5002 = vunpack.c.0.s8 %v5001
        %v5003 = vlaneseq
        %v5004 = vshrl.u32 %v5003, 7
        %v5005 = vsub.s32 %v5002, %v5004
        %v5006 = vrot.slane %v4992, %v5005
        %v5007 = vcombine.low %v4999, %v5006
        %v5009 = vunpack.c.l.s4 1983009808
        %v5010 = vunpack.c.0.s8 %v5009
        %v5011 = vlaneseq
        %v5012 = vshrl.u32 %v5011, 7
        %v5013 = vsub.s32 %v5010, %v5012
        %v5014 = vrot.slane %v4601, %v5013
        %v5039 = vsel %vm4612, %v4703, 0.0
        %v5040 = vsel %vm4613, %v4720, 0.0
        %v5041 = vsel %vm4614, %v4727, 0.0
        %v5042 = vsel %vm4612, %v4744, 0.0
        %v5043 = vsel %vm4613, %v4761, 0.0
        %v5044 = vsel %vm4614, %v4768, 0.0
        %v5045 = vsel %vm4612, %v4785, 0.0
        %v5046 = vsel %vm4613, %v4802, 0.0
        %v5047 = vsel %vm4614, %v4809, 0.0
        %v5048 = vsel %vm4612, %v4826, 0.0
        %v5049 = vsel %vm4613, %v4843, 0.0
        %v5050 = vsel %vm4614, %v4850, 0.0
        %v5051 = vsel %vm4612, %v4867, 0.0
        %v5052 = vsel %vm4613, %v4884, 0.0
        %v5053 = vsel %vm4614, %v4891, 0.0
        %v5054 = vsel %vm4612, %v4908, 0.0
        %v5055 = vsel %vm4613, %v4925, 0.0
        %v5056 = vsel %vm4614, %v4932, 0.0
        %v5057 = vsel %vm4612, %v4949, 0.0
        %v5058 = vsel %vm4613, %v4966, 0.0
        %v5059 = vsel %vm4614, %v4973, 0.0
        %v5060 = vsel %vm4612, %v4990, 0.0
        %v5061 = vsel %vm4613, %v5007, 0.0
        %v5062 = vsel %vm4614, %v5014, 0.0
        %v5063 = vpack.c.bf16 %v5040, %v5039
        %v5064 = vpack.c.bf16 %v5041, %v5041
        %v5065 = vpack.c.bf16 %v5043, %v5042
        %v5066 = vpack.c.bf16 %v5044, %v5044
        %v5067 = vpack.c.bf16 %v5046, %v5045
        %v5068 = vpack.c.bf16 %v5047, %v5047
        %v5069 = vpack.c.bf16 %v5049, %v5048
        %v5070 = vpack.c.bf16 %v5050, %v5050
        %v5071 = vpack.c.bf16 %v5052, %v5051
        %v5072 = vpack.c.bf16 %v5053, %v5053
        %v5073 = vpack.c.bf16 %v5055, %v5054
        %v5074 = vpack.c.bf16 %v5056, %v5056
        %v5075 = vpack.c.bf16 %v5058, %v5057
        %v5076 = vpack.c.bf16 %v5059, %v5059
        %v5077 = vpack.c.bf16 %v5061, %v5060
        %v5078 = vpack.c.bf16 %v5062, %v5062
        %v5079 = vld [vmem:[%s3] sm:$0xf]
        %v5080 = vld [vmem:[%s3 + $0x4] sm:$0xf]
        %v5081 = vld [vmem:[%s3 + $0x8] sm:$0xf]
        %v5082 = vld [vmem:[%s3 + $0xc] sm:$0xf]
        %v5083 = vld [vmem:[%s3 + $0x10] sm:$0xf]
        %v5084 = vld [vmem:[%s3 + $0x14] sm:$0xf]
        %v5085 = vld [vmem:[%s3 + $0x18] sm:$0xf]
        %v5086 = vld [vmem:[%s3 + $0x1c] sm:$0xf]
        %s5087 = scalar_lea.vmem %s3, 32
        %v5088 = vld [vmem:[%s5087] sm:$0xf]
        %v5089 = vld [vmem:[%s5087 + $0x4] sm:$0xf]
        %v5090 = vld [vmem:[%s5087 + $0x8] sm:$0xf]
        %v5091 = vld [vmem:[%s5087 + $0xc] sm:$0xf]
        %v5092 = vld [vmem:[%s5087 + $0x10] sm:$0xf]
        %v5093 = vld [vmem:[%s5087 + $0x14] sm:$0xf]
        %v5094 = vld [vmem:[%s5087 + $0x18] sm:$0xf]
        %v5095 = vld [vmem:[%s5087 + $0x1c] sm:$0xf]
        %vm5096 = vsmask.f32 7424
        %v5098 = vshrl.u32 %v5063, 16
        %v5100 = vshll.u32 %v5063, 16
        %v5102 = vrot.slane %v5100, 1
        %v5103 = vor.u32 %v5098, %v5102
        %v5105 = vshll.u32 %v5064, 16
        %v5107 = vrot.slane %v5105, 1
        %v5108 = vsel %vm5096, %v5103, %v5107
        %v5110 = vshrl.u32 %v5065, 16
        %v5112 = vshll.u32 %v5065, 16
        %v5114 = vrot.slane %v5112, 1
        %v5115 = vor.u32 %v5110, %v5114
        %v5117 = vshll.u32 %v5066, 16
        %v5119 = vrot.slane %v5117, 1
        %v5120 = vsel %vm5096, %v5115, %v5119
        %v5122 = vshrl.u32 %v5067, 16
        %v5124 = vshll.u32 %v5067, 16
        %v5126 = vrot.slane %v5124, 1
        %v5127 = vor.u32 %v5122, %v5126
        %v5129 = vshll.u32 %v5068, 16
        %v5131 = vrot.slane %v5129, 1
        %v5132 = vsel %vm5096, %v5127, %v5131
        %v5134 = vshrl.u32 %v5069, 16
        %v5136 = vshll.u32 %v5069, 16
        %v5138 = vrot.slane %v5136, 1
        %v5139 = vor.u32 %v5134, %v5138
        %v5141 = vshll.u32 %v5070, 16
        %v5143 = vrot.slane %v5141, 1
        %v5144 = vsel %vm5096, %v5139, %v5143
        %v5146 = vshrl.u32 %v5071, 16
        %v5148 = vshll.u32 %v5071, 16
        %v5150 = vrot.slane %v5148, 1
        %v5151 = vor.u32 %v5146, %v5150
        %v5153 = vshll.u32 %v5072, 16
        %v5155 = vrot.slane %v5153, 1
        %v5156 = vsel %vm5096, %v5151, %v5155
        %v5158 = vshrl.u32 %v5073, 16
        %v5160 = vshll.u32 %v5073, 16
        %v5162 = vrot.slane %v5160, 1
        %v5163 = vor.u32 %v5158, %v5162
        %v5165 = vshll.u32 %v5074, 16
        %v5167 = vrot.slane %v5165, 1
        %v5168 = vsel %vm5096, %v5163, %v5167
        %v5170 = vshrl.u32 %v5075, 16
        %v5172 = vshll.u32 %v5075, 16
        %v5174 = vrot.slane %v5172, 1
        %v5175 = vor.u32 %v5170, %v5174
        %v5177 = vshll.u32 %v5076, 16
        %v5179 = vrot.slane %v5177, 1
        %v5180 = vsel %vm5096, %v5175, %v5179
        %v5182 = vshrl.u32 %v5077, 16
        %v5184 = vshll.u32 %v5077, 16
        %v5186 = vrot.slane %v5184, 1
        %v5187 = vor.u32 %v5182, %v5186
        %v5189 = vshll.u32 %v5078, 16
        %v5191 = vrot.slane %v5189, 1
        %v5192 = vsel %vm5096, %v5187, %v5191
        %v5201 = vunpack.c.l.b16 %v5088
        %v5202 = vunpack.c.l.b16 %v5089
        %v5203 = vunpack.c.l.b16 %v5090
        %v5204 = vunpack.c.l.b16 %v5091
        %v5205 = vunpack.c.l.b16 %v5092
        %v5206 = vunpack.c.l.b16 %v5093
        %v5207 = vunpack.c.l.b16 %v5094
        %v5208 = vunpack.c.l.b16 %v5095
        %v5209 = vpack.c.b16 %v5202, %v5201
        %v5210 = vpack.c.b16 %v5204, %v5203
        %v5211 = vpack.c.b16 %v5206, %v5205
        %v5212 = vpack.c.b16 %v5208, %v5207
        %vm5217 = vcmask 523264
        %v5219 = vsel %vm5217, %v5108, 0
        %v5222 = vsel %vm5217, %v5120, 0
        %v5225 = vsel %vm5217, %v5132, 0
        %v5228 = vsel %vm5217, %v5144, 0
        %v5231 = vsel %vm5217, %v5156, 0
        %v5234 = vsel %vm5217, %v5168, 0
        %v5237 = vsel %vm5217, %v5180, 0
        %v5240 = vsel %vm5217, %v5192, 0
        %5242 = vmatprep.subr.bf16.mxu0 0
        %5243 = vmatpush1.bf16.msra.mxu0 0
        %5244 = vmatprep.subr.bf16.mxu0 0
        %5245 = vmatpush1.bf16.msra.mxu0 0
        %5246 = vmatprep.subr.bf16.mxu0 0
        %5247 = vmatpush1.bf16.msra.mxu0 0
        %5248 = vmatprep.subr.bf16.mxu0 0
        %5249 = vmatpush1.bf16.msra.mxu0 0
        %5250 = vmatprep.subr.bf16.mxu0 0
        %5251 = vmatpush1.bf16.msra.mxu0 %v5212
        %5252 = vmatprep.subr.bf16.mxu0 0
        %5253 = vmatpush1.bf16.msra.mxu0 %v5211
        %5254 = vmatprep.subr.bf16.mxu0 0
        %5255 = vmatpush1.bf16.msra.mxu0 %v5210
        %5256 = vmatprep.subr.bf16.mxu0 0
        %5257 = vmatpush1.bf16.msra.mxu0 %v5209
        %5258 = vmatprep.subr.bf16.mxu0 0
        %5259 = vmatpush2.bf16.msra.mxu0 0
        %5260 = vmatprep.subr.bf16.mxu0 0
        %5261 = vmatpush2.bf16.msra.mxu0 0
        %5262 = vmatprep.subr.bf16.mxu0 0
        %5263 = vmatpush2.bf16.msra.mxu0 0
        %5264 = vmatprep.subr.bf16.mxu0 0
        %5265 = vmatpush2.bf16.msra.mxu0 0
        %5266 = vmatprep.subr.bf16.mxu0 0
        %5267 = vmatpush2.bf16.msra.mxu0 0
        %5268 = vmatprep.subr.bf16.mxu0 0
        %5269 = vmatpush2.bf16.msra.mxu0 0
        %5270 = vmatprep.subr.bf16.mxu0 0
        %5271 = vmatpush2.bf16.msra.mxu0 0
        %5272 = vmatprep.subr.bf16.mxu0 0
        %5273 = vmatpush2.bf16.msra.mxu0 0
        %5274 = vmatprep.mubr.bf16.mxu0 0
        %5275 = vmatmul.mubr.bf16.gmra.mxu0 %v5219
        %v5276 = vpop.f32.mrf.mxu0
        %v5277 = vadd.f32 0.0, %v5276
        %v5278 = vpop.f32.mrf.mxu0
        %v5279 = vpop.f32.mrf.mxu0
        %v5280 = vadd.f32 0.0, %v5279
        %v5281 = vpop.f32.mrf.mxu0
        %5282 = vmatprep.mubr.bf16.mxu0 0
        %5283 = vmatmul.mubr.bf16.gmra.mxu0 %v5222
        %v5284 = vpop.f32.mrf.mxu0
        %v5285 = vadd.f32 0.0, %v5284
        %v5286 = vpop.f32.mrf.mxu0
        %v5287 = vpop.f32.mrf.mxu0
        %v5288 = vadd.f32 0.0, %v5287
        %v5289 = vpop.f32.mrf.mxu0
        %5290 = vmatprep.mubr.bf16.mxu0 0
        %5291 = vmatmul.mubr.bf16.gmra.mxu0 %v5225
        %v5292 = vpop.f32.mrf.mxu0
        %v5293 = vadd.f32 0.0, %v5292
        %v5294 = vpop.f32.mrf.mxu0
        %v5295 = vpop.f32.mrf.mxu0
        %v5296 = vadd.f32 0.0, %v5295
        %v5297 = vpop.f32.mrf.mxu0
        %5298 = vmatprep.mubr.bf16.mxu0 0
        %5299 = vmatmul.mubr.bf16.gmra.mxu0 %v5228
        %v5300 = vpop.f32.mrf.mxu0
        %v5301 = vadd.f32 0.0, %v5300
        %v5302 = vpop.f32.mrf.mxu0
        %v5303 = vpop.f32.mrf.mxu0
        %v5304 = vadd.f32 0.0, %v5303
        %v5305 = vpop.f32.mrf.mxu0
        %5306 = vmatprep.mubr.bf16.mxu0 0
        %5307 = vmatmul.mubr.bf16.gmra.mxu0 %v5231
        %v5308 = vpop.f32.mrf.mxu0
        %v5309 = vadd.f32 0.0, %v5308
        %v5310 = vpop.f32.mrf.mxu0
        %v5311 = vpop.f32.mrf.mxu0
        %v5312 = vadd.f32 0.0, %v5311
        %v5313 = vpop.f32.mrf.mxu0
        %5314 = vmatprep.mubr.bf16.mxu0 0
        %5315 = vmatmul.mubr.bf16.gmra.mxu0 %v5234
        %v5316 = vpop.f32.mrf.mxu0
        %v5317 = vadd.f32 0.0, %v5316
        %v5318 = vpop.f32.mrf.mxu0
        %v5319 = vpop.f32.mrf.mxu0
        %v5320 = vadd.f32 0.0, %v5319
        %v5321 = vpop.f32.mrf.mxu0
        %5322 = vmatprep.mubr.bf16.mxu0 0
        %5323 = vmatmul.mubr.bf16.gmra.mxu0 %v5237
        %v5324 = vpop.f32.mrf.mxu0
        %v5325 = vadd.f32 0.0, %v5324
        %v5326 = vpop.f32.mrf.mxu0
        %v5327 = vpop.f32.mrf.mxu0
        %v5328 = vadd.f32 0.0, %v5327
        %v5329 = vpop.f32.mrf.mxu0
        %5330 = vmatprep.mubr.bf16.mxu0 0
        %5331 = vmatmul.mubr.bf16.gmra.mxu0 %v5240
        %v5332 = vpop.f32.mrf.mxu0
        %v5333 = vadd.f32 0.0, %v5332
        %v5334 = vpop.f32.mrf.mxu0
        %v5335 = vpop.f32.mrf.mxu0
        %v5336 = vadd.f32 0.0, %v5335
        %v5337 = vpop.f32.mrf.mxu0
        %5338 = vdwg.mxu0
        %v5347 = vunpack.c.l.b16 %v5079
        %v5348 = vunpack.c.l.b16 %v5080
        %v5349 = vunpack.c.l.b16 %v5081
        %v5350 = vunpack.c.l.b16 %v5082
        %v5351 = vunpack.c.l.b16 %v5083
        %v5352 = vunpack.c.l.b16 %v5084
        %v5353 = vunpack.c.l.b16 %v5085
        %v5354 = vunpack.c.l.b16 %v5086
        %v5355 = vpack.c.b16 %v5348, %v5347
        %v5356 = vpack.c.b16 %v5350, %v5349
        %v5357 = vpack.c.b16 %v5352, %v5351
        %v5358 = vpack.c.b16 %v5354, %v5353
        %v5363 = vsel %vm5217, %v5063, 0
        %v5365 = vsel %vm5217, %v5065, 0
        %v5367 = vsel %vm5217, %v5067, 0
        %v5369 = vsel %vm5217, %v5069, 0
        %v5371 = vsel %vm5217, %v5071, 0
        %v5373 = vsel %vm5217, %v5073, 0
        %v5375 = vsel %vm5217, %v5075, 0
        %v5377 = vsel %vm5217, %v5077, 0
        %5379 = vmatprep.subr.bf16.mxu0 0
        %5380 = vmatpush1.bf16.msra.mxu0 0
        %5381 = vmatprep.subr.bf16.mxu0 0
        %5382 = vmatpush1.bf16.msra.mxu0 0
        %5383 = vmatprep.subr.bf16.mxu0 0
        %5384 = vmatpush1.bf16.msra.mxu0 0
        %5385 = vmatprep.subr.bf16.mxu0 0
        %5386 = vmatpush1.bf16.msra.mxu0 0
        %5387 = vmatprep.subr.bf16.mxu0 0
        %5388 = vmatpush1.bf16.msra.mxu0 %v5358
        %5389 = vmatprep.subr.bf16.mxu0 0
        %5390 = vmatpush1.bf16.msra.mxu0 %v5357
        %5391 = vmatprep.subr.bf16.mxu0 0
        %5392 = vmatpush1.bf16.msra.mxu0 %v5356
        %5393 = vmatprep.subr.bf16.mxu0 0
        %5394 = vmatpush1.bf16.msra.mxu0 %v5355
        %5395 = vmatprep.subr.bf16.mxu0 0
        %5396 = vmatpush2.bf16.msra.mxu0 0
        %5397 = vmatprep.subr.bf16.mxu0 0
        %5398 = vmatpush2.bf16.msra.mxu0 0
        %5399 = vmatprep.subr.bf16.mxu0 0
        %5400 = vmatpush2.bf16.msra.mxu0 0
        %5401 = vmatprep.subr.bf16.mxu0 0
        %5402 = vmatpush2.bf16.msra.mxu0 0
        %5403 = vmatprep.subr.bf16.mxu0 0
        %5404 = vmatpush2.bf16.msra.mxu0 0
        %5405 = vmatprep.subr.bf16.mxu0 0
        %5406 = vmatpush2.bf16.msra.mxu0 0
        %5407 = vmatprep.subr.bf16.mxu0 0
        %5408 = vmatpush2.bf16.msra.mxu0 0
        %5409 = vmatprep.subr.bf16.mxu0 0
        %5410 = vmatpush2.bf16.msra.mxu0 0
        %5411 = vmatprep.mubr.bf16.mxu0 0
        %5412 = vmatmul.mubr.bf16.gmra.mxu0 %v5363
        %v5413 = vpop.f32.mrf.mxu0
        %v5414 = vadd.f32 %v5277, %v5413
        %v5415 = vpop.f32.mrf.mxu0
        %v5416 = vpop.f32.mrf.mxu0
        %v5417 = vadd.f32 %v5280, %v5416
        %v5418 = vpop.f32.mrf.mxu0
        %5419 = vmatprep.mubr.bf16.mxu0 0
        %5420 = vmatmul.mubr.bf16.gmra.mxu0 %v5365
        %v5421 = vpop.f32.mrf.mxu0
        %v5422 = vadd.f32 %v5285, %v5421
        %v5423 = vpop.f32.mrf.mxu0
        %v5424 = vpop.f32.mrf.mxu0
        %v5425 = vadd.f32 %v5288, %v5424
        %v5426 = vpop.f32.mrf.mxu0
        %5427 = vmatprep.mubr.bf16.mxu0 0
        %5428 = vmatmul.mubr.bf16.gmra.mxu0 %v5367
        %v5429 = vpop.f32.mrf.mxu0
        %v5430 = vadd.f32 %v5293, %v5429
        %v5431 = vpop.f32.mrf.mxu0
        %v5432 = vpop.f32.mrf.mxu0
        %v5433 = vadd.f32 %v5296, %v5432
        %v5434 = vpop.f32.mrf.mxu0
        %5435 = vmatprep.mubr.bf16.mxu0 0
        %5436 = vmatmul.mubr.bf16.gmra.mxu0 %v5369
        %v5437 = vpop.f32.mrf.mxu0
        %v5438 = vadd.f32 %v5301, %v5437
        %v5439 = vpop.f32.mrf.mxu0
        %v5440 = vpop.f32.mrf.mxu0
        %v5441 = vadd.f32 %v5304, %v5440
        %v5442 = vpop.f32.mrf.mxu0
        %5443 = vmatprep.mubr.bf16.mxu0 0
        %5444 = vmatmul.mubr.bf16.gmra.mxu0 %v5371
        %v5445 = vpop.f32.mrf.mxu0
        %v5446 = vadd.f32 %v5309, %v5445
        %v5447 = vpop.f32.mrf.mxu0
        %v5448 = vpop.f32.mrf.mxu0
        %v5449 = vadd.f32 %v5312, %v5448
        %v5450 = vpop.f32.mrf.mxu0
        %5451 = vmatprep.mubr.bf16.mxu0 0
        %5452 = vmatmul.mubr.bf16.gmra.mxu0 %v5373
        %v5453 = vpop.f32.mrf.mxu0
        %v5454 = vadd.f32 %v5317, %v5453
        %v5455 = vpop.f32.mrf.mxu0
        %v5456 = vpop.f32.mrf.mxu0
        %v5457 = vadd.f32 %v5320, %v5456
        %v5458 = vpop.f32.mrf.mxu0
        %5459 = vmatprep.mubr.bf16.mxu0 0
        %5460 = vmatmul.mubr.bf16.gmra.mxu0 %v5375
        %v5461 = vpop.f32.mrf.mxu0
        %v5462 = vadd.f32 %v5325, %v5461
        %v5463 = vpop.f32.mrf.mxu0
        %v5464 = vpop.f32.mrf.mxu0
        %v5465 = vadd.f32 %v5328, %v5464
        %v5466 = vpop.f32.mrf.mxu0
        %5467 = vmatprep.mubr.bf16.mxu0 0
        %5468 = vmatmul.mubr.bf16.gmra.mxu0 %v5377
        %v5469 = vpop.f32.mrf.mxu0
        %v5470 = vadd.f32 %v5333, %v5469
        %v5471 = vpop.f32.mrf.mxu0
        %v5472 = vpop.f32.mrf.mxu0
        %v5473 = vadd.f32 %v5336, %v5472
        %v5474 = vpop.f32.mrf.mxu0
        %5475 = vdwg.mxu0
        %s5476 = scalar_lea.vmem %s3, 64
        %v5477 = vld [vmem:[%s5476] sm:$0xf]
        %v5478 = vld [vmem:[%s5476 + $0x4] sm:$0xf]
        %v5479 = vld [vmem:[%s5476 + $0x8] sm:$0xf]
        %v5480 = vld [vmem:[%s5476 + $0xc] sm:$0xf]
        %v5481 = vld [vmem:[%s5476 + $0x10] sm:$0xf]
        %v5482 = vld [vmem:[%s5476 + $0x14] sm:$0xf]
        %v5483 = vld [vmem:[%s5476 + $0x18] sm:$0xf]
        %v5484 = vld [vmem:[%s5476 + $0x1c] sm:$0xf]
        %vm5501 = vcmask 1046528
        %v5502 = vrot.slane %v5063, 1
        %v5503 = vrot.slane %v5064, 1
        %v5504 = vsel %vm5501, %v5502, %v5503
        %v5505 = vrot.slane %v5065, 1
        %v5506 = vrot.slane %v5066, 1
        %v5507 = vsel %vm5501, %v5505, %v5506
        %v5508 = vrot.slane %v5067, 1
        %v5509 = vrot.slane %v5068, 1
        %v5510 = vsel %vm5501, %v5508, %v5509
        %v5511 = vrot.slane %v5069, 1
        %v5512 = vrot.slane %v5070, 1
        %v5513 = vsel %vm5501, %v5511, %v5512
        %v5514 = vrot.slane %v5071, 1
        %v5515 = vrot.slane %v5072, 1
        %v5516 = vsel %vm5501, %v5514, %v5515
        %v5517 = vrot.slane %v5073, 1
        %v5518 = vrot.slane %v5074, 1
        %v5519 = vsel %vm5501, %v5517, %v5518
        %v5520 = vrot.slane %v5075, 1
        %v5521 = vrot.slane %v5076, 1
        %v5522 = vsel %vm5501, %v5520, %v5521
        %v5523 = vrot.slane %v5077, 1
        %v5524 = vrot.slane %v5078, 1
        %v5525 = vsel %vm5501, %v5523, %v5524
        %v5534 = vunpack.c.l.b16 %v5477
        %v5535 = vunpack.c.l.b16 %v5478
        %v5536 = vunpack.c.l.b16 %v5479
        %v5537 = vunpack.c.l.b16 %v5480
        %v5538 = vunpack.c.l.b16 %v5481
        %v5539 = vunpack.c.l.b16 %v5482
        %v5540 = vunpack.c.l.b16 %v5483
        %v5541 = vunpack.c.l.b16 %v5484
        %v5542 = vpack.c.b16 %v5535, %v5534
        %v5543 = vpack.c.b16 %v5537, %v5536
        %v5544 = vpack.c.b16 %v5539, %v5538
        %v5545 = vpack.c.b16 %v5541, %v5540
        %v5551 = vsel %vm5217, %v5504, 0
        %v5554 = vsel %vm5217, %v5507, 0
        %v5557 = vsel %vm5217, %v5510, 0
        %v5560 = vsel %vm5217, %v5513, 0
        %v5563 = vsel %vm5217, %v5516, 0
        %v5566 = vsel %vm5217, %v5519, 0
        %v5569 = vsel %vm5217, %v5522, 0
        %v5572 = vsel %vm5217, %v5525, 0
        %5574 = vmatprep.subr.bf16.mxu0 0
        %5575 = vmatpush1.bf16.msra.mxu0 0
        %5576 = vmatprep.subr.bf16.mxu0 0
        %5577 = vmatpush1.bf16.msra.mxu0 0
        %5578 = vmatprep.subr.bf16.mxu0 0
        %5579 = vmatpush1.bf16.msra.mxu0 0
        %5580 = vmatprep.subr.bf16.mxu0 0
        %5581 = vmatpush1.bf16.msra.mxu0 0
        %5582 = vmatprep.subr.bf16.mxu0 0
        %5583 = vmatpush1.bf16.msra.mxu0 %v5545
        %5584 = vmatprep.subr.bf16.mxu0 0
        %5585 = vmatpush1.bf16.msra.mxu0 %v5544
        %5586 = vmatprep.subr.bf16.mxu0 0
        %5587 = vmatpush1.bf16.msra.mxu0 %v5543
        %5588 = vmatprep.subr.bf16.mxu0 0
        %5589 = vmatpush1.bf16.msra.mxu0 %v5542
        %5590 = vmatprep.subr.bf16.mxu0 0
        %5591 = vmatpush2.bf16.msra.mxu0 0
        %5592 = vmatprep.subr.bf16.mxu0 0
        %5593 = vmatpush2.bf16.msra.mxu0 0
        %5594 = vmatprep.subr.bf16.mxu0 0
        %5595 = vmatpush2.bf16.msra.mxu0 0
        %5596 = vmatprep.subr.bf16.mxu0 0
        %5597 = vmatpush2.bf16.msra.mxu0 0
        %5598 = vmatprep.subr.bf16.mxu0 0
        %5599 = vmatpush2.bf16.msra.mxu0 0
        %5600 = vmatprep.subr.bf16.mxu0 0
        %5601 = vmatpush2.bf16.msra.mxu0 0
        %5602 = vmatprep.subr.bf16.mxu0 0
        %5603 = vmatpush2.bf16.msra.mxu0 0
        %5604 = vmatprep.subr.bf16.mxu0 0
        %5605 = vmatpush2.bf16.msra.mxu0 0
        %5606 = vmatprep.mubr.bf16.mxu0 0
        %5607 = vmatmul.mubr.bf16.gmra.mxu0 %v5551
        %v5608 = vpop.f32.mrf.mxu0
        %v5609 = vadd.f32 0.0, %v5608
        %v5610 = vpop.f32.mrf.mxu0
        %v5611 = vpop.f32.mrf.mxu0
        %v5612 = vadd.f32 0.0, %v5611
        %v5613 = vpop.f32.mrf.mxu0
        %5614 = vmatprep.mubr.bf16.mxu0 0
        %5615 = vmatmul.mubr.bf16.gmra.mxu0 %v5554
        %v5616 = vpop.f32.mrf.mxu0
        %v5617 = vadd.f32 0.0, %v5616
        %v5618 = vpop.f32.mrf.mxu0
        %v5619 = vpop.f32.mrf.mxu0
        %v5620 = vadd.f32 0.0, %v5619
        %v5621 = vpop.f32.mrf.mxu0
        %5622 = vmatprep.mubr.bf16.mxu0 0
        %5623 = vmatmul.mubr.bf16.gmra.mxu0 %v5557
        %v5624 = vpop.f32.mrf.mxu0
        %v5625 = vadd.f32 0.0, %v5624
        %v5626 = vpop.f32.mrf.mxu0
        %v5627 = vpop.f32.mrf.mxu0
        %v5628 = vadd.f32 0.0, %v5627
        %v5629 = vpop.f32.mrf.mxu0
        %5630 = vmatprep.mubr.bf16.mxu0 0
        %5631 = vmatmul.mubr.bf16.gmra.mxu0 %v5560
        %v5632 = vpop.f32.mrf.mxu0
        %v5633 = vadd.f32 0.0, %v5632
        %v5634 = vpop.f32.mrf.mxu0
        %v5635 = vpop.f32.mrf.mxu0
        %v5636 = vadd.f32 0.0, %v5635
        %v5637 = vpop.f32.mrf.mxu0
        %5638 = vmatprep.mubr.bf16.mxu0 0
        %5639 = vmatmul.mubr.bf16.gmra.mxu0 %v5563
        %v5640 = vpop.f32.mrf.mxu0
        %v5641 = vadd.f32 0.0, %v5640
        %v5642 = vpop.f32.mrf.mxu0
        %v5643 = vpop.f32.mrf.mxu0
        %v5644 = vadd.f32 0.0, %v5643
        %v5645 = vpop.f32.mrf.mxu0
        %5646 = vmatprep.mubr.bf16.mxu0 0
        %5647 = vmatmul.mubr.bf16.gmra.mxu0 %v5566
        %v5648 = vpop.f32.mrf.mxu0
        %v5649 = vadd.f32 0.0, %v5648
        %v5650 = vpop.f32.mrf.mxu0
        %v5651 = vpop.f32.mrf.mxu0
        %v5652 = vadd.f32 0.0, %v5651
        %v5653 = vpop.f32.mrf.mxu0
        %5654 = vmatprep.mubr.bf16.mxu0 0
        %5655 = vmatmul.mubr.bf16.gmra.mxu0 %v5569
        %v5656 = vpop.f32.mrf.mxu0
        %v5657 = vadd.f32 0.0, %v5656
        %v5658 = vpop.f32.mrf.mxu0
        %v5659 = vpop.f32.mrf.mxu0
        %v5660 = vadd.f32 0.0, %v5659
        %v5661 = vpop.f32.mrf.mxu0
        %5662 = vmatprep.mubr.bf16.mxu0 0
        %5663 = vmatmul.mubr.bf16.gmra.mxu0 %v5572
        %v5664 = vpop.f32.mrf.mxu0
        %v5665 = vadd.f32 0.0, %v5664
        %v5666 = vpop.f32.mrf.mxu0
        %v5667 = vpop.f32.mrf.mxu0
        %v5668 = vadd.f32 0.0, %v5667
        %v5669 = vpop.f32.mrf.mxu0
        %5670 = vdwg.mxu0
        %v5671 = vadd.f32 %v5414, %v5609
        %v5672 = vadd.f32 %v5417, %v5612
        %v5673 = vadd.f32 %v5422, %v5617
        %v5674 = vadd.f32 %v5425, %v5620
        %v5675 = vadd.f32 %v5430, %v5625
        %v5676 = vadd.f32 %v5433, %v5628
        %v5677 = vadd.f32 %v5438, %v5633
        %v5678 = vadd.f32 %v5441, %v5636
        %v5679 = vadd.f32 %v5446, %v5641
        %v5680 = vadd.f32 %v5449, %v5644
        %v5681 = vadd.f32 %v5454, %v5649
        %v5682 = vadd.f32 %v5457, %v5652
        %v5683 = vadd.f32 %v5462, %v5657
        %v5684 = vadd.f32 %v5465, %v5660
        %v5685 = vadd.f32 %v5470, %v5665
        %v5686 = vadd.f32 %v5473, %v5668
        %v5687 = vld [vmem:[%s4] sm:$0x1]
        %v5689 = vlaneseq
        %v5690 = vshrl.u32 %v5689, 7
        %v5691 = vsub.s32 0, %v5690
        %v5692 = vrot.slane %v5687, %v5691
        %v5694 = vadd.f32 %v5671, %v5692
        %v5695 = vadd.f32 %v5672, %v5692
        %v5696 = vadd.f32 %v5673, %v5692
        %v5697 = vadd.f32 %v5674, %v5692
        %v5698 = vadd.f32 %v5675, %v5692
        %v5699 = vadd.f32 %v5676, %v5692
        %v5700 = vadd.f32 %v5677, %v5692
        %v5701 = vadd.f32 %v5678, %v5692
        %v5702 = vadd.f32 %v5679, %v5692
        %v5703 = vadd.f32 %v5680, %v5692
        %v5704 = vadd.f32 %v5681, %v5692
        %v5705 = vadd.f32 %v5682, %v5692
        %v5706 = vadd.f32 %v5683, %v5692
        %v5707 = vadd.f32 %v5684, %v5692
        %v5708 = vadd.f32 %v5685, %v5692
        %v5709 = vadd.f32 %v5686, %v5692
        %v5710 = vmul.f32 %v5694, 0.5
        %v5711 = vmul.f32 %v5695, 0.5
        %v5712 = vmul.f32 %v5696, 0.5
        %v5713 = vmul.f32 %v5697, 0.5
        %v5714 = vmul.f32 %v5698, 0.5
        %v5715 = vmul.f32 %v5699, 0.5
        %v5716 = vmul.f32 %v5700, 0.5
        %v5717 = vmul.f32 %v5701, 0.5
        %v5718 = vmul.f32 %v5702, 0.5
        %v5719 = vmul.f32 %v5703, 0.5
        %v5720 = vmul.f32 %v5704, 0.5
        %v5721 = vmul.f32 %v5705, 0.5
        %v5722 = vmul.f32 %v5706, 0.5
        %v5723 = vmul.f32 %v5707, 0.5
        %v5724 = vmul.f32 %v5708, 0.5
        %v5725 = vmul.f32 %v5709, 0.5
        %v5726 = vmul.f32 %v5694, 0.70710677
        %v5727 = vmul.f32 %v5695, 0.70710677
        %v5728 = vmul.f32 %v5696, 0.70710677
        %v5729 = vmul.f32 %v5697, 0.70710677
        %v5730 = vmul.f32 %v5698, 0.70710677
        %v5731 = vmul.f32 %v5699, 0.70710677
        %v5732 = vmul.f32 %v5700, 0.70710677
        %v5733 = vmul.f32 %v5701, 0.70710677
        %v5734 = vmul.f32 %v5702, 0.70710677
        %v5735 = vmul.f32 %v5703, 0.70710677
        %v5736 = vmul.f32 %v5704, 0.70710677
        %v5737 = vmul.f32 %v5705, 0.70710677
        %v5738 = vmul.f32 %v5706, 0.70710677
        %v5739 = vmul.f32 %v5707, 0.70710677
        %v5740 = vmul.f32 %v5708, 0.70710677
        %v5741 = vmul.f32 %v5709, 0.70710677
        %v5742 = verf.f32.pop %v5726
        %v5743 = verf.f32.pop %v5727
        %v5744 = verf.f32.pop %v5728
        %v5745 = verf.f32.pop %v5729
        %v5746 = verf.f32.pop %v5730
        %v5747 = verf.f32.pop %v5731
        %v5748 = verf.f32.pop %v5732
        %v5749 = verf.f32.pop %v5733
        %v5750 = verf.f32.pop %v5734
        %v5751 = verf.f32.pop %v5735
        %v5752 = verf.f32.pop %v5736
        %v5753 = verf.f32.pop %v5737
        %v5754 = verf.f32.pop %v5738
        %v5755 = verf.f32.pop %v5739
        %v5756 = verf.f32.pop %v5740
        %v5757 = verf.f32.pop %v5741
        %v5758 = vadd.f32 %v5742, 1.0
        %v5759 = vadd.f32 %v5743, 1.0
        %v5760 = vadd.f32 %v5744, 1.0
        %v5761 = vadd.f32 %v5745, 1.0
        %v5762 = vadd.f32 %v5746, 1.0
        %v5763 = vadd.f32 %v5747, 1.0
        %v5764 = vadd.f32 %v5748, 1.0
        %v5765 = vadd.f32 %v5749, 1.0
        %v5766 = vadd.f32 %v5750, 1.0
        %v5767 = vadd.f32 %v5751, 1.0
        %v5768 = vadd.f32 %v5752, 1.0
        %v5769 = vadd.f32 %v5753, 1.0
        %v5770 = vadd.f32 %v5754, 1.0
        %v5771 = vadd.f32 %v5755, 1.0
        %v5772 = vadd.f32 %v5756, 1.0
        %v5773 = vadd.f32 %v5757, 1.0
        %v5774 = vmul.f32 %v5710, %v5758
        %v5775 = vmul.f32 %v5711, %v5759
        %v5776 = vmul.f32 %v5712, %v5760
        %v5777 = vmul.f32 %v5713, %v5761
        %v5778 = vmul.f32 %v5714, %v5762
        %v5779 = vmul.f32 %v5715, %v5763
        %v5780 = vmul.f32 %v5716, %v5764
        %v5781 = vmul.f32 %v5717, %v5765
        %v5782 = vmul.f32 %v5718, %v5766
        %v5783 = vmul.f32 %v5719, %v5767
        %v5784 = vmul.f32 %v5720, %v5768
        %v5785 = vmul.f32 %v5721, %v5769
        %v5786 = vmul.f32 %v5722, %v5770
        %v5787 = vmul.f32 %v5723, %v5771
        %v5788 = vmul.f32 %v5724, %v5772
        %v5789 = vmul.f32 %v5725, %v5773
        %v5790 = vsel %vm5217, %v5774, 0.0
        %v5791 = vsel %vm5217, %v5775, 0.0
        %v5792 = vadd.f32 %v5790, %v5791
        %v5793 = vrot.slane %v5792, 4
        %v5794 = vadd.f32 %v5792, %v5793
        %v5795 = vrot.slane %v5794, 2
        %v5796 = vadd.f32 %v5794, %v5795
        %v5797 = vrot.slane %v5796, 1
        %v5798 = vadd.f32 %v5796, %v5797
        %v5799 = vsel %vm5217, %v5776, 0.0
        %v5800 = vsel %vm5217, %v5777, 0.0
        %v5801 = vadd.f32 %v5799, %v5800
        %v5802 = vrot.slane %v5801, 4
        %v5803 = vadd.f32 %v5801, %v5802
        %v5804 = vrot.slane %v5803, 2
        %v5805 = vadd.f32 %v5803, %v5804
        %v5806 = vrot.slane %v5805, 1
        %v5807 = vadd.f32 %v5805, %v5806
        %v5808 = vsel %vm5217, %v5778, 0.0
        %v5809 = vsel %vm5217, %v5779, 0.0
        %v5810 = vadd.f32 %v5808, %v5809
        %v5811 = vrot.slane %v5810, 4
        %v5812 = vadd.f32 %v5810, %v5811
        %v5813 = vrot.slane %v5812, 2
        %v5814 = vadd.f32 %v5812, %v5813
        %v5815 = vrot.slane %v5814, 1
        %v5816 = vadd.f32 %v5814, %v5815
        %v5817 = vsel %vm5217, %v5780, 0.0
        %v5818 = vsel %vm5217, %v5781, 0.0
        %v5819 = vadd.f32 %v5817, %v5818
        %v5820 = vrot.slane %v5819, 4
        %v5821 = vadd.f32 %v5819, %v5820
        %v5822 = vrot.slane %v5821, 2
        %v5823 = vadd.f32 %v5821, %v5822
        %v5824 = vrot.slane %v5823, 1
        %v5825 = vadd.f32 %v5823, %v5824
        %v5826 = vsel %vm5217, %v5782, 0.0
        %v5827 = vsel %vm5217, %v5783, 0.0
        %v5828 = vadd.f32 %v5826, %v5827
        %v5829 = vrot.slane %v5828, 4
        %v5830 = vadd.f32 %v5828, %v5829
        %v5831 = vrot.slane %v5830, 2
        %v5832 = vadd.f32 %v5830, %v5831
        %v5833 = vrot.slane %v5832, 1
        %v5834 = vadd.f32 %v5832, %v5833
        %v5835 = vsel %vm5217, %v5784, 0.0
        %v5836 = vsel %vm5217, %v5785, 0.0
        %v5837 = vadd.f32 %v5835, %v5836
        %v5838 = vrot.slane %v5837, 4
        %v5839 = vadd.f32 %v5837, %v5838
        %v5840 = vrot.slane %v5839, 2
        %v5841 = vadd.f32 %v5839, %v5840
        %v5842 = vrot.slane %v5841, 1
        %v5843 = vadd.f32 %v5841, %v5842
        %v5844 = vsel %vm5217, %v5786, 0.0
        %v5845 = vsel %vm5217, %v5787, 0.0
        %v5846 = vadd.f32 %v5844, %v5845
        %v5847 = vrot.slane %v5846, 4
        %v5848 = vadd.f32 %v5846, %v5847
        %v5849 = vrot.slane %v5848, 2
        %v5850 = vadd.f32 %v5848, %v5849
        %v5851 = vrot.slane %v5850, 1
        %v5852 = vadd.f32 %v5850, %v5851
        %v5853 = vsel %vm5217, %v5788, 0.0
        %v5854 = vsel %vm5217, %v5789, 0.0
        %v5855 = vadd.f32 %v5853, %v5854
        %v5856 = vrot.slane %v5855, 4
        %v5857 = vadd.f32 %v5855, %v5856
        %v5858 = vrot.slane %v5857, 2
        %v5859 = vadd.f32 %v5857, %v5858
        %v5860 = vrot.slane %v5859, 1
        %v5861 = vadd.f32 %v5859, %v5860
        %v5862 = vpack.c.bf16 %v5798, %v5798
        %v5863 = vpack.c.bf16 %v5807, %v5807
        %v5864 = vpack.c.bf16 %v5816, %v5816
        %v5865 = vpack.c.bf16 %v5825, %v5825
        %v5866 = vpack.c.bf16 %v5834, %v5834
        %v5867 = vpack.c.bf16 %v5843, %v5843
        %v5868 = vpack.c.bf16 %v5852, %v5852
        %v5869 = vpack.c.bf16 %v5861, %v5861
        %v5870 = vld [vmem:[%s5] sm:$0xf]
        %v5871 = vld [vmem:[%s5 + $0x4] sm:$0xf]
        %v5872 = vld [vmem:[%s5 + $0x8] sm:$0xf]
        %v5873 = vld [vmem:[%s5 + $0xc] sm:$0xf]
        %v5874 = vld [vmem:[%s5 + $0x10] sm:$0xf]
        %v5875 = vld [vmem:[%s5 + $0x14] sm:$0xf]
        %v5876 = vld [vmem:[%s5 + $0x18] sm:$0xf]
        %v5877 = vld [vmem:[%s5 + $0x1c] sm:$0xf]
        %v5878 = vld [vmem:[%s6] sm:$0x1]
        %v5880 = vlaneseq
        %v5881 = vshrl.u32 %v5880, 7
        %v5882 = vsub.s32 0, %v5881
        %v5883 = vrot.slane %v5878, %v5882
        %v5893 = vunpack.c.l.b16 %v5862
        %v5894 = vunpack.c.l.b16 %v5863
        %v5895 = vunpack.c.l.b16 %v5864
        %v5896 = vunpack.c.l.b16 %v5865
        %v5897 = vunpack.c.l.b16 %v5866
        %v5898 = vunpack.c.l.b16 %v5867
        %v5899 = vunpack.c.l.b16 %v5868
        %v5900 = vunpack.c.l.b16 %v5869
        %vm5901 = vcmask 1041409
        %v5902 = vsel %vm5901, %v5894, %v5893
        %vm5903 = vcmask 1042434
        %v5904 = vsel %vm5903, %v5895, %v5902
        %vm5905 = vcmask 1043459
        %v5906 = vsel %vm5905, %v5896, %v5904
        %vm5907 = vcmask 1044484
        %v5908 = vsel %vm5907, %v5897, %v5906
        %vm5909 = vcmask 1045509
        %v5910 = vsel %vm5909, %v5898, %v5908
        %vm5911 = vcmask 1046534
        %v5912 = vsel %vm5911, %v5899, %v5910
        %vm5913 = vcmask 1047559
        %v5914 = vsel %vm5913, %v5900, %v5912
        %v5915 = vpack.c.b16 %v5914, %v5914
        %v5924 = vunpack.c.l.b16 %v5870
        %v5925 = vunpack.c.l.b16 %v5871
        %v5926 = vunpack.c.l.b16 %v5872
        %v5927 = vunpack.c.l.b16 %v5873
        %v5928 = vunpack.c.l.b16 %v5874
        %v5929 = vunpack.c.l.b16 %v5875
        %v5930 = vunpack.c.l.b16 %v5876
        %v5931 = vunpack.c.l.b16 %v5877
        %v5932 = vpack.c.b16 %v5925, %v5924
        %v5933 = vpack.c.b16 %v5927, %v5926
        %v5934 = vpack.c.b16 %v5929, %v5928
        %v5935 = vpack.c.b16 %v5931, %v5930
        %v5941 = vsel %vm5217, %v5915, 0
        %5943 = vmatprep.subr.bf16.mxu0 0
        %5944 = vmatpush1.bf16.msra.mxu0 0
        %5945 = vmatprep.subr.bf16.mxu0 0
        %5946 = vmatpush1.bf16.msra.mxu0 0
        %5947 = vmatprep.subr.bf16.mxu0 0
        %5948 = vmatpush1.bf16.msra.mxu0 0
        %5949 = vmatprep.subr.bf16.mxu0 0
        %5950 = vmatpush1.bf16.msra.mxu0 0
        %5951 = vmatprep.subr.bf16.mxu0 0
        %5952 = vmatpush1.bf16.msra.mxu0 %v5935
        %5953 = vmatprep.subr.bf16.mxu0 0
        %5954 = vmatpush1.bf16.msra.mxu0 %v5934
        %5955 = vmatprep.subr.bf16.mxu0 0
        %5956 = vmatpush1.bf16.msra.mxu0 %v5933
        %5957 = vmatprep.subr.bf16.mxu0 0
        %5958 = vmatpush1.bf16.msra.mxu0 %v5932
        %5959 = vmatprep.subr.bf16.mxu0 0
        %5960 = vmatpush2.bf16.msra.mxu0 0
        %5961 = vmatprep.subr.bf16.mxu0 0
        %5962 = vmatpush2.bf16.msra.mxu0 0
        %5963 = vmatprep.subr.bf16.mxu0 0
        %5964 = vmatpush2.bf16.msra.mxu0 0
        %5965 = vmatprep.subr.bf16.mxu0 0
        %5966 = vmatpush2.bf16.msra.mxu0 0
        %5967 = vmatprep.subr.bf16.mxu0 0
        %5968 = vmatpush2.bf16.msra.mxu0 0
        %5969 = vmatprep.subr.bf16.mxu0 0
        %5970 = vmatpush2.bf16.msra.mxu0 0
        %5971 = vmatprep.subr.bf16.mxu0 0
        %5972 = vmatpush2.bf16.msra.mxu0 0
        %5973 = vmatprep.subr.bf16.mxu0 0
        %5974 = vmatpush2.bf16.msra.mxu0 0
        %5975 = vmatprep.mubr.bf16.mxu0 0
        %5976 = vmatmul.mubr.bf16.gmra.mxu0 %v5941
        %v5977 = vpop.f32.mrf.mxu0
        %v5978 = vadd.f32 %v5883, %v5977
        %v5979 = vpop.f32.mrf.mxu0
        %v5980 = vpop.f32.mrf.mxu0
        %v5981 = vpop.f32.mrf.mxu0
        %5982 = vdwg.mxu0
        %v5983 = vmul.f32 %v5978, 0.5
        %v5984 = vmul.f32 %v5978, 0.70710677
        %v5985 = verf.f32.pop %v5984
        %v5986 = vadd.f32 %v5985, 1.0
        %v5987 = vmul.f32 %v5983, %v5986
        %v5988 = vpack.c.bf16 %v5987, %v5987
        %v5989 = vld [vmem:[%s7] sm:$0xf]
        %v5990 = vld [vmem:[%s7 + $0x4] sm:$0xf]
        %v5991 = vld [vmem:[%s7 + $0x8] sm:$0xf]
        %v5992 = vld [vmem:[%s7 + $0xc] sm:$0xf]
        %v5993 = vld [vmem:[%s7 + $0x10] sm:$0xf]
        %v5994 = vld [vmem:[%s7 + $0x14] sm:$0xf]
        %v5995 = vld [vmem:[%s7 + $0x18] sm:$0xf]
        %v5996 = vld [vmem:[%s7 + $0x1c] sm:$0xf]
        %v5997 = vld [vmem:[%s8] sm:$0x1]
        %v5999 = vlaneseq
        %v6000 = vshrl.u32 %v5999, 7
        %v6001 = vsub.s32 0, %v6000
        %v6002 = vrot.slane %v5997, %v6001
        %v6012 = vunpack.c.l.b16 %v5989
        %v6013 = vunpack.c.l.b16 %v5990
        %v6014 = vunpack.c.l.b16 %v5991
        %v6015 = vunpack.c.l.b16 %v5992
        %v6016 = vunpack.c.l.b16 %v5993
        %v6017 = vunpack.c.l.b16 %v5994
        %v6018 = vunpack.c.l.b16 %v5995
        %v6019 = vunpack.c.l.b16 %v5996
        %v6020 = vpack.c.b16 %v6013, %v6012
        %v6021 = vpack.c.b16 %v6015, %v6014
        %v6022 = vpack.c.b16 %v6017, %v6016
        %v6023 = vpack.c.b16 %v6019, %v6018
        %v6029 = vsel %vm5217, %v5988, 0
        %6031 = vmatprep.subr.bf16.mxu0 0
        %6032 = vmatpush1.bf16.msra.mxu0 0
        %6033 = vmatprep.subr.bf16.mxu0 0
        %6034 = vmatpush1.bf16.msra.mxu0 0
        %6035 = vmatprep.subr.bf16.mxu0 0
        %6036 = vmatpush1.bf16.msra.mxu0 0
        %6037 = vmatprep.subr.bf16.mxu0 0
        %6038 = vmatpush1.bf16.msra.mxu0 0
        %6039 = vmatprep.subr.bf16.mxu0 0
        %6040 = vmatpush1.bf16.msra.mxu0 %v6023
        %6041 = vmatprep.subr.bf16.mxu0 0
        %6042 = vmatpush1.bf16.msra.mxu0 %v6022
        %6043 = vmatprep.subr.bf16.mxu0 0
        %6044 = vmatpush1.bf16.msra.mxu0 %v6021
        %6045 = vmatprep.subr.bf16.mxu0 0
        %6046 = vmatpush1.bf16.msra.mxu0 %v6020
        %6047 = vmatprep.subr.bf16.mxu0 0
        %6048 = vmatpush2.bf16.msra.mxu0 0
        %6049 = vmatprep.subr.bf16.mxu0 0
        %6050 = vmatpush2.bf16.msra.mxu0 0
        %6051 = vmatprep.subr.bf16.mxu0 0
        %6052 = vmatpush2.bf16.msra.mxu0 0
        %6053 = vmatprep.subr.bf16.mxu0 0
        %6054 = vmatpush2.bf16.msra.mxu0 0
        %6055 = vmatprep.subr.bf16.mxu0 0
        %6056 = vmatpush2.bf16.msra.mxu0 0
        %6057 = vmatprep.subr.bf16.mxu0 0
        %6058 = vmatpush2.bf16.msra.mxu0 0
        %6059 = vmatprep.subr.bf16.mxu0 0
        %6060 = vmatpush2.bf16.msra.mxu0 0
        %6061 = vmatprep.subr.bf16.mxu0 0
        %6062 = vmatpush2.bf16.msra.mxu0 0
        %6063 = vmatprep.mubr.bf16.mxu0 0
        %6064 = vmatmul.mubr.bf16.gmra.mxu0 %v6029
        %v6065 = vpop.f32.mrf.mxu0
        %v6066 = vadd.f32 %v6002, %v6065
        %v6067 = vpop.f32.mrf.mxu0
        %v6068 = vpop.f32.mrf.mxu0
        %v6069 = vpop.f32.mrf.mxu0
        %6070 = vdwg.mxu0
        %6071 = vst [vmem:[%s328] sm:$0xff] %v6066
        %s6072 = sand.u32 %s225, 1
        %s6073 = scalar_lea.sflag [#allocation3], %s6072
        %s6074 = sand.u32 %s225, 1
        %s6075 = smul.addr %s6074, 8
        %s6076 = scalar_lea.vmem [#allocation2], %s6075
        // Predicated region
        $region57: #{tpu_custom_call.1} parent=55 // pred_check
          %p6077 = pneg %p235
        $region58: #{tpu_custom_call.1} parent=55 // pred_check_branch
          %6079 = sbr.rel (%p6077) target = $region60
        $region59: #{tpu_custom_call.1} parent=55 // pred_region
          %s6081 = ssub.s32 128, 128
          %6082 = vsyncadd %s6073, %s6081
          %s6083 = smul.addr %s23, 128
          %s6084 = scalar_lea.hbm %s9, %s6083
          %s6086 = sshll.u32 %s6076, 4
          %s6087 = int_to_ptr.vmem [resolvable:$true] %s6086
          %6089 = dma.vmem_to_hbm [thread:$0]  %s6087, 128, %s6084, %s6073
        $region60: #{tpu_custom_call.1} parent=55 // pred_fallthru
          _
      $region56: #{tpu_custom_call.1} parent=5 // pred_fallthru
        _
      %p6090 = scmp.le.s32.totalorder 2, %s18
      // Predicated region
      $region61: #{tpu_custom_call.1} parent=5 // pred_check
        %p6091 = pneg %p6090
      $region62: #{tpu_custom_call.1} parent=5 // pred_check_branch
        %6093 = sbr.rel (%p6091) target = $region64
      $region63: #{tpu_custom_call.1} parent=5 // pred_region
        %s6094 = ssub.s32 %s18, 2
        // Predicated region
        $region65: #{tpu_custom_call.1} parent=63 // pred_check
          %p6095 = pneg %p241
        $region66: #{tpu_custom_call.1} parent=63 // pred_check_branch
          %6097 = sbr.rel (%p6095) target = $region68
        $region67: #{tpu_custom_call.1} parent=63 // pred_region
          %s6098 = sand.u32 %s226, 1
          %s6099 = scalar_lea.sflag [#allocation3], %s6098
          %s6100 = sand.u32 %s226, 1
          %s6101 = smul.addr %s6100, 8
          %s6102 = scalar_lea.vmem [#allocation2], %s6101
          %6103 = dma.done %s6099, 128
        $region68: #{tpu_custom_call.1} parent=63 // pred_fallthru
          _
      $region64: #{tpu_custom_call.1} parent=5 // pred_fallthru
        _
    $region6: #{tpu_custom_call.1} parent=1 // loop_footer
      %s22 = sadd.s32 1, %s18
    $region7: #{tpu_custom_call.1} parent=1 // loop_footer_branch
      %17 = sbr.rel target = $region3
    $region8: #{tpu_custom_call.1} parent=1 // loop_exit
      _
    %6104 = vsyncpa [#allocation3], 1
    %s6105 = scalar_lea.sflag [#allocation3], 1
    %6106 = vsyncpa %s6105, 1

</llo_original>
